<compile_context>
chip_gen: v7x
topology: tpu7x:2x2x1
jax: 0.10.0
libtpu: 0.0.40
codegen_flags: <defaults>
</compile_context>

<pallas_src>
import functools

import jax
import jax.numpy as jnp
import numpy as np
from jax.experimental import pallas as pl
from jax.experimental.pallas import tpu as pltpu


def sign_lstm_kernel(x2d_ref, wih0_ref, b0_ref, wbig_ref, b1_ref,
                     wfc_ref, bfc_ref, out_ref, pg_ref, *, T, Bp, Hp):
    """Whole-sequence 2-layer LSTM + classifier, single invocation.

    Gate column order everywhere is [i, f, o, g], each gate occupying a full
    128-lane (Hp) column block (upper Hp-H lanes are dead zeros, neutralized
    by zero weight rows / zero bias).
    """
    H4 = 4 * Hp
    H3 = 3 * Hp

    # ---- Prologue: layer-0 input projection for every step (off the serial
    # path), kept in f32, stored to VMEM scratch.
    pg_ref[...] = (
        jnp.dot(x2d_ref[...], wih0_ref[...], preferred_element_type=jnp.float32)
        + b0_ref[...]
    )

    wbig = wbig_ref[...]          # (2Hp, 8Hp) bf16: [[Wih1 | Whh0],[Whh1 | 0]]
    b1 = b1_ref[...]              # (Bp, 4Hp) f32, pre-broadcast

    def activate(gates, c):
        # gates columns: [ i | f | o | g ] -> one contiguous sigmoid region
        # (Bp, 3Hp) and one tanh region (Bp, Hp); every slice vreg-aligned.
        sig = jax.nn.sigmoid(gates[:, :H3])
        g = jnp.tanh(gates[:, H3:])
        i = sig[:, :Hp]
        f = sig[:, Hp:2 * Hp]
        o = sig[:, 2 * Hp:]
        c_new = f * c + i * g
        h_new = o * jnp.tanh(c_new)
        return h_new, c_new

    zeros = jnp.zeros((Bp, Hp), jnp.float32)
    c1 = zeros
    h2, c2 = zeros, zeros

    # Step 0, layer 0: recurrent term is zero because h1(-1) = 0.
    h1, c1 = activate(pg_ref[pl.ds(0, Bp), :], c1)

    # ---- Fully unrolled recurrence (T static & small). One fused matmul per
    # step yields layer-1 gates(t) and layer-0 recurrent pre-gates(t+1).
    for t in range(T):
        lhs = jnp.concatenate([h1, h2], axis=-1).astype(jnp.bfloat16)
        fused = jnp.dot(lhs, wbig, preferred_element_type=jnp.float32)

        # Layer 1, step t.
        h2, c2 = activate(fused[:, :H4] + b1, c2)

        # Layer 0, step t+1 (skip after the last step).
        if t + 1 < T:
            gates0 = pg_ref[pl.ds((t + 1) * Bp, Bp), :] + fused[:, H4:]
            h1, c1 = activate(gates0, c1)

    # ---- Classifier on the final top-layer hidden state (lane-dense store).
    out_ref[...] = (
        jnp.dot(h2.astype(jnp.bfloat16), wfc_ref[...],
                preferred_element_type=jnp.float32)
        + bfc_ref[...]
    )


def sign_lstm_forward(x, params):
    """x: (B, T, I) float32 (batch_first, like the PyTorch module)."""
    B, T, I = x.shape
    H = params["hidden_size"]
    C = params["num_classes"]

    Hp = 128      # per-gate lane stride (one full vreg width)
    Bp = 8        # sublane-tile-padded batch
    I_pad = 256   # lane-padded input feature dim
    C_PAD = 128   # lane-dense classifier output width
    assert B <= Bp and H <= Hp and I <= I_pad and C <= C_PAD

    src_order = (0, 1, 3, 2)      # PyTorch [i, f, g, o] -> kernel [i, f, o, g]

    def prep_w(w, k_pad):
        """(4H, in) PyTorch weight -> (k_pad, 4*Hp), gate-reordered & padded."""
        w = jnp.asarray(w, jnp.float32).T                  # (in, 4H)
        in_dim = w.shape[0]
        out = jnp.zeros((k_pad, 4 * Hp), jnp.float32)
        for dst, src in enumerate(src_order):
            out = out.at[:in_dim, dst * Hp:dst * Hp + H].set(
                w[:, src * H:(src + 1) * H])
        return out

    def prep_b(b_ih, b_hh):
        """Combined bias, gate-reordered & padded -> (1, 4*Hp)."""
        b = jnp.asarray(b_ih, jnp.float32) + jnp.asarray(b_hh, jnp.float32)
        out = jnp.zeros((4 * Hp,), jnp.float32)
        for dst, src in enumerate(src_order):
            out = out.at[dst * Hp:dst * Hp + H].set(b[src * H:(src + 1) * H])
        return out.reshape(1, 4 * Hp)

    wih0 = prep_w(params["w_ih_l0"], I_pad)                # (I_pad, 4Hp) f32
    whh0 = prep_w(params["w_hh_l0"], Hp)                   # (Hp, 4Hp)
    wih1 = prep_w(params["w_ih_l1"], Hp)                   # (Hp, 4Hp)
    whh1 = prep_w(params["w_hh_l1"], Hp)                   # (Hp, 4Hp)

    b0 = prep_b(params["b_ih_l0"], params["b_hh_l0"])      # (1, 4Hp)
    b1 = jnp.broadcast_to(prep_b(params["b_ih_l1"], params["b_hh_l1"]),
                          (Bp, 4 * Hp))                    # (Bp, 4Hp)

    # Fused per-step RHS (bf16, lives on the serial path):
    #   [[W_ih_l1 | W_hh_l0],
    #    [W_hh_l1 |    0   ]]
    wbig = jnp.zeros((2 * Hp, 8 * Hp), jnp.float32)
    wbig = wbig.at[:Hp, :4 * Hp].set(wih1)
    wbig = wbig.at[Hp:, :4 * Hp].set(whh1)
    wbig = wbig.at[:Hp, 4 * Hp:].set(whh0)
    wbig = wbig.astype(jnp.bfloat16)

    wfc = jnp.zeros((Hp, C_PAD), jnp.float32).at[:H, :C].set(
        jnp.asarray(params["w_fc"], jnp.float32).T).astype(jnp.bfloat16)
    bfc = jnp.zeros((1, C_PAD), jnp.float32).at[:, :C].set(
        jnp.asarray(params["b_fc"], jnp.float32).reshape(1, C))

    # Time-major, batch/feature padded: row t*Bp + b is (time t, batch b).
    x_pad = jnp.zeros((Bp, T, I_pad), jnp.float32).at[:B, :, :I].set(x)
    x2d = jnp.transpose(x_pad, (1, 0, 2)).reshape(T * Bp, I_pad)

    kernel = functools.partial(sign_lstm_kernel, T=T, Bp=Bp, Hp=Hp)
    vmem = pl.BlockSpec(memory_space=pltpu.MemorySpace.VMEM)

    out_pad = pl.pallas_call(
        kernel,
        out_shape=jax.ShapeDtypeStruct((Bp, C_PAD), jnp.float32),
        in_specs=[vmem] * 7,
        out_specs=vmem,
        scratch_shapes=[pltpu.VMEM((T * Bp, 4 * Hp), jnp.float32)],
    )(x2d, wih0, b0, wbig, b1, wfc, bfc)

    return out_pad[:B, :C]


def sign_lstm_reference(x, params):
    """Pure-JAX reference matching torch.nn.LSTM + Linear semantics."""
    B, T, _ = x.shape
    H = params["hidden_size"]

    def cell(x_t, h, c, w_ih, w_hh, b_ih, b_hh):
        gates = x_t @ w_ih.T + h @ w_hh.T + b_ih + b_hh
        i, f, g, o = jnp.split(gates, 4, axis=-1)
        c = jax.nn.sigmoid(f) * c + jax.nn.sigmoid(i) * jnp.tanh(g)
        h = jax.nn.sigmoid(o) * jnp.tanh(c)
        return h, c

    h1 = jnp.zeros((B, H), jnp.float32)
    c1 = jnp.zeros((B, H), jnp.float32)
    h2 = jnp.zeros((B, H), jnp.float32)
    c2 = jnp.zeros((B, H), jnp.float32)
    for t in range(T):
        h1, c1 = cell(x[:, t], h1, c1, params["w_ih_l0"], params["w_hh_l0"],
                      params["b_ih_l0"], params["b_hh_l0"])
        h2, c2 = cell(h1, h2, c2, params["w_ih_l1"], params["w_hh_l1"],
                      params["b_ih_l1"], params["b_hh_l1"])
    return h2 @ params["w_fc"].T + params["b_fc"]


def init_params(key, input_size, hidden_size, num_classes):
    """Deterministic init mimicking PyTorch's U(-1/sqrt(H), 1/sqrt(H))."""
    k = 1.0 / np.sqrt(hidden_size)
    keys = jax.random.split(key, 10)
    u = lambda kk, shape: jax.random.uniform(kk, shape, jnp.float32, -k, k)
    H4 = 4 * hidden_size
    return {
        "hidden_size": hidden_size,
        "num_classes": num_classes,
        "w_ih_l0": u(keys[0], (H4, input_size)),
        "w_hh_l0": u(keys[1], (H4, hidden_size)),
        "b_ih_l0": u(keys[2], (H4,)),
        "b_hh_l0": u(keys[3], (H4,)),
        "w_ih_l1": u(keys[4], (H4, hidden_size)),
        "w_hh_l1": u(keys[5], (H4, hidden_size)),
        "b_ih_l1": u(keys[6], (H4,)),
        "b_hh_l1": u(keys[7], (H4,)),
        "w_fc": u(keys[8], (num_classes, hidden_size)),
        "b_fc": u(keys[9], (num_classes,)),
    }


if __name__ == "__main__":
    INPUT_SIZE, HIDDEN, NUM_CLASSES = 135, 64, 3
    BATCH, SEQ = 2, 8

    key = jax.random.PRNGKey(0)
    k_params, k_x = jax.random.split(key)
    params = init_params(k_params, INPUT_SIZE, HIDDEN, NUM_CLASSES)
    x = jax.random.normal(k_x, (BATCH, SEQ, INPUT_SIZE), jnp.float32)

    out = jax.block_until_ready(sign_lstm_forward(x, params))
    ref = jax.block_until_ready(sign_lstm_reference(x, params))

    # Tolerance accounts for bf16 matmul operands on the recurrence path
    # (f32 accumulation, f32 elementwise state).
    np.testing.assert_allclose(np.asarray(out), np.asarray(ref),
                               rtol=1e-2, atol=1e-2)
    print("KERNEL_OK")
</pallas_src>

<mosaic_0001>
module attributes {stable_mosaic.version = 11 : i64} {
  func.func @sign_lstm_kernel(%arg0: memref<64x256xf32, #tpu.memory_space<vmem>>, %arg1: memref<256x512xf32, #tpu.memory_space<vmem>>, %arg2: memref<1x512xf32, #tpu.memory_space<vmem>>, %arg3: memref<256x1024xbf16, #tpu.memory_space<vmem>>, %arg4: memref<8x512xf32, #tpu.memory_space<vmem>>, %arg5: memref<128x128xbf16, #tpu.memory_space<vmem>>, %arg6: memref<1x128xf32, #tpu.memory_space<vmem>>, %arg7: memref<8x128xf32, #tpu.memory_space<vmem>>, %arg8: memref<64x512xf32, #tpu.memory_space<vmem>>) attributes {dimension_semantics = [], scalar_prefetch = 0 : i64, scratch_operands = 1 : i64, tpu.core_type = #tpu.core_type<tc>} {
    %c0 = arith.constant 0 : index
    %c0_0 = arith.constant 0 : index
    %0 = vector.load %arg0[%c0, %c0_0] : memref<64x256xf32, #tpu.memory_space<vmem>>, vector<64x256xf32>
    %c0_1 = arith.constant 0 : index
    %c0_2 = arith.constant 0 : index
    %1 = vector.load %arg1[%c0_1, %c0_2] : memref<256x512xf32, #tpu.memory_space<vmem>>, vector<256x512xf32>
    %cst = arith.constant dense<0.000000e+00> : vector<64x512xf32>
    %2 = tpu.matmul %0, %1, %cst {dimension_numbers = #tpu.dot_dimension_numbers<[1], [0], [0], [1], [0, 0, 1, 1], [], []>} : vector<64x256xf32>, vector<256x512xf32>, vector<64x512xf32> -> vector<64x512xf32>
    %c0_3 = arith.constant 0 : index
    %c0_4 = arith.constant 0 : index
    %3 = vector.load %arg2[%c0_3, %c0_4] : memref<1x512xf32, #tpu.memory_space<vmem>>, vector<1x512xf32>
    %4 = vector.broadcast %3 : vector<1x512xf32> to vector<64x512xf32>
    %5 = arith.addf %2, %4 : vector<64x512xf32>
    %c0_5 = arith.constant 0 : index
    %c0_6 = arith.constant 0 : index
    %6 = vector.load %arg8[%c0_5, %c0_6] : memref<64x512xf32, #tpu.memory_space<vmem>>, vector<64x512xf32>
    tpu.vector_store %arg8[%c0_5, %c0_6], %5 {strides = array<i32>} : memref<64x512xf32, #tpu.memory_space<vmem>>, vector<64x512xf32>,
    %c0_7 = arith.constant 0 : index
    %c0_8 = arith.constant 0 : index
    %7 = vector.load %arg3[%c0_7, %c0_8] : memref<256x1024xbf16, #tpu.memory_space<vmem>>, vector<256x1024xbf16>
    %c0_9 = arith.constant 0 : index
    %c0_10 = arith.constant 0 : index
    %8 = vector.load %arg4[%c0_9, %c0_10] : memref<8x512xf32, #tpu.memory_space<vmem>>, vector<8x512xf32>
    %cst_11 = arith.constant 0.000000e+00 : f32
    %9 = vector.broadcast %cst_11 : f32 to vector<8x128xf32>
    %c0_12 = arith.constant 0 : index
    %c0_13 = arith.constant 0 : index
    %10 = vector.load %arg8[%c0_12, %c0_13] : memref<64x512xf32, #tpu.memory_space<vmem>>, vector<8x512xf32>
    %11 = vector.extract_strided_slice %10 {offsets = [0, 0], sizes = [8, 384], strides = [1, 1]} : vector<8x512xf32> to vector<8x384xf32>
    %12 = arith.negf %11 : vector<8x384xf32>
    %13 = math.exp %12 : vector<8x384xf32>
    %cst_14 = arith.constant 1.000000e+00 : f32
    %14 = vector.broadcast %cst_14 : f32 to vector<8x384xf32>
    %15 = arith.addf %14, %13 : vector<8x384xf32>
    %16 = arith.divf %14, %15 : vector<8x384xf32>
    %17 = vector.extract_strided_slice %10 {offsets = [0, 384], sizes = [8, 128], strides = [1, 1]} : vector<8x512xf32> to vector<8x128xf32>
    %18 = math.tanh %17 : vector<8x128xf32>
    %19 = vector.extract_strided_slice %16 {offsets = [0, 0], sizes = [8, 128], strides = [1, 1]} : vector<8x384xf32> to vector<8x128xf32>
    %20 = vector.extract_strided_slice %16 {offsets = [0, 128], sizes = [8, 128], strides = [1, 1]} : vector<8x384xf32> to vector<8x128xf32>
    %21 = vector.extract_strided_slice %16 {offsets = [0, 256], sizes = [8, 128], strides = [1, 1]} : vector<8x384xf32> to vector<8x128xf32>
    %22 = arith.mulf %20, %9 : vector<8x128xf32>
    %23 = arith.mulf %19, %18 : vector<8x128xf32>
    %24 = arith.addf %22, %23 : vector<8x128xf32>
    %25 = math.tanh %24 : vector<8x128xf32>
    %26 = arith.mulf %21, %25 : vector<8x128xf32>
    %27 = tpu.concatenate %26, %9 in 1 : vector<8x128xf32>, vector<8x128xf32> -> vector<8x256xf32>
    %28 = arith.truncf %27 : vector<8x256xf32> to vector<8x256xbf16>
    %cst_15 = arith.constant dense<0.000000e+00> : vector<8x1024xf32>
    %29 = tpu.matmul %28, %7, %cst_15 {dimension_numbers = #tpu.dot_dimension_numbers<[1], [0], [0], [1], [0, 0, 1, 1], [], []>} : vector<8x256xbf16>, vector<256x1024xbf16>, vector<8x1024xf32> -> vector<8x1024xf32>
    %30 = vector.extract_strided_slice %29 {offsets = [0, 0], sizes = [8, 512], strides = [1, 1]} : vector<8x1024xf32> to vector<8x512xf32>
    %31 = arith.addf %30, %8 : vector<8x512xf32>
    %32 = vector.extract_strided_slice %31 {offsets = [0, 0], sizes = [8, 384], strides = [1, 1]} : vector<8x512xf32> to vector<8x384xf32>
    %33 = arith.negf %32 : vector<8x384xf32>
    %34 = math.exp %33 : vector<8x384xf32>
    %cst_16 = arith.constant 1.000000e+00 : f32
    %35 = vector.broadcast %cst_16 : f32 to vector<8x384xf32>
    %36 = arith.addf %35, %34 : vector<8x384xf32>
    %37 = arith.divf %35, %36 : vector<8x384xf32>
    %38 = vector.extract_strided_slice %31 {offsets = [0, 384], sizes = [8, 128], strides = [1, 1]} : vector<8x512xf32> to vector<8x128xf32>
    %39 = math.tanh %38 : vector<8x128xf32>
    %40 = vector.extract_strided_slice %37 {offsets = [0, 0], sizes = [8, 128], strides = [1, 1]} : vector<8x384xf32> to vector<8x128xf32>
    %41 = vector.extract_strided_slice %37 {offsets = [0, 128], sizes = [8, 128], strides = [1, 1]} : vector<8x384xf32> to vector<8x128xf32>
    %42 = vector.extract_strided_slice %37 {offsets = [0, 256], sizes = [8, 128], strides = [1, 1]} : vector<8x384xf32> to vector<8x128xf32>
    %43 = arith.mulf %41, %9 : vector<8x128xf32>
    %44 = arith.mulf %40, %39 : vector<8x128xf32>
    %45 = arith.addf %43, %44 : vector<8x128xf32>
    %46 = math.tanh %45 : vector<8x128xf32>
    %47 = arith.mulf %42, %46 : vector<8x128xf32>
    %c8 = arith.constant 8 : index
    %c0_17 = arith.constant 0 : index
    %48 = vector.load %arg8[%c8, %c0_17] : memref<64x512xf32, #tpu.memory_space<vmem>>, vector<8x512xf32>
    %49 = vector.extract_strided_slice %29 {offsets = [0, 512], sizes = [8, 512], strides = [1, 1]} : vector<8x1024xf32> to vector<8x512xf32>
    %50 = arith.addf %48, %49 : vector<8x512xf32>
    %51 = vector.extract_strided_slice %50 {offsets = [0, 0], sizes = [8, 384], strides = [1, 1]} : vector<8x512xf32> to vector<8x384xf32>
    %52 = arith.negf %51 : vector<8x384xf32>
    %53 = math.exp %52 : vector<8x384xf32>
    %cst_18 = arith.constant 1.000000e+00 : f32
    %54 = vector.broadcast %cst_18 : f32 to vector<8x384xf32>
    %55 = arith.addf %54, %53 : vector<8x384xf32>
    %56 = arith.divf %54, %55 : vector<8x384xf32>
    %57 = vector.extract_strided_slice %50 {offsets = [0, 384], sizes = [8, 128], strides = [1, 1]} : vector<8x512xf32> to vector<8x128xf32>
    %58 = math.tanh %57 : vector<8x128xf32>
    %59 = vector.extract_strided_slice %56 {offsets = [0, 0], sizes = [8, 128], strides = [1, 1]} : vector<8x384xf32> to vector<8x128xf32>
    %60 = vector.extract_strided_slice %56 {offsets = [0, 128], sizes = [8, 128], strides = [1, 1]} : vector<8x384xf32> to vector<8x128xf32>
    %61 = vector.extract_strided_slice %56 {offsets = [0, 256], sizes = [8, 128], strides = [1, 1]} : vector<8x384xf32> to vector<8x128xf32>
    %62 = arith.mulf %60, %24 : vector<8x128xf32>
    %63 = arith.mulf %59, %58 : vector<8x128xf32>
    %64 = arith.addf %62, %63 : vector<8x128xf32>
    %65 = math.tanh %64 : vector<8x128xf32>
    %66 = arith.mulf %61, %65 : vector<8x128xf32>
    %67 = tpu.concatenate %66, %47 in 1 : vector<8x128xf32>, vector<8x128xf32> -> vector<8x256xf32>
    %68 = arith.truncf %67 : vector<8x256xf32> to vector<8x256xbf16>
    %cst_19 = arith.constant dense<0.000000e+00> : vector<8x1024xf32>
    %69 = tpu.matmul %68, %7, %cst_19 {dimension_numbers = #tpu.dot_dimension_numbers<[1], [0], [0], [1], [0, 0, 1, 1], [], []>} : vector<8x256xbf16>, vector<256x1024xbf16>, vector<8x1024xf32> -> vector<8x1024xf32>
    %70 = vector.extract_strided_slice %69 {offsets = [0, 0], sizes = [8, 512], strides = [1, 1]} : vector<8x1024xf32> to vector<8x512xf32>
    %71 = arith.addf %70, %8 : vector<8x512xf32>
    %72 = vector.extract_strided_slice %71 {offsets = [0, 0], sizes = [8, 384], strides = [1, 1]} : vector<8x512xf32> to vector<8x384xf32>
    %73 = arith.negf %72 : vector<8x384xf32>
    %74 = math.exp %73 : vector<8x384xf32>
    %cst_20 = arith.constant 1.000000e+00 : f32
    %75 = vector.broadcast %cst_20 : f32 to vector<8x384xf32>
    %76 = arith.addf %75, %74 : vector<8x384xf32>
    %77 = arith.divf %75, %76 : vector<8x384xf32>
    %78 = vector.extract_strided_slice %71 {offsets = [0, 384], sizes = [8, 128], strides = [1, 1]} : vector<8x512xf32> to vector<8x128xf32>
    %79 = math.tanh %78 : vector<8x128xf32>
    %80 = vector.extract_strided_slice %77 {offsets = [0, 0], sizes = [8, 128], strides = [1, 1]} : vector<8x384xf32> to vector<8x128xf32>
    %81 = vector.extract_strided_slice %77 {offsets = [0, 128], sizes = [8, 128], strides = [1, 1]} : vector<8x384xf32> to vector<8x128xf32>
    %82 = vector.extract_strided_slice %77 {offsets = [0, 256], sizes = [8, 128], strides = [1, 1]} : vector<8x384xf32> to vector<8x128xf32>
    %83 = arith.mulf %81, %45 : vector<8x128xf32>
    %84 = arith.mulf %80, %79 : vector<8x128xf32>
    %85 = arith.addf %83, %84 : vector<8x128xf32>
    %86 = math.tanh %85 : vector<8x128xf32>
    %87 = arith.mulf %82, %86 : vector<8x128xf32>
    %c16 = arith.constant 16 : index
    %c0_21 = arith.constant 0 : index
    %88 = vector.load %arg8[%c16, %c0_21] : memref<64x512xf32, #tpu.memory_space<vmem>>, vector<8x512xf32>
    %89 = vector.extract_strided_slice %69 {offsets = [0, 512], sizes = [8, 512], strides = [1, 1]} : vector<8x1024xf32> to vector<8x512xf32>
    %90 = arith.addf %88, %89 : vector<8x512xf32>
    %91 = vector.extract_strided_slice %90 {offsets = [0, 0], sizes = [8, 384], strides = [1, 1]} : vector<8x512xf32> to vector<8x384xf32>
    %92 = arith.negf %91 : vector<8x384xf32>
    %93 = math.exp %92 : vector<8x384xf32>
    %cst_22 = arith.constant 1.000000e+00 : f32
    %94 = vector.broadcast %cst_22 : f32 to vector<8x384xf32>
    %95 = arith.addf %94, %93 : vector<8x384xf32>
    %96 = arith.divf %94, %95 : vector<8x384xf32>
    %97 = vector.extract_strided_slice %90 {offsets = [0, 384], sizes = [8, 128], strides = [1, 1]} : vector<8x512xf32> to vector<8x128xf32>
    %98 = math.tanh %97 : vector<8x128xf32>
    %99 = vector.extract_strided_slice %96 {offsets = [0, 0], sizes = [8, 128], strides = [1, 1]} : vector<8x384xf32> to vector<8x128xf32>
    %100 = vector.extract_strided_slice %96 {offsets = [0, 128], sizes = [8, 128], strides = [1, 1]} : vector<8x384xf32> to vector<8x128xf32>
    %101 = vector.extract_strided_slice %96 {offsets = [0, 256], sizes = [8, 128], strides = [1, 1]} : vector<8x384xf32> to vector<8x128xf32>
    %102 = arith.mulf %100, %64 : vector<8x128xf32>
    %103 = arith.mulf %99, %98 : vector<8x128xf32>
    %104 = arith.addf %102, %103 : vector<8x128xf32>
    %105 = math.tanh %104 : vector<8x128xf32>
    %106 = arith.mulf %101, %105 : vector<8x128xf32>
    %107 = tpu.concatenate %106, %87 in 1 : vector<8x128xf32>, vector<8x128xf32> -> vector<8x256xf32>
    %108 = arith.truncf %107 : vector<8x256xf32> to vector<8x256xbf16>
    %cst_23 = arith.constant dense<0.000000e+00> : vector<8x1024xf32>
    %109 = tpu.matmul %108, %7, %cst_23 {dimension_numbers = #tpu.dot_dimension_numbers<[1], [0], [0], [1], [0, 0, 1, 1], [], []>} : vector<8x256xbf16>, vector<256x1024xbf16>, vector<8x1024xf32> -> vector<8x1024xf32>
    %110 = vector.extract_strided_slice %109 {offsets = [0, 0], sizes = [8, 512], strides = [1, 1]} : vector<8x1024xf32> to vector<8x512xf32>
    %111 = arith.addf %110, %8 : vector<8x512xf32>
    %112 = vector.extract_strided_slice %111 {offsets = [0, 0], sizes = [8, 384], strides = [1, 1]} : vector<8x512xf32> to vector<8x384xf32>
    %113 = arith.negf %112 : vector<8x384xf32>
    %114 = math.exp %113 : vector<8x384xf32>
    %cst_24 = arith.constant 1.000000e+00 : f32
    %115 = vector.broadcast %cst_24 : f32 to vector<8x384xf32>
    %116 = arith.addf %115, %114 : vector<8x384xf32>
    %117 = arith.divf %115, %116 : vector<8x384xf32>
    %118 = vector.extract_strided_slice %111 {offsets = [0, 384], sizes = [8, 128], strides = [1, 1]} : vector<8x512xf32> to vector<8x128xf32>
    %119 = math.tanh %118 : vector<8x128xf32>
    %120 = vector.extract_strided_slice %117 {offsets = [0, 0], sizes = [8, 128], strides = [1, 1]} : vector<8x384xf32> to vector<8x128xf32>
    %121 = vector.extract_strided_slice %117 {offsets = [0, 128], sizes = [8, 128], strides = [1, 1]} : vector<8x384xf32> to vector<8x128xf32>
    %122 = vector.extract_strided_slice %117 {offsets = [0, 256], sizes = [8, 128], strides = [1, 1]} : vector<8x384xf32> to vector<8x128xf32>
    %123 = arith.mulf %121, %85 : vector<8x128xf32>
    %124 = arith.mulf %120, %119 : vector<8x128xf32>
    %125 = arith.addf %123, %124 : vector<8x128xf32>
    %126 = math.tanh %125 : vector<8x128xf32>
    %127 = arith.mulf %122, %126 : vector<8x128xf32>
    %c24 = arith.constant 24 : index
    %c0_25 = arith.constant 0 : index
    %128 = vector.load %arg8[%c24, %c0_25] : memref<64x512xf32, #tpu.memory_space<vmem>>, vector<8x512xf32>
    %129 = vector.extract_strided_slice %109 {offsets = [0, 512], sizes = [8, 512], strides = [1, 1]} : vector<8x1024xf32> to vector<8x512xf32>
    %130 = arith.addf %128, %129 : vector<8x512xf32>
    %131 = vector.extract_strided_slice %130 {offsets = [0, 0], sizes = [8, 384], strides = [1, 1]} : vector<8x512xf32> to vector<8x384xf32>
    %132 = arith.negf %131 : vector<8x384xf32>
    %133 = math.exp %132 : vector<8x384xf32>
    %cst_26 = arith.constant 1.000000e+00 : f32
    %134 = vector.broadcast %cst_26 : f32 to vector<8x384xf32>
    %135 = arith.addf %134, %133 : vector<8x384xf32>
    %136 = arith.divf %134, %135 : vector<8x384xf32>
    %137 = vector.extract_strided_slice %130 {offsets = [0, 384], sizes = [8, 128], strides = [1, 1]} : vector<8x512xf32> to vector<8x128xf32>
    %138 = math.tanh %137 : vector<8x128xf32>
    %139 = vector.extract_strided_slice %136 {offsets = [0, 0], sizes = [8, 128], strides = [1, 1]} : vector<8x384xf32> to vector<8x128xf32>
    %140 = vector.extract_strided_slice %136 {offsets = [0, 128], sizes = [8, 128], strides = [1, 1]} : vector<8x384xf32> to vector<8x128xf32>
    %141 = vector.extract_strided_slice %136 {offsets = [0, 256], sizes = [8, 128], strides = [1, 1]} : vector<8x384xf32> to vector<8x128xf32>
    %142 = arith.mulf %140, %104 : vector<8x128xf32>
    %143 = arith.mulf %139, %138 : vector<8x128xf32>
    %144 = arith.addf %142, %143 : vector<8x128xf32>
    %145 = math.tanh %144 : vector<8x128xf32>
    %146 = arith.mulf %141, %145 : vector<8x128xf32>
    %147 = tpu.concatenate %146, %127 in 1 : vector<8x128xf32>, vector<8x128xf32> -> vector<8x256xf32>
    %148 = arith.truncf %147 : vector<8x256xf32> to vector<8x256xbf16>
    %cst_27 = arith.constant dense<0.000000e+00> : vector<8x1024xf32>
    %149 = tpu.matmul %148, %7, %cst_27 {dimension_numbers = #tpu.dot_dimension_numbers<[1], [0], [0], [1], [0, 0, 1, 1], [], []>} : vector<8x256xbf16>, vector<256x1024xbf16>, vector<8x1024xf32> -> vector<8x1024xf32>
    %150 = vector.extract_strided_slice %149 {offsets = [0, 0], sizes = [8, 512], strides = [1, 1]} : vector<8x1024xf32> to vector<8x512xf32>
    %151 = arith.addf %150, %8 : vector<8x512xf32>
    %152 = vector.extract_strided_slice %151 {offsets = [0, 0], sizes = [8, 384], strides = [1, 1]} : vector<8x512xf32> to vector<8x384xf32>
    %153 = arith.negf %152 : vector<8x384xf32>
    %154 = math.exp %153 : vector<8x384xf32>
    %cst_28 = arith.constant 1.000000e+00 : f32
    %155 = vector.broadcast %cst_28 : f32 to vector<8x384xf32>
    %156 = arith.addf %155, %154 : vector<8x384xf32>
    %157 = arith.divf %155, %156 : vector<8x384xf32>
    %158 = vector.extract_strided_slice %151 {offsets = [0, 384], sizes = [8, 128], strides = [1, 1]} : vector<8x512xf32> to vector<8x128xf32>
    %159 = math.tanh %158 : vector<8x128xf32>
    %160 = vector.extract_strided_slice %157 {offsets = [0, 0], sizes = [8, 128], strides = [1, 1]} : vector<8x384xf32> to vector<8x128xf32>
    %161 = vector.extract_strided_slice %157 {offsets = [0, 128], sizes = [8, 128], strides = [1, 1]} : vector<8x384xf32> to vector<8x128xf32>
    %162 = vector.extract_strided_slice %157 {offsets = [0, 256], sizes = [8, 128], strides = [1, 1]} : vector<8x384xf32> to vector<8x128xf32>
    %163 = arith.mulf %161, %125 : vector<8x128xf32>
    %164 = arith.mulf %160, %159 : vector<8x128xf32>
    %165 = arith.addf %163, %164 : vector<8x128xf32>
    %166 = math.tanh %165 : vector<8x128xf32>
    %167 = arith.mulf %162, %166 : vector<8x128xf32>
    %c32 = arith.constant 32 : index
    %c0_29 = arith.constant 0 : index
    %168 = vector.load %arg8[%c32, %c0_29] : memref<64x512xf32, #tpu.memory_space<vmem>>, vector<8x512xf32>
    %169 = vector.extract_strided_slice %149 {offsets = [0, 512], sizes = [8, 512], strides = [1, 1]} : vector<8x1024xf32> to vector<8x512xf32>
    %170 = arith.addf %168, %169 : vector<8x512xf32>
    %171 = vector.extract_strided_slice %170 {offsets = [0, 0], sizes = [8, 384], strides = [1, 1]} : vector<8x512xf32> to vector<8x384xf32>
    %172 = arith.negf %171 : vector<8x384xf32>
    %173 = math.exp %172 : vector<8x384xf32>
    %cst_30 = arith.constant 1.000000e+00 : f32
    %174 = vector.broadcast %cst_30 : f32 to vector<8x384xf32>
    %175 = arith.addf %174, %173 : vector<8x384xf32>
    %176 = arith.divf %174, %175 : vector<8x384xf32>
    %177 = vector.extract_strided_slice %170 {offsets = [0, 384], sizes = [8, 128], strides = [1, 1]} : vector<8x512xf32> to vector<8x128xf32>
    %178 = math.tanh %177 : vector<8x128xf32>
    %179 = vector.extract_strided_slice %176 {offsets = [0, 0], sizes = [8, 128], strides = [1, 1]} : vector<8x384xf32> to vector<8x128xf32>
    %180 = vector.extract_strided_slice %176 {offsets = [0, 128], sizes = [8, 128], strides = [1, 1]} : vector<8x384xf32> to vector<8x128xf32>
    %181 = vector.extract_strided_slice %176 {offsets = [0, 256], sizes = [8, 128], strides = [1, 1]} : vector<8x384xf32> to vector<8x128xf32>
    %182 = arith.mulf %180, %144 : vector<8x128xf32>
    %183 = arith.mulf %179, %178 : vector<8x128xf32>
    %184 = arith.addf %182, %183 : vector<8x128xf32>
    %185 = math.tanh %184 : vector<8x128xf32>
    %186 = arith.mulf %181, %185 : vector<8x128xf32>
    %187 = tpu.concatenate %186, %167 in 1 : vector<8x128xf32>, vector<8x128xf32> -> vector<8x256xf32>
    %188 = arith.truncf %187 : vector<8x256xf32> to vector<8x256xbf16>
    %cst_31 = arith.constant dense<0.000000e+00> : vector<8x1024xf32>
    %189 = tpu.matmul %188, %7, %cst_31 {dimension_numbers = #tpu.dot_dimension_numbers<[1], [0], [0], [1], [0, 0, 1, 1], [], []>} : vector<8x256xbf16>, vector<256x1024xbf16>, vector<8x1024xf32> -> vector<8x1024xf32>
    %190 = vector.extract_strided_slice %189 {offsets = [0, 0], sizes = [8, 512], strides = [1, 1]} : vector<8x1024xf32> to vector<8x512xf32>
    %191 = arith.addf %190, %8 : vector<8x512xf32>
    %192 = vector.extract_strided_slice %191 {offsets = [0, 0], sizes = [8, 384], strides = [1, 1]} : vector<8x512xf32> to vector<8x384xf32>
    %193 = arith.negf %192 : vector<8x384xf32>
    %194 = math.exp %193 : vector<8x384xf32>
    %cst_32 = arith.constant 1.000000e+00 : f32
    %195 = vector.broadcast %cst_32 : f32 to vector<8x384xf32>
    %196 = arith.addf %195, %194 : vector<8x384xf32>
    %197 = arith.divf %195, %196 : vector<8x384xf32>
    %198 = vector.extract_strided_slice %191 {offsets = [0, 384], sizes = [8, 128], strides = [1, 1]} : vector<8x512xf32> to vector<8x128xf32>
    %199 = math.tanh %198 : vector<8x128xf32>
    %200 = vector.extract_strided_slice %197 {offsets = [0, 0], sizes = [8, 128], strides = [1, 1]} : vector<8x384xf32> to vector<8x128xf32>
    %201 = vector.extract_strided_slice %197 {offsets = [0, 128], sizes = [8, 128], strides = [1, 1]} : vector<8x384xf32> to vector<8x128xf32>
    %202 = vector.extract_strided_slice %197 {offsets = [0, 256], sizes = [8, 128], strides = [1, 1]} : vector<8x384xf32> to vector<8x128xf32>
    %203 = arith.mulf %201, %165 : vector<8x128xf32>
    %204 = arith.mulf %200, %199 : vector<8x128xf32>
    %205 = arith.addf %203, %204 : vector<8x128xf32>
    %206 = math.tanh %205 : vector<8x128xf32>
    %207 = arith.mulf %202, %206 : vector<8x128xf32>
    %c40 = arith.constant 40 : index
    %c0_33 = arith.constant 0 : index
    %208 = vector.load %arg8[%c40, %c0_33] : memref<64x512xf32, #tpu.memory_space<vmem>>, vector<8x512xf32>
    %209 = vector.extract_strided_slice %189 {offsets = [0, 512], sizes = [8, 512], strides = [1, 1]} : vector<8x1024xf32> to vector<8x512xf32>
    %210 = arith.addf %208, %209 : vector<8x512xf32>
    %211 = vector.extract_strided_slice %210 {offsets = [0, 0], sizes = [8, 384], strides = [1, 1]} : vector<8x512xf32> to vector<8x384xf32>
    %212 = arith.negf %211 : vector<8x384xf32>
    %213 = math.exp %212 : vector<8x384xf32>
    %cst_34 = arith.constant 1.000000e+00 : f32
    %214 = vector.broadcast %cst_34 : f32 to vector<8x384xf32>
    %215 = arith.addf %214, %213 : vector<8x384xf32>
    %216 = arith.divf %214, %215 : vector<8x384xf32>
    %217 = vector.extract_strided_slice %210 {offsets = [0, 384], sizes = [8, 128], strides = [1, 1]} : vector<8x512xf32> to vector<8x128xf32>
    %218 = math.tanh %217 : vector<8x128xf32>
    %219 = vector.extract_strided_slice %216 {offsets = [0, 0], sizes = [8, 128], strides = [1, 1]} : vector<8x384xf32> to vector<8x128xf32>
    %220 = vector.extract_strided_slice %216 {offsets = [0, 128], sizes = [8, 128], strides = [1, 1]} : vector<8x384xf32> to vector<8x128xf32>
    %221 = vector.extract_strided_slice %216 {offsets = [0, 256], sizes = [8, 128], strides = [1, 1]} : vector<8x384xf32> to vector<8x128xf32>
    %222 = arith.mulf %220, %184 : vector<8x128xf32>
    %223 = arith.mulf %219, %218 : vector<8x128xf32>
    %224 = arith.addf %222, %223 : vector<8x128xf32>
    %225 = math.tanh %224 : vector<8x128xf32>
    %226 = arith.mulf %221, %225 : vector<8x128xf32>
    %227 = tpu.concatenate %226, %207 in 1 : vector<8x128xf32>, vector<8x128xf32> -> vector<8x256xf32>
    %228 = arith.truncf %227 : vector<8x256xf32> to vector<8x256xbf16>
    %cst_35 = arith.constant dense<0.000000e+00> : vector<8x1024xf32>
    %229 = tpu.matmul %228, %7, %cst_35 {dimension_numbers = #tpu.dot_dimension_numbers<[1], [0], [0], [1], [0, 0, 1, 1], [], []>} : vector<8x256xbf16>, vector<256x1024xbf16>, vector<8x1024xf32> -> vector<8x1024xf32>
    %230 = vector.extract_strided_slice %229 {offsets = [0, 0], sizes = [8, 512], strides = [1, 1]} : vector<8x1024xf32> to vector<8x512xf32>
    %231 = arith.addf %230, %8 : vector<8x512xf32>
    %232 = vector.extract_strided_slice %231 {offsets = [0, 0], sizes = [8, 384], strides = [1, 1]} : vector<8x512xf32> to vector<8x384xf32>
    %233 = arith.negf %232 : vector<8x384xf32>
    %234 = math.exp %233 : vector<8x384xf32>
    %cst_36 = arith.constant 1.000000e+00 : f32
    %235 = vector.broadcast %cst_36 : f32 to vector<8x384xf32>
    %236 = arith.addf %235, %234 : vector<8x384xf32>
    %237 = arith.divf %235, %236 : vector<8x384xf32>
    %238 = vector.extract_strided_slice %231 {offsets = [0, 384], sizes = [8, 128], strides = [1, 1]} : vector<8x512xf32> to vector<8x128xf32>
    %239 = math.tanh %238 : vector<8x128xf32>
    %240 = vector.extract_strided_slice %237 {offsets = [0, 0], sizes = [8, 128], strides = [1, 1]} : vector<8x384xf32> to vector<8x128xf32>
    %241 = vector.extract_strided_slice %237 {offsets = [0, 128], sizes = [8, 128], strides = [1, 1]} : vector<8x384xf32> to vector<8x128xf32>
    %242 = vector.extract_strided_slice %237 {offsets = [0, 256], sizes = [8, 128], strides = [1, 1]} : vector<8x384xf32> to vector<8x128xf32>
    %243 = arith.mulf %241, %205 : vector<8x128xf32>
    %244 = arith.mulf %240, %239 : vector<8x128xf32>
    %245 = arith.addf %243, %244 : vector<8x128xf32>
    %246 = math.tanh %245 : vector<8x128xf32>
    %247 = arith.mulf %242, %246 : vector<8x128xf32>
    %c48 = arith.constant 48 : index
    %c0_37 = arith.constant 0 : index
    %248 = vector.load %arg8[%c48, %c0_37] : memref<64x512xf32, #tpu.memory_space<vmem>>, vector<8x512xf32>
    %249 = vector.extract_strided_slice %229 {offsets = [0, 512], sizes = [8, 512], strides = [1, 1]} : vector<8x1024xf32> to vector<8x512xf32>
    %250 = arith.addf %248, %249 : vector<8x512xf32>
    %251 = vector.extract_strided_slice %250 {offsets = [0, 0], sizes = [8, 384], strides = [1, 1]} : vector<8x512xf32> to vector<8x384xf32>
    %252 = arith.negf %251 : vector<8x384xf32>
    %253 = math.exp %252 : vector<8x384xf32>
    %cst_38 = arith.constant 1.000000e+00 : f32
    %254 = vector.broadcast %cst_38 : f32 to vector<8x384xf32>
    %255 = arith.addf %254, %253 : vector<8x384xf32>
    %256 = arith.divf %254, %255 : vector<8x384xf32>
    %257 = vector.extract_strided_slice %250 {offsets = [0, 384], sizes = [8, 128], strides = [1, 1]} : vector<8x512xf32> to vector<8x128xf32>
    %258 = math.tanh %257 : vector<8x128xf32>
    %259 = vector.extract_strided_slice %256 {offsets = [0, 0], sizes = [8, 128], strides = [1, 1]} : vector<8x384xf32> to vector<8x128xf32>
    %260 = vector.extract_strided_slice %256 {offsets = [0, 128], sizes = [8, 128], strides = [1, 1]} : vector<8x384xf32> to vector<8x128xf32>
    %261 = vector.extract_strided_slice %256 {offsets = [0, 256], sizes = [8, 128], strides = [1, 1]} : vector<8x384xf32> to vector<8x128xf32>
    %262 = arith.mulf %260, %224 : vector<8x128xf32>
    %263 = arith.mulf %259, %258 : vector<8x128xf32>
    %264 = arith.addf %262, %263 : vector<8x128xf32>
    %265 = math.tanh %264 : vector<8x128xf32>
    %266 = arith.mulf %261, %265 : vector<8x128xf32>
    %267 = tpu.concatenate %266, %247 in 1 : vector<8x128xf32>, vector<8x128xf32> -> vector<8x256xf32>
    %268 = arith.truncf %267 : vector<8x256xf32> to vector<8x256xbf16>
    %cst_39 = arith.constant dense<0.000000e+00> : vector<8x1024xf32>
    %269 = tpu.matmul %268, %7, %cst_39 {dimension_numbers = #tpu.dot_dimension_numbers<[1], [0], [0], [1], [0, 0, 1, 1], [], []>} : vector<8x256xbf16>, vector<256x1024xbf16>, vector<8x1024xf32> -> vector<8x1024xf32>
    %270 = vector.extract_strided_slice %269 {offsets = [0, 0], sizes = [8, 512], strides = [1, 1]} : vector<8x1024xf32> to vector<8x512xf32>
    %271 = arith.addf %270, %8 : vector<8x512xf32>
    %272 = vector.extract_strided_slice %271 {offsets = [0, 0], sizes = [8, 384], strides = [1, 1]} : vector<8x512xf32> to vector<8x384xf32>
    %273 = arith.negf %272 : vector<8x384xf32>
    %274 = math.exp %273 : vector<8x384xf32>
    %cst_40 = arith.constant 1.000000e+00 : f32
    %275 = vector.broadcast %cst_40 : f32 to vector<8x384xf32>
    %276 = arith.addf %275, %274 : vector<8x384xf32>
    %277 = arith.divf %275, %276 : vector<8x384xf32>
    %278 = vector.extract_strided_slice %271 {offsets = [0, 384], sizes = [8, 128], strides = [1, 1]} : vector<8x512xf32> to vector<8x128xf32>
    %279 = math.tanh %278 : vector<8x128xf32>
    %280 = vector.extract_strided_slice %277 {offsets = [0, 0], sizes = [8, 128], strides = [1, 1]} : vector<8x384xf32> to vector<8x128xf32>
    %281 = vector.extract_strided_slice %277 {offsets = [0, 128], sizes = [8, 128], strides = [1, 1]} : vector<8x384xf32> to vector<8x128xf32>
    %282 = vector.extract_strided_slice %277 {offsets = [0, 256], sizes = [8, 128], strides = [1, 1]} : vector<8x384xf32> to vector<8x128xf32>
    %283 = arith.mulf %281, %245 : vector<8x128xf32>
    %284 = arith.mulf %280, %279 : vector<8x128xf32>
    %285 = arith.addf %283, %284 : vector<8x128xf32>
    %286 = math.tanh %285 : vector<8x128xf32>
    %287 = arith.mulf %282, %286 : vector<8x128xf32>
    %c56 = arith.constant 56 : index
    %c0_41 = arith.constant 0 : index
    %288 = vector.load %arg8[%c56, %c0_41] : memref<64x512xf32, #tpu.memory_space<vmem>>, vector<8x512xf32>
    %289 = vector.extract_strided_slice %269 {offsets = [0, 512], sizes = [8, 512], strides = [1, 1]} : vector<8x1024xf32> to vector<8x512xf32>
    %290 = arith.addf %288, %289 : vector<8x512xf32>
    %291 = vector.extract_strided_slice %290 {offsets = [0, 0], sizes = [8, 384], strides = [1, 1]} : vector<8x512xf32> to vector<8x384xf32>
    %292 = arith.negf %291 : vector<8x384xf32>
    %293 = math.exp %292 : vector<8x384xf32>
    %cst_42 = arith.constant 1.000000e+00 : f32
    %294 = vector.broadcast %cst_42 : f32 to vector<8x384xf32>
    %295 = arith.addf %294, %293 : vector<8x384xf32>
    %296 = arith.divf %294, %295 : vector<8x384xf32>
    %297 = vector.extract_strided_slice %290 {offsets = [0, 384], sizes = [8, 128], strides = [1, 1]} : vector<8x512xf32> to vector<8x128xf32>
    %298 = math.tanh %297 : vector<8x128xf32>
    %299 = vector.extract_strided_slice %296 {offsets = [0, 0], sizes = [8, 128], strides = [1, 1]} : vector<8x384xf32> to vector<8x128xf32>
    %300 = vector.extract_strided_slice %296 {offsets = [0, 128], sizes = [8, 128], strides = [1, 1]} : vector<8x384xf32> to vector<8x128xf32>
    %301 = vector.extract_strided_slice %296 {offsets = [0, 256], sizes = [8, 128], strides = [1, 1]} : vector<8x384xf32> to vector<8x128xf32>
    %302 = arith.mulf %300, %264 : vector<8x128xf32>
    %303 = arith.mulf %299, %298 : vector<8x128xf32>
    %304 = arith.addf %302, %303 : vector<8x128xf32>
    %305 = math.tanh %304 : vector<8x128xf32>
    %306 = arith.mulf %301, %305 : vector<8x128xf32>
    %307 = tpu.concatenate %306, %287 in 1 : vector<8x128xf32>, vector<8x128xf32> -> vector<8x256xf32>
    %308 = arith.truncf %307 : vector<8x256xf32> to vector<8x256xbf16>
    %cst_43 = arith.constant dense<0.000000e+00> : vector<8x1024xf32>
    %309 = tpu.matmul %308, %7, %cst_43 {dimension_numbers = #tpu.dot_dimension_numbers<[1], [0], [0], [1], [0, 0, 1, 1], [], []>} : vector<8x256xbf16>, vector<256x1024xbf16>, vector<8x1024xf32> -> vector<8x1024xf32>
    %310 = vector.extract_strided_slice %309 {offsets = [0, 0], sizes = [8, 512], strides = [1, 1]} : vector<8x1024xf32> to vector<8x512xf32>
    %311 = arith.addf %310, %8 : vector<8x512xf32>
    %312 = vector.extract_strided_slice %311 {offsets = [0, 0], sizes = [8, 384], strides = [1, 1]} : vector<8x512xf32> to vector<8x384xf32>
    %313 = arith.negf %312 : vector<8x384xf32>
    %314 = math.exp %313 : vector<8x384xf32>
    %cst_44 = arith.constant 1.000000e+00 : f32
    %315 = vector.broadcast %cst_44 : f32 to vector<8x384xf32>
    %316 = arith.addf %315, %314 : vector<8x384xf32>
    %317 = arith.divf %315, %316 : vector<8x384xf32>
    %318 = vector.extract_strided_slice %311 {offsets = [0, 384], sizes = [8, 128], strides = [1, 1]} : vector<8x512xf32> to vector<8x128xf32>
    %319 = math.tanh %318 : vector<8x128xf32>
    %320 = vector.extract_strided_slice %317 {offsets = [0, 0], sizes = [8, 128], strides = [1, 1]} : vector<8x384xf32> to vector<8x128xf32>
    %321 = vector.extract_strided_slice %317 {offsets = [0, 128], sizes = [8, 128], strides = [1, 1]} : vector<8x384xf32> to vector<8x128xf32>
    %322 = vector.extract_strided_slice %317 {offsets = [0, 256], sizes = [8, 128], strides = [1, 1]} : vector<8x384xf32> to vector<8x128xf32>
    %323 = arith.mulf %321, %285 : vector<8x128xf32>
    %324 = arith.mulf %320, %319 : vector<8x128xf32>
    %325 = arith.addf %323, %324 : vector<8x128xf32>
    %326 = math.tanh %325 : vector<8x128xf32>
    %327 = arith.mulf %322, %326 : vector<8x128xf32>
    %328 = arith.truncf %327 : vector<8x128xf32> to vector<8x128xbf16>
    %c0_45 = arith.constant 0 : index
    %c0_46 = arith.constant 0 : index
    %329 = vector.load %arg5[%c0_45, %c0_46] : memref<128x128xbf16, #tpu.memory_space<vmem>>, vector<128x128xbf16>
    %cst_47 = arith.constant dense<0.000000e+00> : vector<8x128xf32>
    %330 = tpu.matmul %328, %329, %cst_47 {dimension_numbers = #tpu.dot_dimension_numbers<[1], [0], [0], [1], [0, 0, 1, 1], [], []>} : vector<8x128xbf16>, vector<128x128xbf16>, vector<8x128xf32> -> vector<8x128xf32>
    %c0_48 = arith.constant 0 : index
    %c0_49 = arith.constant 0 : index
    %331 = vector.load %arg6[%c0_48, %c0_49] : memref<1x128xf32, #tpu.memory_space<vmem>>, vector<1x128xf32>
    %332 = vector.broadcast %331 : vector<1x128xf32> to vector<8x128xf32>
    %333 = arith.addf %330, %332 : vector<8x128xf32>
    %c0_50 = arith.constant 0 : index
    %c0_51 = arith.constant 0 : index
    %334 = vector.load %arg7[%c0_50, %c0_51] : memref<8x128xf32, #tpu.memory_space<vmem>>, vector<8x128xf32>
    tpu.vector_store %arg7[%c0_50, %c0_51], %333 {strides = array<i32>} : memref<8x128xf32, #tpu.memory_space<vmem>>, vector<8x128xf32>,
    return
  }
}

</mosaic_0001>

<llo_original>
// kernel: tpu_custom_call.1
$region0: #{tpu_custom_call.1}
  #allocation0 [shape = 'u32[]', space=smem, size = 0x4, offset = 0x4, fixed_abs, tag = 'smem constant byte address 0x4 - core index']
  #allocation1 [shape = 'u32[144,128]{1,0:T(1,128)}', space=vmem, size = 0x12000, scoped, tag = 'internal scratch']
  #allocation2 [shape = 'f32[64,512]{1,0:T(8,128)}', space=vmem, size = 0x20000, scoped, tag = 'scratch operand']
  %s0 = inlined_call_operand.hbm [shape: f32[64,256], index: 0, kind: input, shape index: {}]
  %s1 = inlined_call_operand.hbm [shape: f32[256,512], index: 1, kind: input, shape index: {}]
  %s2 = inlined_call_operand.vmem [shape: f32[1,512], index: 2, kind: input, shape index: {}]
  %s3 = inlined_call_operand.hbm [shape: bf16[256,1024], index: 3, kind: input, shape index: {}]
  %s4 = inlined_call_operand.hbm [shape: f32[8,512], index: 4, kind: input, shape index: {}]
  %s5 = inlined_call_operand.hbm [shape: bf16[128,128], index: 5, kind: input, shape index: {}]
  %s6 = inlined_call_operand.vmem [shape: f32[1,128], index: 6, kind: input, shape index: {}]
  %s7 = inlined_call_operand.hbm [shape: f32[8,128], index: 7, kind: output, shape index: {}]
  %s8 = sld [smem:[#allocation0]]
  $region58: #{tpu_custom_call.1} parent=0
    _
  %s10 = ssub.s32 1, %s8
  %s11 = scalar_select 0, %s10, %s8
  $region1: #{tpu_custom_call.1} parent=0
    #allocation3 [shape = 'u8[65536]{0}', space=vmem, size = 0x10000, scoped, tag = 'input window, operand 0, single buffered']
    #allocation4 [shape = 's32[1]{0}', space=sflag, size = 0x4, scoped, tag = 'scoped memory for tpu_custom_call.1']
    #allocation5 [shape = 's32[1]{0}', space=sflag, size = 0x4, scoped, tag = 'scoped memory for tpu_custom_call.1']
    #allocation6 [shape = 'u8[524288]{0}', space=vmem, size = 0x80000, scoped, tag = 'input window, operand 1, single buffered']
    #allocation7 [shape = 's32[1]{0}', space=sflag, size = 0x4, scoped, tag = 'scoped memory for tpu_custom_call.1']
    #allocation8 [shape = 'u8[524288]{0}', space=vmem, size = 0x80000, scoped, tag = 'input window, operand 3, single buffered']
    #allocation9 [shape = 'u8[16384]{0}', space=vmem, size = 0x4000, scoped, tag = 'input window, operand 4, single buffered']
    #allocation10 [shape = 's32[1]{0}', space=sflag, size = 0x4, scoped, tag = 'scoped memory for tpu_custom_call.1']
    #allocation11 [shape = 'u8[32768]{0}', space=vmem, size = 0x8000, scoped, tag = 'input window, operand 5, single buffered']
    #allocation12 [shape = 'u8[4096]{0}', space=vmem, size = 0x1000, scoped, tag = 'output window, operand 0, single buffered']
    %12 = vsyncpa [#allocation4], 0
    %13 = vsyncpa [#allocation7], 0
    %14 = vsyncpa [#allocation10], 0
    %15 = vsyncpa [#allocation5], 0
    // Predicated region
    $region2: #{tpu_custom_call.1} parent=1 // pred_check
      _
    $region3: #{tpu_custom_call.1} parent=1 // pred_check_branch
      %17 = sbr.rel (0) target = $region5
    $region4: #{tpu_custom_call.1} parent=1 // pred_region
      %s19 = ssub.s32 2048, 2048
      %20 = vsyncadd [#allocation4], %s19
      %s21 = sshll.u32 [#allocation3], 4
      %s22 = int_to_ptr.vmem [resolvable:$true] %s21
      %27 = dma.hbm_to_vmem [thread:$0]  %s0, 2048, %s22, [#allocation4], 256, 256, 16
    $region5: #{tpu_custom_call.1} parent=1 // pred_fallthru
      _
    // Predicated region
    $region6: #{tpu_custom_call.1} parent=1 // pred_check
      _
    $region7: #{tpu_custom_call.1} parent=1 // pred_check_branch
      %29 = sbr.rel (0) target = $region9
    $region8: #{tpu_custom_call.1} parent=1 // pred_region
      %s31 = ssub.s32 16384, 16384
      %32 = vsyncadd [#allocation7], %s31
      %s33 = sshll.u32 [#allocation6], 4
      %s34 = int_to_ptr.vmem [resolvable:$true] %s33
      %39 = dma.hbm_to_vmem [thread:$0]  %s1, 16384, %s34, [#allocation7], 512, 512, 32
    $region9: #{tpu_custom_call.1} parent=1 // pred_fallthru
      _
    // Predicated region
    $region10: #{tpu_custom_call.1} parent=1 // pred_check
      _
    $region11: #{tpu_custom_call.1} parent=1 // pred_check_branch
      %41 = sbr.rel (0) target = $region13
    $region12: #{tpu_custom_call.1} parent=1 // pred_region
      _
    $region13: #{tpu_custom_call.1} parent=1 // pred_fallthru
      _
    // Predicated region
    $region14: #{tpu_custom_call.1} parent=1 // pred_check
      _
    $region15: #{tpu_custom_call.1} parent=1 // pred_check_branch
      %43 = sbr.rel (0) target = $region17
    $region16: #{tpu_custom_call.1} parent=1 // pred_region
      %s45 = ssub.s32 16384, 16384
      %46 = vsyncadd [#allocation7], %s45
      %s47 = sshll.u32 [#allocation8], 4
      %s48 = int_to_ptr.vmem [resolvable:$true] %s47
      %53 = dma.hbm_to_vmem [thread:$0]  %s3, 16384, %s48, [#allocation7], 512, 512, 32
    $region17: #{tpu_custom_call.1} parent=1 // pred_fallthru
      _
    // Predicated region
    $region18: #{tpu_custom_call.1} parent=1 // pred_check
      _
    $region19: #{tpu_custom_call.1} parent=1 // pred_check_branch
      %55 = sbr.rel (0) target = $region21
    $region20: #{tpu_custom_call.1} parent=1 // pred_region
      %s57 = ssub.s32 512, 512
      %58 = vsyncadd [#allocation10], %s57
      %s60 = sshll.u32 [#allocation9], 4
      %s61 = int_to_ptr.vmem [resolvable:$true] %s60
      %63 = dma.hbm_to_vmem [thread:$0]  %s4, 512, %s61, [#allocation10]
    $region21: #{tpu_custom_call.1} parent=1 // pred_fallthru
      _
    // Predicated region
    $region22: #{tpu_custom_call.1} parent=1 // pred_check
      _
    $region23: #{tpu_custom_call.1} parent=1 // pred_check_branch
      %65 = sbr.rel (0) target = $region25
    $region24: #{tpu_custom_call.1} parent=1 // pred_region
      %s67 = ssub.s32 1024, 1024
      %68 = vsyncadd [#allocation10], %s67
      %s69 = sshll.u32 [#allocation11], 4
      %s70 = int_to_ptr.vmem [resolvable:$true] %s69
      %75 = dma.hbm_to_vmem [thread:$0]  %s5, 1024, %s70, [#allocation10], 64, 64, 4
    $region25: #{tpu_custom_call.1} parent=1 // pred_fallthru
      _
    // Predicated region
    $region26: #{tpu_custom_call.1} parent=1 // pred_check
      _
    $region27: #{tpu_custom_call.1} parent=1 // pred_check_branch
      %77 = sbr.rel (0) target = $region29
    $region28: #{tpu_custom_call.1} parent=1 // pred_region
      _
    $region29: #{tpu_custom_call.1} parent=1 // pred_fallthru
      _
    // Predicated region
    $region30: #{tpu_custom_call.1} parent=1 // pred_check
      _
    $region31: #{tpu_custom_call.1} parent=1 // pred_check_branch
      %79 = sbr.rel (0) target = $region33
    $region32: #{tpu_custom_call.1} parent=1 // pred_region
      %80 = dma.done [#allocation4], 2048
    $region33: #{tpu_custom_call.1} parent=1 // pred_fallthru
      _
    // Predicated region
    $region34: #{tpu_custom_call.1} parent=1 // pred_check
      _
    $region35: #{tpu_custom_call.1} parent=1 // pred_check_branch
      %82 = sbr.rel (0) target = $region37
    $region36: #{tpu_custom_call.1} parent=1 // pred_region
      %83 = dma.done [#allocation7], 16384
    $region37: #{tpu_custom_call.1} parent=1 // pred_fallthru
      _
    // Predicated region
    $region38: #{tpu_custom_call.1} parent=1 // pred_check
      _
    $region39: #{tpu_custom_call.1} parent=1 // pred_check_branch
      %85 = sbr.rel (0) target = $region41
    $region40: #{tpu_custom_call.1} parent=1 // pred_region
      %86 = dma.done [#allocation7], 16384
    $region41: #{tpu_custom_call.1} parent=1 // pred_fallthru
      _
    // Predicated region
    $region42: #{tpu_custom_call.1} parent=1 // pred_check
      _
    $region43: #{tpu_custom_call.1} parent=1 // pred_check_branch
      %88 = sbr.rel (0) target = $region45
    $region44: #{tpu_custom_call.1} parent=1 // pred_region
      %89 = dma.done [#allocation10], 512
    $region45: #{tpu_custom_call.1} parent=1 // pred_fallthru
      _
    // Predicated region
    $region46: #{tpu_custom_call.1} parent=1 // pred_check
      _
    $region47: #{tpu_custom_call.1} parent=1 // pred_check_branch
      %91 = sbr.rel (0) target = $region49
    $region48: #{tpu_custom_call.1} parent=1 // pred_region
      %92 = dma.done [#allocation10], 1024
    $region49: #{tpu_custom_call.1} parent=1 // pred_fallthru
      _
    %v94 = vld [vmem:[#allocation3] sm:$0xff]
    %v95 = vld [vmem:[#allocation3 + $0x8] sm:$0xff]
    %v96 = vld [vmem:[#allocation3 + $0x10] sm:$0xff]
    %v97 = vld [vmem:[#allocation3 + $0x18] sm:$0xff]
    %v98 = vld [vmem:[#allocation3 + $0x20] sm:$0xff]
    %v99 = vld [vmem:[#allocation3 + $0x28] sm:$0xff]
    %v100 = vld [vmem:[#allocation3 + $0x30] sm:$0xff]
    %v101 = vld [vmem:[#allocation3 + $0x38] sm:$0xff]
    %v102 = vld [vmem:[#allocation3 + $0x40] sm:$0xff]
    %v103 = vld [vmem:[#allocation3 + $0x48] sm:$0xff]
    %v104 = vld [vmem:[#allocation3 + $0x50] sm:$0xff]
    %v105 = vld [vmem:[#allocation3 + $0x58] sm:$0xff]
    %v106 = vld [vmem:[#allocation3 + $0x60] sm:$0xff]
    %v107 = vld [vmem:[#allocation3 + $0x68] sm:$0xff]
    %v108 = vld [vmem:[#allocation3 + $0x70] sm:$0xff]
    %v109 = vld [vmem:[#allocation3 + $0x78] sm:$0xff]
    %v110 = vld [vmem:[#allocation6] sm:$0xff]
    %v111 = vld [vmem:[#allocation6 + $0x8] sm:$0xff]
    %v112 = vld [vmem:[#allocation6 + $0x10] sm:$0xff]
    %v113 = vld [vmem:[#allocation6 + $0x18] sm:$0xff]
    %v114 = vld [vmem:[#allocation6 + $0x20] sm:$0xff]
    %v115 = vld [vmem:[#allocation6 + $0x28] sm:$0xff]
    %v116 = vld [vmem:[#allocation6 + $0x30] sm:$0xff]
    %v117 = vld [vmem:[#allocation6 + $0x38] sm:$0xff]
    %v118 = vld [vmem:[#allocation6 + $0x40] sm:$0xff]
    %v119 = vld [vmem:[#allocation6 + $0x48] sm:$0xff]
    %v120 = vld [vmem:[#allocation6 + $0x50] sm:$0xff]
    %v121 = vld [vmem:[#allocation6 + $0x58] sm:$0xff]
    %v122 = vld [vmem:[#allocation6 + $0x60] sm:$0xff]
    %v123 = vld [vmem:[#allocation6 + $0x68] sm:$0xff]
    %v124 = vld [vmem:[#allocation6 + $0x70] sm:$0xff]
    %v125 = vld [vmem:[#allocation6 + $0x78] sm:$0xff]
    %v126 = vld [vmem:[#allocation6 + $0x80] sm:$0xff]
    %v127 = vld [vmem:[#allocation6 + $0x88] sm:$0xff]
    %v128 = vld [vmem:[#allocation6 + $0x90] sm:$0xff]
    %v129 = vld [vmem:[#allocation6 + $0x98] sm:$0xff]
    %v130 = vld [vmem:[#allocation6 + $0xa0] sm:$0xff]
    %v131 = vld [vmem:[#allocation6 + $0xa8] sm:$0xff]
    %v132 = vld [vmem:[#allocation6 + $0xb0] sm:$0xff]
    %v133 = vld [vmem:[#allocation6 + $0xb8] sm:$0xff]
    %v134 = vld [vmem:[#allocation6 + $0xc0] sm:$0xff]
    %v135 = vld [vmem:[#allocation6 + $0xc8] sm:$0xff]
    %v136 = vld [vmem:[#allocation6 + $0xd0] sm:$0xff]
    %v137 = vld [vmem:[#allocation6 + $0xd8] sm:$0xff]
    %v138 = vld [vmem:[#allocation6 + $0xe0] sm:$0xff]
    %v139 = vld [vmem:[#allocation6 + $0xe8] sm:$0xff]
    %v140 = vld [vmem:[#allocation6 + $0xf0] sm:$0xff]
    %v141 = vld [vmem:[#allocation6 + $0xf8] sm:$0xff]
    %v142 = vld [vmem:[#allocation6 + $0x100] sm:$0xff]
    %v143 = vld [vmem:[#allocation6 + $0x108] sm:$0xff]
    %v144 = vld [vmem:[#allocation6 + $0x110] sm:$0xff]
    %v145 = vld [vmem:[#allocation6 + $0x118] sm:$0xff]
    %v146 = vld [vmem:[#allocation6 + $0x120] sm:$0xff]
    %v147 = vld [vmem:[#allocation6 + $0x128] sm:$0xff]
    %v148 = vld [vmem:[#allocation6 + $0x130] sm:$0xff]
    %v149 = vld [vmem:[#allocation6 + $0x138] sm:$0xff]
    %v150 = vld [vmem:[#allocation6 + $0x140] sm:$0xff]
    %v151 = vld [vmem:[#allocation6 + $0x148] sm:$0xff]
    %v152 = vld [vmem:[#allocation6 + $0x150] sm:$0xff]
    %v153 = vld [vmem:[#allocation6 + $0x158] sm:$0xff]
    %v154 = vld [vmem:[#allocation6 + $0x160] sm:$0xff]
    %v155 = vld [vmem:[#allocation6 + $0x168] sm:$0xff]
    %v156 = vld [vmem:[#allocation6 + $0x170] sm:$0xff]
    %v157 = vld [vmem:[#allocation6 + $0x178] sm:$0xff]
    %v158 = vld [vmem:[#allocation6 + $0x180] sm:$0xff]
    %v159 = vld [vmem:[#allocation6 + $0x188] sm:$0xff]
    %v160 = vld [vmem:[#allocation6 + $0x190] sm:$0xff]
    %v161 = vld [vmem:[#allocation6 + $0x198] sm:$0xff]
    %v162 = vld [vmem:[#allocation6 + $0x1a0] sm:$0xff]
    %v163 = vld [vmem:[#allocation6 + $0x1a8] sm:$0xff]
    %v164 = vld [vmem:[#allocation6 + $0x1b0] sm:$0xff]
    %v165 = vld [vmem:[#allocation6 + $0x1b8] sm:$0xff]
    %v166 = vld [vmem:[#allocation6 + $0x1c0] sm:$0xff]
    %v167 = vld [vmem:[#allocation6 + $0x1c8] sm:$0xff]
    %v168 = vld [vmem:[#allocation6 + $0x1d0] sm:$0xff]
    %v169 = vld [vmem:[#allocation6 + $0x1d8] sm:$0xff]
    %v170 = vld [vmem:[#allocation6 + $0x1e0] sm:$0xff]
    %v171 = vld [vmem:[#allocation6 + $0x1e8] sm:$0xff]
    %v172 = vld [vmem:[#allocation6 + $0x1f0] sm:$0xff]
    %v173 = vld [vmem:[#allocation6 + $0x1f8] sm:$0xff]
    %v174 = vld [vmem:[#allocation6 + $0x200] sm:$0xff]
    %v175 = vld [vmem:[#allocation6 + $0x208] sm:$0xff]
    %v176 = vld [vmem:[#allocation6 + $0x210] sm:$0xff]
    %v177 = vld [vmem:[#allocation6 + $0x218] sm:$0xff]
    %v178 = vld [vmem:[#allocation6 + $0x220] sm:$0xff]
    %v179 = vld [vmem:[#allocation6 + $0x228] sm:$0xff]
    %v180 = vld [vmem:[#allocation6 + $0x230] sm:$0xff]
    %v181 = vld [vmem:[#allocation6 + $0x238] sm:$0xff]
    %v182 = vld [vmem:[#allocation6 + $0x240] sm:$0xff]
    %v183 = vld [vmem:[#allocation6 + $0x248] sm:$0xff]
    %v184 = vld [vmem:[#allocation6 + $0x250] sm:$0xff]
    %v185 = vld [vmem:[#allocation6 + $0x258] sm:$0xff]
    %v186 = vld [vmem:[#allocation6 + $0x260] sm:$0xff]
    %v187 = vld [vmem:[#allocation6 + $0x268] sm:$0xff]
    %v188 = vld [vmem:[#allocation6 + $0x270] sm:$0xff]
    %v189 = vld [vmem:[#allocation6 + $0x278] sm:$0xff]
    %v190 = vld [vmem:[#allocation6 + $0x280] sm:$0xff]
    %v191 = vld [vmem:[#allocation6 + $0x288] sm:$0xff]
    %v192 = vld [vmem:[#allocation6 + $0x290] sm:$0xff]
    %v193 = vld [vmem:[#allocation6 + $0x298] sm:$0xff]
    %v194 = vld [vmem:[#allocation6 + $0x2a0] sm:$0xff]
    %v195 = vld [vmem:[#allocation6 + $0x2a8] sm:$0xff]
    %v196 = vld [vmem:[#allocation6 + $0x2b0] sm:$0xff]
    %v197 = vld [vmem:[#allocation6 + $0x2b8] sm:$0xff]
    %v198 = vld [vmem:[#allocation6 + $0x2c0] sm:$0xff]
    %v199 = vld [vmem:[#allocation6 + $0x2c8] sm:$0xff]
    %v200 = vld [vmem:[#allocation6 + $0x2d0] sm:$0xff]
    %v201 = vld [vmem:[#allocation6 + $0x2d8] sm:$0xff]
    %v202 = vld [vmem:[#allocation6 + $0x2e0] sm:$0xff]
    %v203 = vld [vmem:[#allocation6 + $0x2e8] sm:$0xff]
    %v204 = vld [vmem:[#allocation6 + $0x2f0] sm:$0xff]
    %v205 = vld [vmem:[#allocation6 + $0x2f8] sm:$0xff]
    %v206 = vld [vmem:[#allocation6 + $0x300] sm:$0xff]
    %v207 = vld [vmem:[#allocation6 + $0x308] sm:$0xff]
    %v208 = vld [vmem:[#allocation6 + $0x310] sm:$0xff]
    %v209 = vld [vmem:[#allocation6 + $0x318] sm:$0xff]
    %v210 = vld [vmem:[#allocation6 + $0x320] sm:$0xff]
    %v211 = vld [vmem:[#allocation6 + $0x328] sm:$0xff]
    %v212 = vld [vmem:[#allocation6 + $0x330] sm:$0xff]
    %v213 = vld [vmem:[#allocation6 + $0x338] sm:$0xff]
    %v214 = vld [vmem:[#allocation6 + $0x340] sm:$0xff]
    %v215 = vld [vmem:[#allocation6 + $0x348] sm:$0xff]
    %v216 = vld [vmem:[#allocation6 + $0x350] sm:$0xff]
    %v217 = vld [vmem:[#allocation6 + $0x358] sm:$0xff]
    %v218 = vld [vmem:[#allocation6 + $0x360] sm:$0xff]
    %v219 = vld [vmem:[#allocation6 + $0x368] sm:$0xff]
    %v220 = vld [vmem:[#allocation6 + $0x370] sm:$0xff]
    %v221 = vld [vmem:[#allocation6 + $0x378] sm:$0xff]
    %v222 = vld [vmem:[#allocation6 + $0x380] sm:$0xff]
    %v223 = vld [vmem:[#allocation6 + $0x388] sm:$0xff]
    %v224 = vld [vmem:[#allocation6 + $0x390] sm:$0xff]
    %v225 = vld [vmem:[#allocation6 + $0x398] sm:$0xff]
    %v226 = vld [vmem:[#allocation6 + $0x3a0] sm:$0xff]
    %v227 = vld [vmem:[#allocation6 + $0x3a8] sm:$0xff]
    %v228 = vld [vmem:[#allocation6 + $0x3b0] sm:$0xff]
    %v229 = vld [vmem:[#allocation6 + $0x3b8] sm:$0xff]
    %v230 = vld [vmem:[#allocation6 + $0x3c0] sm:$0xff]
    %v231 = vld [vmem:[#allocation6 + $0x3c8] sm:$0xff]
    %v232 = vld [vmem:[#allocation6 + $0x3d0] sm:$0xff]
    %v233 = vld [vmem:[#allocation6 + $0x3d8] sm:$0xff]
    %v234 = vld [vmem:[#allocation6 + $0x3e0] sm:$0xff]
    %v235 = vld [vmem:[#allocation6 + $0x3e8] sm:$0xff]
    %v236 = vld [vmem:[#allocation6 + $0x3f0] sm:$0xff]
    %v237 = vld [vmem:[#allocation6 + $0x3f8] sm:$0xff]
    %v238 = vld [vmem:[%s2] sm:$0xf]
    %v240 = vlaneseq
    %v241 = vshrl.u32 %v240, 7
    %v242 = vsub.s32 0, %v241
    %v243 = vrot.slane %v238, %v242
    %v244 = vlaneseq
    %v245 = vshrl.u32 %v244, 7
    %v246 = vsub.s32 1, %v245
    %v247 = vrot.slane %v238, %v246
    %v248 = vlaneseq
    %v249 = vshrl.u32 %v248, 7
    %v250 = vsub.s32 2, %v249
    %v251 = vrot.slane %v238, %v250
    %v252 = vlaneseq
    %v253 = vshrl.u32 %v252, 7
    %v254 = vsub.s32 3, %v253
    %v255 = vrot.slane %v238, %v254
    %260 = vmatprep.subr.mxu0 %v111
    %261 = vmatpush1.msra.mxu0 %v110
    %262 = vmatprep.subr.mxu0 %v115
    %263 = vmatpush1.msra.mxu0 %v114
    %264 = vmatprep.subr.mxu0 %v119
    %265 = vmatpush1.msra.mxu0 %v118
    %266 = vmatprep.subr.mxu0 %v123
    %267 = vmatpush1.msra.mxu0 %v122
    %268 = vmatprep.subr.mxu0 %v127
    %269 = vmatpush1.msra.mxu0 %v126
    %270 = vmatprep.subr.mxu0 %v131
    %271 = vmatpush1.msra.mxu0 %v130
    %272 = vmatprep.subr.mxu0 %v135
    %273 = vmatpush1.msra.mxu0 %v134
    %274 = vmatprep.subr.mxu0 %v139
    %275 = vmatpush1.msra.mxu0 %v138
    %276 = vmatprep.subr.mxu0 %v143
    %277 = vmatpush1.msra.mxu0 %v142
    %278 = vmatprep.subr.mxu0 %v147
    %279 = vmatpush1.msra.mxu0 %v146
    %280 = vmatprep.subr.mxu0 %v151
    %281 = vmatpush1.msra.mxu0 %v150
    %282 = vmatprep.subr.mxu0 %v155
    %283 = vmatpush1.msra.mxu0 %v154
    %284 = vmatprep.subr.mxu0 %v159
    %285 = vmatpush1.msra.mxu0 %v158
    %286 = vmatprep.subr.mxu0 %v163
    %287 = vmatpush1.msra.mxu0 %v162
    %288 = vmatprep.subr.mxu0 %v167
    %289 = vmatpush1.msra.mxu0 %v166
    %290 = vmatprep.subr.mxu0 %v171
    %291 = vmatpush1.msra.mxu0 %v170
    %292 = vmatprep.subr.mxu0 %v175
    %293 = vmatpush1.msra.mxu0 %v174
    %294 = vmatprep.subr.mxu0 %v179
    %295 = vmatpush1.msra.mxu0 %v178
    %296 = vmatprep.subr.mxu0 %v183
    %297 = vmatpush1.msra.mxu0 %v182
    %298 = vmatprep.subr.mxu0 %v187
    %299 = vmatpush1.msra.mxu0 %v186
    %300 = vmatprep.subr.mxu0 %v191
    %301 = vmatpush1.msra.mxu0 %v190
    %302 = vmatprep.subr.mxu0 %v195
    %303 = vmatpush1.msra.mxu0 %v194
    %304 = vmatprep.subr.mxu0 %v199
    %305 = vmatpush1.msra.mxu0 %v198
    %306 = vmatprep.subr.mxu0 %v203
    %307 = vmatpush1.msra.mxu0 %v202
    %308 = vmatprep.subr.mxu0 %v207
    %309 = vmatpush1.msra.mxu0 %v206
    %310 = vmatprep.subr.mxu0 %v211
    %311 = vmatpush1.msra.mxu0 %v210
    %312 = vmatprep.subr.mxu0 %v215
    %313 = vmatpush1.msra.mxu0 %v214
    %314 = vmatprep.subr.mxu0 %v219
    %315 = vmatpush1.msra.mxu0 %v218
    %316 = vmatprep.subr.mxu0 %v223
    %317 = vmatpush1.msra.mxu0 %v222
    %318 = vmatprep.subr.mxu0 %v227
    %319 = vmatpush1.msra.mxu0 %v226
    %320 = vmatprep.subr.mxu0 %v231
    %321 = vmatpush1.msra.mxu0 %v230
    %322 = vmatprep.subr.mxu0 %v235
    %323 = vmatpush1.msra.mxu0 %v234
    %324 = vmatprep.mubr.f32.mxu0 %v95
    %325 = vmatmul.mubr.f32.gmra.mrb[0].mxu0 %v94
    %v326 = vpop.f32.mrb[0].mxu0
    %v327 = vadd.f32 %v243, %v326
    %v328 = vpop.f32.mrb[0].mxu0
    %v329 = vadd.f32 %v247, %v328
    %330 = vmatprep.mubr.f32.mxu0 %v97
    %331 = vmatmul.mubr.f32.gmra.mrb[0].mxu0 %v96
    %v332 = vpop.f32.mrb[0].mxu0
    %v333 = vadd.f32 %v243, %v332
    %v334 = vpop.f32.mrb[0].mxu0
    %v335 = vadd.f32 %v247, %v334
    %336 = vmatprep.mubr.f32.mxu0 %v99
    %337 = vmatmul.mubr.f32.gmra.mrb[0].mxu0 %v98
    %v338 = vpop.f32.mrb[0].mxu0
    %v339 = vadd.f32 %v243, %v338
    %v340 = vpop.f32.mrb[0].mxu0
    %v341 = vadd.f32 %v247, %v340
    %342 = vmatprep.mubr.f32.mxu0 %v101
    %343 = vmatmul.mubr.f32.gmra.mrb[0].mxu0 %v100
    %v344 = vpop.f32.mrb[0].mxu0
    %v345 = vadd.f32 %v243, %v344
    %v346 = vpop.f32.mrb[0].mxu0
    %v347 = vadd.f32 %v247, %v346
    %348 = vmatprep.mubr.f32.mxu0 %v103
    %349 = vmatmul.mubr.f32.gmra.mrb[0].mxu0 %v102
    %v350 = vpop.f32.mrb[0].mxu0
    %v351 = vadd.f32 %v243, %v350
    %v352 = vpop.f32.mrb[0].mxu0
    %v353 = vadd.f32 %v247, %v352
    %354 = vmatprep.mubr.f32.mxu0 %v105
    %355 = vmatmul.mubr.f32.gmra.mrb[0].mxu0 %v104
    %v356 = vpop.f32.mrb[0].mxu0
    %v357 = vadd.f32 %v243, %v356
    %v358 = vpop.f32.mrb[0].mxu0
    %v359 = vadd.f32 %v247, %v358
    %360 = vmatprep.mubr.f32.mxu0 %v107
    %361 = vmatmul.mubr.f32.gmra.mrb[0].mxu0 %v106
    %v362 = vpop.f32.mrb[0].mxu0
    %v363 = vadd.f32 %v243, %v362
    %v364 = vpop.f32.mrb[0].mxu0
    %v365 = vadd.f32 %v247, %v364
    %366 = vmatprep.mubr.f32.mxu0 %v109
    %367 = vmatmul.mubr.f32.gmra.mrb[0].mxu0 %v108
    %v368 = vpop.f32.mrb[0].mxu0
    %v369 = vadd.f32 %v243, %v368
    %v370 = vpop.f32.mrb[0].mxu0
    %v371 = vadd.f32 %v247, %v370
    %372 = vdwg.mxu0
    %373 = vmatprep.subr.mxu0 %v113
    %374 = vmatpush1.msra.mxu0 %v112
    %375 = vmatprep.subr.mxu0 %v117
    %376 = vmatpush1.msra.mxu0 %v116
    %377 = vmatprep.subr.mxu0 %v121
    %378 = vmatpush1.msra.mxu0 %v120
    %379 = vmatprep.subr.mxu0 %v125
    %380 = vmatpush1.msra.mxu0 %v124
    %381 = vmatprep.subr.mxu0 %v129
    %382 = vmatpush1.msra.mxu0 %v128
    %383 = vmatprep.subr.mxu0 %v133
    %384 = vmatpush1.msra.mxu0 %v132
    %385 = vmatprep.subr.mxu0 %v137
    %386 = vmatpush1.msra.mxu0 %v136
    %387 = vmatprep.subr.mxu0 %v141
    %388 = vmatpush1.msra.mxu0 %v140
    %389 = vmatprep.subr.mxu0 %v145
    %390 = vmatpush1.msra.mxu0 %v144
    %391 = vmatprep.subr.mxu0 %v149
    %392 = vmatpush1.msra.mxu0 %v148
    %393 = vmatprep.subr.mxu0 %v153
    %394 = vmatpush1.msra.mxu0 %v152
    %395 = vmatprep.subr.mxu0 %v157
    %396 = vmatpush1.msra.mxu0 %v156
    %397 = vmatprep.subr.mxu0 %v161
    %398 = vmatpush1.msra.mxu0 %v160
    %399 = vmatprep.subr.mxu0 %v165
    %400 = vmatpush1.msra.mxu0 %v164
    %401 = vmatprep.subr.mxu0 %v169
    %402 = vmatpush1.msra.mxu0 %v168
    %403 = vmatprep.subr.mxu0 %v173
    %404 = vmatpush1.msra.mxu0 %v172
    %405 = vmatprep.subr.mxu0 %v177
    %406 = vmatpush1.msra.mxu0 %v176
    %407 = vmatprep.subr.mxu0 %v181
    %408 = vmatpush1.msra.mxu0 %v180
    %409 = vmatprep.subr.mxu0 %v185
    %410 = vmatpush1.msra.mxu0 %v184
    %411 = vmatprep.subr.mxu0 %v189
    %412 = vmatpush1.msra.mxu0 %v188
    %413 = vmatprep.subr.mxu0 %v193
    %414 = vmatpush1.msra.mxu0 %v192
    %415 = vmatprep.subr.mxu0 %v197
    %416 = vmatpush1.msra.mxu0 %v196
    %417 = vmatprep.subr.mxu0 %v201
    %418 = vmatpush1.msra.mxu0 %v200
    %419 = vmatprep.subr.mxu0 %v205
    %420 = vmatpush1.msra.mxu0 %v204
    %421 = vmatprep.subr.mxu0 %v209
    %422 = vmatpush1.msra.mxu0 %v208
    %423 = vmatprep.subr.mxu0 %v213
    %424 = vmatpush1.msra.mxu0 %v212
    %425 = vmatprep.subr.mxu0 %v217
    %426 = vmatpush1.msra.mxu0 %v216
    %427 = vmatprep.subr.mxu0 %v221
    %428 = vmatpush1.msra.mxu0 %v220
    %429 = vmatprep.subr.mxu0 %v225
    %430 = vmatpush1.msra.mxu0 %v224
    %431 = vmatprep.subr.mxu0 %v229
    %432 = vmatpush1.msra.mxu0 %v228
    %433 = vmatprep.subr.mxu0 %v233
    %434 = vmatpush1.msra.mxu0 %v232
    %435 = vmatprep.subr.mxu0 %v237
    %436 = vmatpush1.msra.mxu0 %v236
    %437 = vmatprep.mubr.f32.mxu0 %v95
    %438 = vmatmul.mubr.f32.gmra.mrb[0].mxu0 %v94
    %v439 = vpop.f32.mrb[0].mxu0
    %v440 = vadd.f32 %v251, %v439
    %v441 = vpop.f32.mrb[0].mxu0
    %v442 = vadd.f32 %v255, %v441
    %443 = vmatprep.mubr.f32.mxu0 %v97
    %444 = vmatmul.mubr.f32.gmra.mrb[0].mxu0 %v96
    %v445 = vpop.f32.mrb[0].mxu0
    %v446 = vadd.f32 %v251, %v445
    %v447 = vpop.f32.mrb[0].mxu0
    %v448 = vadd.f32 %v255, %v447
    %449 = vmatprep.mubr.f32.mxu0 %v99
    %450 = vmatmul.mubr.f32.gmra.mrb[0].mxu0 %v98
    %v451 = vpop.f32.mrb[0].mxu0
    %v452 = vadd.f32 %v251, %v451
    %v453 = vpop.f32.mrb[0].mxu0
    %v454 = vadd.f32 %v255, %v453
    %455 = vmatprep.mubr.f32.mxu0 %v101
    %456 = vmatmul.mubr.f32.gmra.mrb[0].mxu0 %v100
    %v457 = vpop.f32.mrb[0].mxu0
    %v458 = vadd.f32 %v251, %v457
    %v459 = vpop.f32.mrb[0].mxu0
    %v460 = vadd.f32 %v255, %v459
    %461 = vmatprep.mubr.f32.mxu0 %v103
    %462 = vmatmul.mubr.f32.gmra.mrb[0].mxu0 %v102
    %v463 = vpop.f32.mrb[0].mxu0
    %v464 = vadd.f32 %v251, %v463
    %v465 = vpop.f32.mrb[0].mxu0
    %v466 = vadd.f32 %v255, %v465
    %467 = vmatprep.mubr.f32.mxu0 %v105
    %468 = vmatmul.mubr.f32.gmra.mrb[0].mxu0 %v104
    %v469 = vpop.f32.mrb[0].mxu0
    %v470 = vadd.f32 %v251, %v469
    %v471 = vpop.f32.mrb[0].mxu0
    %v472 = vadd.f32 %v255, %v471
    %473 = vmatprep.mubr.f32.mxu0 %v107
    %474 = vmatmul.mubr.f32.gmra.mrb[0].mxu0 %v106
    %v475 = vpop.f32.mrb[0].mxu0
    %v476 = vadd.f32 %v251, %v475
    %v477 = vpop.f32.mrb[0].mxu0
    %v478 = vadd.f32 %v255, %v477
    %479 = vmatprep.mubr.f32.mxu0 %v109
    %480 = vmatmul.mubr.f32.gmra.mrb[0].mxu0 %v108
    %v481 = vpop.f32.mrb[0].mxu0
    %v482 = vadd.f32 %v251, %v481
    %v483 = vpop.f32.mrb[0].mxu0
    %v484 = vadd.f32 %v255, %v483
    %485 = vdwg.mxu0
    %486 = vst [vmem:[#allocation2] sm:$0xff] %v327
    %487 = vst [vmem:[#allocation2 + $0x8] sm:$0xff] %v329
    %488 = vst [vmem:[#allocation2 + $0x10] sm:$0xff] %v440
    %489 = vst [vmem:[#allocation2 + $0x18] sm:$0xff] %v442
    %490 = vst [vmem:[#allocation2 + $0x20] sm:$0xff] %v333
    %491 = vst [vmem:[#allocation2 + $0x28] sm:$0xff] %v335
    %492 = vst [vmem:[#allocation2 + $0x30] sm:$0xff] %v446
    %493 = vst [vmem:[#allocation2 + $0x38] sm:$0xff] %v448
    %494 = vst [vmem:[#allocation2 + $0x40] sm:$0xff] %v339
    %495 = vst [vmem:[#allocation2 + $0x48] sm:$0xff] %v341
    %496 = vst [vmem:[#allocation2 + $0x50] sm:$0xff] %v452
    %497 = vst [vmem:[#allocation2 + $0x58] sm:$0xff] %v454
    %498 = vst [vmem:[#allocation2 + $0x60] sm:$0xff] %v345
    %499 = vst [vmem:[#allocation2 + $0x68] sm:$0xff] %v347
    %500 = vst [vmem:[#allocation2 + $0x70] sm:$0xff] %v458
    %501 = vst [vmem:[#allocation2 + $0x78] sm:$0xff] %v460
    %502 = vst [vmem:[#allocation2 + $0x80] sm:$0xff] %v351
    %503 = vst [vmem:[#allocation2 + $0x88] sm:$0xff] %v353
    %504 = vst [vmem:[#allocation2 + $0x90] sm:$0xff] %v464
    %505 = vst [vmem:[#allocation2 + $0x98] sm:$0xff] %v466
    %506 = vst [vmem:[#allocation2 + $0xa0] sm:$0xff] %v357
    %507 = vst [vmem:[#allocation2 + $0xa8] sm:$0xff] %v359
    %508 = vst [vmem:[#allocation2 + $0xb0] sm:$0xff] %v470
    %509 = vst [vmem:[#allocation2 + $0xb8] sm:$0xff] %v472
    %510 = vst [vmem:[#allocation2 + $0xc0] sm:$0xff] %v363
    %511 = vst [vmem:[#allocation2 + $0xc8] sm:$0xff] %v365
    %512 = vst [vmem:[#allocation2 + $0xd0] sm:$0xff] %v476
    %513 = vst [vmem:[#allocation2 + $0xd8] sm:$0xff] %v478
    %514 = vst [vmem:[#allocation2 + $0xe0] sm:$0xff] %v369
    %515 = vst [vmem:[#allocation2 + $0xe8] sm:$0xff] %v371
    %516 = vst [vmem:[#allocation2 + $0xf0] sm:$0xff] %v482
    %517 = vst [vmem:[#allocation2 + $0xf8] sm:$0xff] %v484
    %v518 = vld [vmem:[#allocation8] sm:$0xff]
    %v519 = vld [vmem:[#allocation8 + $0x8] sm:$0xff]
    %v520 = vld [vmem:[#allocation8 + $0x10] sm:$0xff]
    %v521 = vld [vmem:[#allocation8 + $0x18] sm:$0xff]
    %v522 = vld [vmem:[#allocation8 + $0x20] sm:$0xff]
    %v523 = vld [vmem:[#allocation8 + $0x28] sm:$0xff]
    %v524 = vld [vmem:[#allocation8 + $0x30] sm:$0xff]
    %v525 = vld [vmem:[#allocation8 + $0x38] sm:$0xff]
    %v526 = vld [vmem:[#allocation8 + $0x40] sm:$0xff]
    %v527 = vld [vmem:[#allocation8 + $0x48] sm:$0xff]
    %v528 = vld [vmem:[#allocation8 + $0x50] sm:$0xff]
    %v529 = vld [vmem:[#allocation8 + $0x58] sm:$0xff]
    %v530 = vld [vmem:[#allocation8 + $0x60] sm:$0xff]
    %v531 = vld [vmem:[#allocation8 + $0x68] sm:$0xff]
    %v532 = vld [vmem:[#allocation8 + $0x70] sm:$0xff]
    %v533 = vld [vmem:[#allocation8 + $0x78] sm:$0xff]
    %v534 = vld [vmem:[#allocation8 + $0x80] sm:$0xff]
    %v535 = vld [vmem:[#allocation8 + $0x88] sm:$0xff]
    %v536 = vld [vmem:[#allocation8 + $0x90] sm:$0xff]
    %v537 = vld [vmem:[#allocation8 + $0x98] sm:$0xff]
    %v538 = vld [vmem:[#allocation8 + $0xa0] sm:$0xff]
    %v539 = vld [vmem:[#allocation8 + $0xa8] sm:$0xff]
    %v540 = vld [vmem:[#allocation8 + $0xb0] sm:$0xff]
    %v541 = vld [vmem:[#allocation8 + $0xb8] sm:$0xff]
    %v542 = vld [vmem:[#allocation8 + $0xc0] sm:$0xff]
    %v543 = vld [vmem:[#allocation8 + $0xc8] sm:$0xff]
    %v544 = vld [vmem:[#allocation8 + $0xd0] sm:$0xff]
    %v545 = vld [vmem:[#allocation8 + $0xd8] sm:$0xff]
    %v546 = vld [vmem:[#allocation8 + $0xe0] sm:$0xff]
    %v547 = vld [vmem:[#allocation8 + $0xe8] sm:$0xff]
    %v548 = vld [vmem:[#allocation8 + $0xf0] sm:$0xff]
    %v549 = vld [vmem:[#allocation8 + $0xf8] sm:$0xff]
    %v550 = vld [vmem:[#allocation8 + $0x100] sm:$0xff]
    %v551 = vld [vmem:[#allocation8 + $0x108] sm:$0xff]
    %v552 = vld [vmem:[#allocation8 + $0x110] sm:$0xff]
    %v553 = vld [vmem:[#allocation8 + $0x118] sm:$0xff]
    %v554 = vld [vmem:[#allocation8 + $0x120] sm:$0xff]
    %v555 = vld [vmem:[#allocation8 + $0x128] sm:$0xff]
    %v556 = vld [vmem:[#allocation8 + $0x130] sm:$0xff]
    %v557 = vld [vmem:[#allocation8 + $0x138] sm:$0xff]
    %v558 = vld [vmem:[#allocation8 + $0x140] sm:$0xff]
    %v559 = vld [vmem:[#allocation8 + $0x148] sm:$0xff]
    %v560 = vld [vmem:[#allocation8 + $0x150] sm:$0xff]
    %v561 = vld [vmem:[#allocation8 + $0x158] sm:$0xff]
    %v562 = vld [vmem:[#allocation8 + $0x160] sm:$0xff]
    %v563 = vld [vmem:[#allocation8 + $0x168] sm:$0xff]
    %v564 = vld [vmem:[#allocation8 + $0x170] sm:$0xff]
    %v565 = vld [vmem:[#allocation8 + $0x178] sm:$0xff]
    %v566 = vld [vmem:[#allocation8 + $0x180] sm:$0xff]
    %v567 = vld [vmem:[#allocation8 + $0x188] sm:$0xff]
    %v568 = vld [vmem:[#allocation8 + $0x190] sm:$0xff]
    %v569 = vld [vmem:[#allocation8 + $0x198] sm:$0xff]
    %v570 = vld [vmem:[#allocation8 + $0x1a0] sm:$0xff]
    %v571 = vld [vmem:[#allocation8 + $0x1a8] sm:$0xff]
    %v572 = vld [vmem:[#allocation8 + $0x1b0] sm:$0xff]
    %v573 = vld [vmem:[#allocation8 + $0x1b8] sm:$0xff]
    %v574 = vld [vmem:[#allocation8 + $0x1c0] sm:$0xff]
    %v575 = vld [vmem:[#allocation8 + $0x1c8] sm:$0xff]
    %v576 = vld [vmem:[#allocation8 + $0x1d0] sm:$0xff]
    %v577 = vld [vmem:[#allocation8 + $0x1d8] sm:$0xff]
    %v578 = vld [vmem:[#allocation8 + $0x1e0] sm:$0xff]
    %v579 = vld [vmem:[#allocation8 + $0x1e8] sm:$0xff]
    %v580 = vld [vmem:[#allocation8 + $0x1f0] sm:$0xff]
    %v581 = vld [vmem:[#allocation8 + $0x1f8] sm:$0xff]
    %v582 = vld [vmem:[#allocation8 + $0x200] sm:$0xff]
    %v583 = vld [vmem:[#allocation8 + $0x208] sm:$0xff]
    %v584 = vld [vmem:[#allocation8 + $0x210] sm:$0xff]
    %v585 = vld [vmem:[#allocation8 + $0x218] sm:$0xff]
    %v586 = vld [vmem:[#allocation8 + $0x220] sm:$0xff]
    %v587 = vld [vmem:[#allocation8 + $0x228] sm:$0xff]
    %v588 = vld [vmem:[#allocation8 + $0x230] sm:$0xff]
    %v589 = vld [vmem:[#allocation8 + $0x238] sm:$0xff]
    %v590 = vld [vmem:[#allocation8 + $0x240] sm:$0xff]
    %v591 = vld [vmem:[#allocation8 + $0x248] sm:$0xff]
    %v592 = vld [vmem:[#allocation8 + $0x250] sm:$0xff]
    %v593 = vld [vmem:[#allocation8 + $0x258] sm:$0xff]
    %v594 = vld [vmem:[#allocation8 + $0x260] sm:$0xff]
    %v595 = vld [vmem:[#allocation8 + $0x268] sm:$0xff]
    %v596 = vld [vmem:[#allocation8 + $0x270] sm:$0xff]
    %v597 = vld [vmem:[#allocation8 + $0x278] sm:$0xff]
    %v598 = vld [vmem:[#allocation8 + $0x280] sm:$0xff]
    %v599 = vld [vmem:[#allocation8 + $0x288] sm:$0xff]
    %v600 = vld [vmem:[#allocation8 + $0x290] sm:$0xff]
    %v601 = vld [vmem:[#allocation8 + $0x298] sm:$0xff]
    %v602 = vld [vmem:[#allocation8 + $0x2a0] sm:$0xff]
    %v603 = vld [vmem:[#allocation8 + $0x2a8] sm:$0xff]
    %v604 = vld [vmem:[#allocation8 + $0x2b0] sm:$0xff]
    %v605 = vld [vmem:[#allocation8 + $0x2b8] sm:$0xff]
    %v606 = vld [vmem:[#allocation8 + $0x2c0] sm:$0xff]
    %v607 = vld [vmem:[#allocation8 + $0x2c8] sm:$0xff]
    %v608 = vld [vmem:[#allocation8 + $0x2d0] sm:$0xff]
    %v609 = vld [vmem:[#allocation8 + $0x2d8] sm:$0xff]
    %v610 = vld [vmem:[#allocation8 + $0x2e0] sm:$0xff]
    %v611 = vld [vmem:[#allocation8 + $0x2e8] sm:$0xff]
    %v612 = vld [vmem:[#allocation8 + $0x2f0] sm:$0xff]
    %v613 = vld [vmem:[#allocation8 + $0x2f8] sm:$0xff]
    %v614 = vld [vmem:[#allocation8 + $0x300] sm:$0xff]
    %v615 = vld [vmem:[#allocation8 + $0x308] sm:$0xff]
    %v616 = vld [vmem:[#allocation8 + $0x310] sm:$0xff]
    %v617 = vld [vmem:[#allocation8 + $0x318] sm:$0xff]
    %v618 = vld [vmem:[#allocation8 + $0x320] sm:$0xff]
    %v619 = vld [vmem:[#allocation8 + $0x328] sm:$0xff]
    %v620 = vld [vmem:[#allocation8 + $0x330] sm:$0xff]
    %v621 = vld [vmem:[#allocation8 + $0x338] sm:$0xff]
    %v622 = vld [vmem:[#allocation8 + $0x340] sm:$0xff]
    %v623 = vld [vmem:[#allocation8 + $0x348] sm:$0xff]
    %v624 = vld [vmem:[#allocation8 + $0x350] sm:$0xff]
    %v625 = vld [vmem:[#allocation8 + $0x358] sm:$0xff]
    %v626 = vld [vmem:[#allocation8 + $0x360] sm:$0xff]
    %v627 = vld [vmem:[#allocation8 + $0x368] sm:$0xff]
    %v628 = vld [vmem:[#allocation8 + $0x370] sm:$0xff]
    %v629 = vld [vmem:[#allocation8 + $0x378] sm:$0xff]
    %v630 = vld [vmem:[#allocation8 + $0x380] sm:$0xff]
    %v631 = vld [vmem:[#allocation8 + $0x388] sm:$0xff]
    %v632 = vld [vmem:[#allocation8 + $0x390] sm:$0xff]
    %v633 = vld [vmem:[#allocation8 + $0x398] sm:$0xff]
    %v634 = vld [vmem:[#allocation8 + $0x3a0] sm:$0xff]
    %v635 = vld [vmem:[#allocation8 + $0x3a8] sm:$0xff]
    %v636 = vld [vmem:[#allocation8 + $0x3b0] sm:$0xff]
    %v637 = vld [vmem:[#allocation8 + $0x3b8] sm:$0xff]
    %v638 = vld [vmem:[#allocation8 + $0x3c0] sm:$0xff]
    %v639 = vld [vmem:[#allocation8 + $0x3c8] sm:$0xff]
    %v640 = vld [vmem:[#allocation8 + $0x3d0] sm:$0xff]
    %v641 = vld [vmem:[#allocation8 + $0x3d8] sm:$0xff]
    %v642 = vld [vmem:[#allocation8 + $0x3e0] sm:$0xff]
    %v643 = vld [vmem:[#allocation8 + $0x3e8] sm:$0xff]
    %v644 = vld [vmem:[#allocation8 + $0x3f0] sm:$0xff]
    %v645 = vld [vmem:[#allocation8 + $0x3f8] sm:$0xff]
    %v646 = vld [vmem:[#allocation9] sm:$0xff]
    %v647 = vld [vmem:[#allocation9 + $0x8] sm:$0xff]
    %v648 = vld [vmem:[#allocation9 + $0x10] sm:$0xff]
    %v649 = vld [vmem:[#allocation9 + $0x18] sm:$0xff]
    %v650 = vld [vmem:[#allocation2] sm:$0xff]
    %v651 = vld [vmem:[#allocation2 + $0x8] sm:$0xff]
    %v652 = vld [vmem:[#allocation2 + $0x10] sm:$0xff]
    %v653 = vld [vmem:[#allocation2 + $0x18] sm:$0xff]
    %v654 = vxor.u32 %v650, 2147483648
    %v655 = vxor.u32 %v651, 2147483648
    %v656 = vxor.u32 %v652, 2147483648
    %v657 = vmul.f32 %v654, 1.442695
    %v658 = vpow.pop %v657
    %v659 = vmul.f32 %v655, 1.442695
    %v660 = vpow.pop %v659
    %v661 = vmul.f32 %v656, 1.442695
    %v662 = vpow.pop %v661
    %v663 = vadd.f32 %v658, 1.0
    %v664 = vadd.f32 %v660, 1.0
    %v665 = vadd.f32 %v662, 1.0
    %v666 = vrcp.pop %v663
    %v667 = vmul.f32 1.0, %v666
    %v668 = vrcp.pop %v664
    %v669 = vmul.f32 1.0, %v668
    %v670 = vrcp.pop %v665
    %v671 = vmul.f32 1.0, %v670
    %v672 = vtanh.pop %v653
    %v673 = vmul.f32 %v669, 0.0
    %v674 = vmul.f32 %v667, %v672
    %v675 = vadd.f32 %v673, %v674
    %v676 = vtanh.pop %v675
    %v677 = vmul.f32 %v671, %v676
    %v678 = vpack.c.bf16 %v677, %v677
    %v679 = vpack.c.bf16 0.0, 0.0
    %v808 = vunpack.c.l.b16 %v518
    %v809 = vunpack.c.h.b16 %v518
    %v810 = vunpack.c.l.b16 %v519
    %v811 = vunpack.c.h.b16 %v519
    %v812 = vunpack.c.l.b16 %v520
    %v813 = vunpack.c.h.b16 %v520
    %v814 = vunpack.c.l.b16 %v521
    %v815 = vunpack.c.h.b16 %v521
    %v816 = vunpack.c.l.b16 %v522
    %v817 = vunpack.c.h.b16 %v522
    %v818 = vunpack.c.l.b16 %v523
    %v819 = vunpack.c.h.b16 %v523
    %v820 = vunpack.c.l.b16 %v524
    %v821 = vunpack.c.h.b16 %v524
    %v822 = vunpack.c.l.b16 %v525
    %v823 = vunpack.c.h.b16 %v525
    %v824 = vunpack.c.l.b16 %v526
    %v825 = vunpack.c.h.b16 %v526
    %v826 = vunpack.c.l.b16 %v527
    %v827 = vunpack.c.h.b16 %v527
    %v828 = vunpack.c.l.b16 %v528
    %v829 = vunpack.c.h.b16 %v528
    %v830 = vunpack.c.l.b16 %v529
    %v831 = vunpack.c.h.b16 %v529
    %v832 = vunpack.c.l.b16 %v530
    %v833 = vunpack.c.h.b16 %v530
    %v834 = vunpack.c.l.b16 %v531
    %v835 = vunpack.c.h.b16 %v531
    %v836 = vunpack.c.l.b16 %v532
    %v837 = vunpack.c.h.b16 %v532
    %v838 = vunpack.c.l.b16 %v533
    %v839 = vunpack.c.h.b16 %v533
    %v840 = vunpack.c.l.b16 %v534
    %v841 = vunpack.c.h.b16 %v534
    %v842 = vunpack.c.l.b16 %v535
    %v843 = vunpack.c.h.b16 %v535
    %v844 = vunpack.c.l.b16 %v536
    %v845 = vunpack.c.h.b16 %v536
    %v846 = vunpack.c.l.b16 %v537
    %v847 = vunpack.c.h.b16 %v537
    %v848 = vunpack.c.l.b16 %v538
    %v849 = vunpack.c.h.b16 %v538
    %v850 = vunpack.c.l.b16 %v539
    %v851 = vunpack.c.h.b16 %v539
    %v852 = vunpack.c.l.b16 %v540
    %v853 = vunpack.c.h.b16 %v540
    %v854 = vunpack.c.l.b16 %v541
    %v855 = vunpack.c.h.b16 %v541
    %v856 = vunpack.c.l.b16 %v542
    %v857 = vunpack.c.h.b16 %v542
    %v858 = vunpack.c.l.b16 %v543
    %v859 = vunpack.c.h.b16 %v543
    %v860 = vunpack.c.l.b16 %v544
    %v861 = vunpack.c.h.b16 %v544
    %v862 = vunpack.c.l.b16 %v545
    %v863 = vunpack.c.h.b16 %v545
    %v864 = vunpack.c.l.b16 %v546
    %v865 = vunpack.c.h.b16 %v546
    %v866 = vunpack.c.l.b16 %v547
    %v867 = vunpack.c.h.b16 %v547
    %v868 = vunpack.c.l.b16 %v548
    %v869 = vunpack.c.h.b16 %v548
    %v870 = vunpack.c.l.b16 %v549
    %v871 = vunpack.c.h.b16 %v549
    %v872 = vunpack.c.l.b16 %v550
    %v873 = vunpack.c.h.b16 %v550
    %v874 = vunpack.c.l.b16 %v551
    %v875 = vunpack.c.h.b16 %v551
    %v876 = vunpack.c.l.b16 %v552
    %v877 = vunpack.c.h.b16 %v552
    %v878 = vunpack.c.l.b16 %v553
    %v879 = vunpack.c.h.b16 %v553
    %v880 = vunpack.c.l.b16 %v554
    %v881 = vunpack.c.h.b16 %v554
    %v882 = vunpack.c.l.b16 %v555
    %v883 = vunpack.c.h.b16 %v555
    %v884 = vunpack.c.l.b16 %v556
    %v885 = vunpack.c.h.b16 %v556
    %v886 = vunpack.c.l.b16 %v557
    %v887 = vunpack.c.h.b16 %v557
    %v888 = vunpack.c.l.b16 %v558
    %v889 = vunpack.c.h.b16 %v558
    %v890 = vunpack.c.l.b16 %v559
    %v891 = vunpack.c.h.b16 %v559
    %v892 = vunpack.c.l.b16 %v560
    %v893 = vunpack.c.h.b16 %v560
    %v894 = vunpack.c.l.b16 %v561
    %v895 = vunpack.c.h.b16 %v561
    %v896 = vunpack.c.l.b16 %v562
    %v897 = vunpack.c.h.b16 %v562
    %v898 = vunpack.c.l.b16 %v563
    %v899 = vunpack.c.h.b16 %v563
    %v900 = vunpack.c.l.b16 %v564
    %v901 = vunpack.c.h.b16 %v564
    %v902 = vunpack.c.l.b16 %v565
    %v903 = vunpack.c.h.b16 %v565
    %v904 = vunpack.c.l.b16 %v566
    %v905 = vunpack.c.h.b16 %v566
    %v906 = vunpack.c.l.b16 %v567
    %v907 = vunpack.c.h.b16 %v567
    %v908 = vunpack.c.l.b16 %v568
    %v909 = vunpack.c.h.b16 %v568
    %v910 = vunpack.c.l.b16 %v569
    %v911 = vunpack.c.h.b16 %v569
    %v912 = vunpack.c.l.b16 %v570
    %v913 = vunpack.c.h.b16 %v570
    %v914 = vunpack.c.l.b16 %v571
    %v915 = vunpack.c.h.b16 %v571
    %v916 = vunpack.c.l.b16 %v572
    %v917 = vunpack.c.h.b16 %v572
    %v918 = vunpack.c.l.b16 %v573
    %v919 = vunpack.c.h.b16 %v573
    %v920 = vunpack.c.l.b16 %v574
    %v921 = vunpack.c.h.b16 %v574
    %v922 = vunpack.c.l.b16 %v575
    %v923 = vunpack.c.h.b16 %v575
    %v924 = vunpack.c.l.b16 %v576
    %v925 = vunpack.c.h.b16 %v576
    %v926 = vunpack.c.l.b16 %v577
    %v927 = vunpack.c.h.b16 %v577
    %v928 = vunpack.c.l.b16 %v578
    %v929 = vunpack.c.h.b16 %v578
    %v930 = vunpack.c.l.b16 %v579
    %v931 = vunpack.c.h.b16 %v579
    %v932 = vunpack.c.l.b16 %v580
    %v933 = vunpack.c.h.b16 %v580
    %v934 = vunpack.c.l.b16 %v581
    %v935 = vunpack.c.h.b16 %v581
    %v936 = vunpack.c.l.b16 %v582
    %v937 = vunpack.c.h.b16 %v582
    %v938 = vunpack.c.l.b16 %v583
    %v939 = vunpack.c.h.b16 %v583
    %v940 = vunpack.c.l.b16 %v584
    %v941 = vunpack.c.h.b16 %v584
    %v942 = vunpack.c.l.b16 %v585
    %v943 = vunpack.c.h.b16 %v585
    %v944 = vunpack.c.l.b16 %v586
    %v945 = vunpack.c.h.b16 %v586
    %v946 = vunpack.c.l.b16 %v587
    %v947 = vunpack.c.h.b16 %v587
    %v948 = vunpack.c.l.b16 %v588
    %v949 = vunpack.c.h.b16 %v588
    %v950 = vunpack.c.l.b16 %v589
    %v951 = vunpack.c.h.b16 %v589
    %v952 = vunpack.c.l.b16 %v590
    %v953 = vunpack.c.h.b16 %v590
    %v954 = vunpack.c.l.b16 %v591
    %v955 = vunpack.c.h.b16 %v591
    %v956 = vunpack.c.l.b16 %v592
    %v957 = vunpack.c.h.b16 %v592
    %v958 = vunpack.c.l.b16 %v593
    %v959 = vunpack.c.h.b16 %v593
    %v960 = vunpack.c.l.b16 %v594
    %v961 = vunpack.c.h.b16 %v594
    %v962 = vunpack.c.l.b16 %v595
    %v963 = vunpack.c.h.b16 %v595
    %v964 = vunpack.c.l.b16 %v596
    %v965 = vunpack.c.h.b16 %v596
    %v966 = vunpack.c.l.b16 %v597
    %v967 = vunpack.c.h.b16 %v597
    %v968 = vunpack.c.l.b16 %v598
    %v969 = vunpack.c.h.b16 %v598
    %v970 = vunpack.c.l.b16 %v599
    %v971 = vunpack.c.h.b16 %v599
    %v972 = vunpack.c.l.b16 %v600
    %v973 = vunpack.c.h.b16 %v600
    %v974 = vunpack.c.l.b16 %v601
    %v975 = vunpack.c.h.b16 %v601
    %v976 = vunpack.c.l.b16 %v602
    %v977 = vunpack.c.h.b16 %v602
    %v978 = vunpack.c.l.b16 %v603
    %v979 = vunpack.c.h.b16 %v603
    %v980 = vunpack.c.l.b16 %v604
    %v981 = vunpack.c.h.b16 %v604
    %v982 = vunpack.c.l.b16 %v605
    %v983 = vunpack.c.h.b16 %v605
    %v984 = vunpack.c.l.b16 %v606
    %v985 = vunpack.c.h.b16 %v606
    %v986 = vunpack.c.l.b16 %v607
    %v987 = vunpack.c.h.b16 %v607
    %v988 = vunpack.c.l.b16 %v608
    %v989 = vunpack.c.h.b16 %v608
    %v990 = vunpack.c.l.b16 %v609
    %v991 = vunpack.c.h.b16 %v609
    %v992 = vunpack.c.l.b16 %v610
    %v993 = vunpack.c.h.b16 %v610
    %v994 = vunpack.c.l.b16 %v611
    %v995 = vunpack.c.h.b16 %v611
    %v996 = vunpack.c.l.b16 %v612
    %v997 = vunpack.c.h.b16 %v612
    %v998 = vunpack.c.l.b16 %v613
    %v999 = vunpack.c.h.b16 %v613
    %v1000 = vunpack.c.l.b16 %v614
    %v1001 = vunpack.c.h.b16 %v614
    %v1002 = vunpack.c.l.b16 %v615
    %v1003 = vunpack.c.h.b16 %v615
    %v1004 = vunpack.c.l.b16 %v616
    %v1005 = vunpack.c.h.b16 %v616
    %v1006 = vunpack.c.l.b16 %v617
    %v1007 = vunpack.c.h.b16 %v617
    %v1008 = vunpack.c.l.b16 %v618
    %v1009 = vunpack.c.h.b16 %v618
    %v1010 = vunpack.c.l.b16 %v619
    %v1011 = vunpack.c.h.b16 %v619
    %v1012 = vunpack.c.l.b16 %v620
    %v1013 = vunpack.c.h.b16 %v620
    %v1014 = vunpack.c.l.b16 %v621
    %v1015 = vunpack.c.h.b16 %v621
    %v1016 = vunpack.c.l.b16 %v622
    %v1017 = vunpack.c.h.b16 %v622
    %v1018 = vunpack.c.l.b16 %v623
    %v1019 = vunpack.c.h.b16 %v623
    %v1020 = vunpack.c.l.b16 %v624
    %v1021 = vunpack.c.h.b16 %v624
    %v1022 = vunpack.c.l.b16 %v625
    %v1023 = vunpack.c.h.b16 %v625
    %v1024 = vunpack.c.l.b16 %v626
    %v1025 = vunpack.c.h.b16 %v626
    %v1026 = vunpack.c.l.b16 %v627
    %v1027 = vunpack.c.h.b16 %v627
    %v1028 = vunpack.c.l.b16 %v628
    %v1029 = vunpack.c.h.b16 %v628
    %v1030 = vunpack.c.l.b16 %v629
    %v1031 = vunpack.c.h.b16 %v629
    %v1032 = vunpack.c.l.b16 %v630
    %v1033 = vunpack.c.h.b16 %v630
    %v1034 = vunpack.c.l.b16 %v631
    %v1035 = vunpack.c.h.b16 %v631
    %v1036 = vunpack.c.l.b16 %v632
    %v1037 = vunpack.c.h.b16 %v632
    %v1038 = vunpack.c.l.b16 %v633
    %v1039 = vunpack.c.h.b16 %v633
    %v1040 = vunpack.c.l.b16 %v634
    %v1041 = vunpack.c.h.b16 %v634
    %v1042 = vunpack.c.l.b16 %v635
    %v1043 = vunpack.c.h.b16 %v635
    %v1044 = vunpack.c.l.b16 %v636
    %v1045 = vunpack.c.h.b16 %v636
    %v1046 = vunpack.c.l.b16 %v637
    %v1047 = vunpack.c.h.b16 %v637
    %v1048 = vunpack.c.l.b16 %v638
    %v1049 = vunpack.c.h.b16 %v638
    %v1050 = vunpack.c.l.b16 %v639
    %v1051 = vunpack.c.h.b16 %v639
    %v1052 = vunpack.c.l.b16 %v640
    %v1053 = vunpack.c.h.b16 %v640
    %v1054 = vunpack.c.l.b16 %v641
    %v1055 = vunpack.c.h.b16 %v641
    %v1056 = vunpack.c.l.b16 %v642
    %v1057 = vunpack.c.h.b16 %v642
    %v1058 = vunpack.c.l.b16 %v643
    %v1059 = vunpack.c.h.b16 %v643
    %v1060 = vunpack.c.l.b16 %v644
    %v1061 = vunpack.c.h.b16 %v644
    %v1062 = vunpack.c.l.b16 %v645
    %v1063 = vunpack.c.h.b16 %v645
    %v1064 = vpack.c.b16 %v816, %v808
    %v1065 = vpack.c.b16 %v817, %v809
    %v1066 = vpack.c.b16 %v818, %v810
    %v1067 = vpack.c.b16 %v819, %v811
    %v1068 = vpack.c.b16 %v820, %v812
    %v1069 = vpack.c.b16 %v821, %v813
    %v1070 = vpack.c.b16 %v822, %v814
    %v1071 = vpack.c.b16 %v823, %v815
    %v1072 = vpack.c.b16 %v832, %v824
    %v1073 = vpack.c.b16 %v833, %v825
    %v1074 = vpack.c.b16 %v834, %v826
    %v1075 = vpack.c.b16 %v835, %v827
    %v1076 = vpack.c.b16 %v836, %v828
    %v1077 = vpack.c.b16 %v837, %v829
    %v1078 = vpack.c.b16 %v838, %v830
    %v1079 = vpack.c.b16 %v839, %v831
    %v1080 = vpack.c.b16 %v848, %v840
    %v1081 = vpack.c.b16 %v849, %v841
    %v1082 = vpack.c.b16 %v850, %v842
    %v1083 = vpack.c.b16 %v851, %v843
    %v1084 = vpack.c.b16 %v852, %v844
    %v1085 = vpack.c.b16 %v853, %v845
    %v1086 = vpack.c.b16 %v854, %v846
    %v1087 = vpack.c.b16 %v855, %v847
    %v1088 = vpack.c.b16 %v864, %v856
    %v1089 = vpack.c.b16 %v865, %v857
    %v1090 = vpack.c.b16 %v866, %v858
    %v1091 = vpack.c.b16 %v867, %v859
    %v1092 = vpack.c.b16 %v868, %v860
    %v1093 = vpack.c.b16 %v869, %v861
    %v1094 = vpack.c.b16 %v870, %v862
    %v1095 = vpack.c.b16 %v871, %v863
    %v1096 = vpack.c.b16 %v880, %v872
    %v1097 = vpack.c.b16 %v881, %v873
    %v1098 = vpack.c.b16 %v882, %v874
    %v1099 = vpack.c.b16 %v883, %v875
    %v1100 = vpack.c.b16 %v884, %v876
    %v1101 = vpack.c.b16 %v885, %v877
    %v1102 = vpack.c.b16 %v886, %v878
    %v1103 = vpack.c.b16 %v887, %v879
    %v1104 = vpack.c.b16 %v896, %v888
    %v1105 = vpack.c.b16 %v897, %v889
    %v1106 = vpack.c.b16 %v898, %v890
    %v1107 = vpack.c.b16 %v899, %v891
    %v1108 = vpack.c.b16 %v900, %v892
    %v1109 = vpack.c.b16 %v901, %v893
    %v1110 = vpack.c.b16 %v902, %v894
    %v1111 = vpack.c.b16 %v903, %v895
    %v1112 = vpack.c.b16 %v912, %v904
    %v1113 = vpack.c.b16 %v913, %v905
    %v1114 = vpack.c.b16 %v914, %v906
    %v1115 = vpack.c.b16 %v915, %v907
    %v1116 = vpack.c.b16 %v916, %v908
    %v1117 = vpack.c.b16 %v917, %v909
    %v1118 = vpack.c.b16 %v918, %v910
    %v1119 = vpack.c.b16 %v919, %v911
    %v1120 = vpack.c.b16 %v928, %v920
    %v1121 = vpack.c.b16 %v929, %v921
    %v1122 = vpack.c.b16 %v930, %v922
    %v1123 = vpack.c.b16 %v931, %v923
    %v1124 = vpack.c.b16 %v932, %v924
    %v1125 = vpack.c.b16 %v933, %v925
    %v1126 = vpack.c.b16 %v934, %v926
    %v1127 = vpack.c.b16 %v935, %v927
    %v1128 = vpack.c.b16 %v944, %v936
    %v1129 = vpack.c.b16 %v945, %v937
    %v1130 = vpack.c.b16 %v946, %v938
    %v1131 = vpack.c.b16 %v947, %v939
    %v1132 = vpack.c.b16 %v948, %v940
    %v1133 = vpack.c.b16 %v949, %v941
    %v1134 = vpack.c.b16 %v950, %v942
    %v1135 = vpack.c.b16 %v951, %v943
    %v1136 = vpack.c.b16 %v960, %v952
    %v1137 = vpack.c.b16 %v961, %v953
    %v1138 = vpack.c.b16 %v962, %v954
    %v1139 = vpack.c.b16 %v963, %v955
    %v1140 = vpack.c.b16 %v964, %v956
    %v1141 = vpack.c.b16 %v965, %v957
    %v1142 = vpack.c.b16 %v966, %v958
    %v1143 = vpack.c.b16 %v967, %v959
    %v1144 = vpack.c.b16 %v976, %v968
    %v1145 = vpack.c.b16 %v977, %v969
    %v1146 = vpack.c.b16 %v978, %v970
    %v1147 = vpack.c.b16 %v979, %v971
    %v1148 = vpack.c.b16 %v980, %v972
    %v1149 = vpack.c.b16 %v981, %v973
    %v1150 = vpack.c.b16 %v982, %v974
    %v1151 = vpack.c.b16 %v983, %v975
    %v1152 = vpack.c.b16 %v992, %v984
    %v1153 = vpack.c.b16 %v993, %v985
    %v1154 = vpack.c.b16 %v994, %v986
    %v1155 = vpack.c.b16 %v995, %v987
    %v1156 = vpack.c.b16 %v996, %v988
    %v1157 = vpack.c.b16 %v997, %v989
    %v1158 = vpack.c.b16 %v998, %v990
    %v1159 = vpack.c.b16 %v999, %v991
    %v1160 = vpack.c.b16 %v1008, %v1000
    %v1161 = vpack.c.b16 %v1009, %v1001
    %v1162 = vpack.c.b16 %v1010, %v1002
    %v1163 = vpack.c.b16 %v1011, %v1003
    %v1164 = vpack.c.b16 %v1012, %v1004
    %v1165 = vpack.c.b16 %v1013, %v1005
    %v1166 = vpack.c.b16 %v1014, %v1006
    %v1167 = vpack.c.b16 %v1015, %v1007
    %v1168 = vpack.c.b16 %v1024, %v1016
    %v1169 = vpack.c.b16 %v1025, %v1017
    %v1170 = vpack.c.b16 %v1026, %v1018
    %v1171 = vpack.c.b16 %v1027, %v1019
    %v1172 = vpack.c.b16 %v1028, %v1020
    %v1173 = vpack.c.b16 %v1029, %v1021
    %v1174 = vpack.c.b16 %v1030, %v1022
    %v1175 = vpack.c.b16 %v1031, %v1023
    %v1176 = vpack.c.b16 %v1040, %v1032
    %v1177 = vpack.c.b16 %v1041, %v1033
    %v1178 = vpack.c.b16 %v1042, %v1034
    %v1179 = vpack.c.b16 %v1043, %v1035
    %v1180 = vpack.c.b16 %v1044, %v1036
    %v1181 = vpack.c.b16 %v1045, %v1037
    %v1182 = vpack.c.b16 %v1046, %v1038
    %v1183 = vpack.c.b16 %v1047, %v1039
    %v1184 = vpack.c.b16 %v1056, %v1048
    %v1185 = vpack.c.b16 %v1057, %v1049
    %v1186 = vpack.c.b16 %v1058, %v1050
    %v1187 = vpack.c.b16 %v1059, %v1051
    %v1188 = vpack.c.b16 %v1060, %v1052
    %v1189 = vpack.c.b16 %v1061, %v1053
    %v1190 = vpack.c.b16 %v1062, %v1054
    %v1191 = vpack.c.b16 %v1063, %v1055
    %1320 = vmatprep.subr.bf16.mxu0 %v1065
    %1321 = vmatpush1.bf16.msra.mxu0 %v1064
    %1322 = vmatprep.subr.bf16.mxu0 %v1073
    %1323 = vmatpush1.bf16.msra.mxu0 %v1072
    %1324 = vmatprep.subr.bf16.mxu0 %v1081
    %1325 = vmatpush1.bf16.msra.mxu0 %v1080
    %1326 = vmatprep.subr.bf16.mxu0 %v1089
    %1327 = vmatpush1.bf16.msra.mxu0 %v1088
    %1328 = vmatprep.subr.bf16.mxu0 %v1097
    %1329 = vmatpush1.bf16.msra.mxu0 %v1096
    %1330 = vmatprep.subr.bf16.mxu0 %v1105
    %1331 = vmatpush1.bf16.msra.mxu0 %v1104
    %1332 = vmatprep.subr.bf16.mxu0 %v1113
    %1333 = vmatpush1.bf16.msra.mxu0 %v1112
    %1334 = vmatprep.subr.bf16.mxu0 %v1121
    %1335 = vmatpush1.bf16.msra.mxu0 %v1120
    %1336 = vmatprep.subr.bf16.mxu0 %v1129
    %1337 = vmatpush1.bf16.msra.mxu0 %v1128
    %1338 = vmatprep.subr.bf16.mxu0 %v1137
    %1339 = vmatpush1.bf16.msra.mxu0 %v1136
    %1340 = vmatprep.subr.bf16.mxu0 %v1145
    %1341 = vmatpush1.bf16.msra.mxu0 %v1144
    %1342 = vmatprep.subr.bf16.mxu0 %v1153
    %1343 = vmatpush1.bf16.msra.mxu0 %v1152
    %1344 = vmatprep.subr.bf16.mxu0 %v1161
    %1345 = vmatpush1.bf16.msra.mxu0 %v1160
    %1346 = vmatprep.subr.bf16.mxu0 %v1169
    %1347 = vmatpush1.bf16.msra.mxu0 %v1168
    %1348 = vmatprep.subr.bf16.mxu0 %v1177
    %1349 = vmatpush1.bf16.msra.mxu0 %v1176
    %1350 = vmatprep.subr.bf16.mxu0 %v1185
    %1351 = vmatpush1.bf16.msra.mxu0 %v1184
    %1352 = vmatprep.mubr.bf16.mxu0 %v679
    %1353 = vmatmul.mubr.bf16.gmra.mrb[0].mxu0 %v678
    %v1354 = vpop.f32.mrb[0].mxu0
    %v1355 = vadd.f32 0.0, %v1354
    %v1356 = vpop.f32.mrb[0].mxu0
    %v1357 = vadd.f32 0.0, %v1356
    %v1358 = vpop.f32.mrb[0].mxu0
    %v1359 = vpop.f32.mrb[0].mxu0
    %1360 = vdwg.mxu0
    %1361 = vmatprep.subr.bf16.mxu0 %v1067
    %1362 = vmatpush1.bf16.msra.mxu0 %v1066
    %1363 = vmatprep.subr.bf16.mxu0 %v1075
    %1364 = vmatpush1.bf16.msra.mxu0 %v1074
    %1365 = vmatprep.subr.bf16.mxu0 %v1083
    %1366 = vmatpush1.bf16.msra.mxu0 %v1082
    %1367 = vmatprep.subr.bf16.mxu0 %v1091
    %1368 = vmatpush1.bf16.msra.mxu0 %v1090
    %1369 = vmatprep.subr.bf16.mxu0 %v1099
    %1370 = vmatpush1.bf16.msra.mxu0 %v1098
    %1371 = vmatprep.subr.bf16.mxu0 %v1107
    %1372 = vmatpush1.bf16.msra.mxu0 %v1106
    %1373 = vmatprep.subr.bf16.mxu0 %v1115
    %1374 = vmatpush1.bf16.msra.mxu0 %v1114
    %1375 = vmatprep.subr.bf16.mxu0 %v1123
    %1376 = vmatpush1.bf16.msra.mxu0 %v1122
    %1377 = vmatprep.subr.bf16.mxu0 %v1131
    %1378 = vmatpush1.bf16.msra.mxu0 %v1130
    %1379 = vmatprep.subr.bf16.mxu0 %v1139
    %1380 = vmatpush1.bf16.msra.mxu0 %v1138
    %1381 = vmatprep.subr.bf16.mxu0 %v1147
    %1382 = vmatpush1.bf16.msra.mxu0 %v1146
    %1383 = vmatprep.subr.bf16.mxu0 %v1155
    %1384 = vmatpush1.bf16.msra.mxu0 %v1154
    %1385 = vmatprep.subr.bf16.mxu0 %v1163
    %1386 = vmatpush1.bf16.msra.mxu0 %v1162
    %1387 = vmatprep.subr.bf16.mxu0 %v1171
    %1388 = vmatpush1.bf16.msra.mxu0 %v1170
    %1389 = vmatprep.subr.bf16.mxu0 %v1179
    %1390 = vmatpush1.bf16.msra.mxu0 %v1178
    %1391 = vmatprep.subr.bf16.mxu0 %v1187
    %1392 = vmatpush1.bf16.msra.mxu0 %v1186
    %1393 = vmatprep.mubr.bf16.mxu0 %v679
    %1394 = vmatmul.mubr.bf16.gmra.mrb[0].mxu0 %v678
    %v1395 = vpop.f32.mrb[0].mxu0
    %v1396 = vadd.f32 0.0, %v1395
    %v1397 = vpop.f32.mrb[0].mxu0
    %v1398 = vadd.f32 0.0, %v1397
    %v1399 = vpop.f32.mrb[0].mxu0
    %v1400 = vpop.f32.mrb[0].mxu0
    %1401 = vdwg.mxu0
    %1402 = vmatprep.subr.bf16.mxu0 %v1069
    %1403 = vmatpush1.bf16.msra.mxu0 %v1068
    %1404 = vmatprep.subr.bf16.mxu0 %v1077
    %1405 = vmatpush1.bf16.msra.mxu0 %v1076
    %1406 = vmatprep.subr.bf16.mxu0 %v1085
    %1407 = vmatpush1.bf16.msra.mxu0 %v1084
    %1408 = vmatprep.subr.bf16.mxu0 %v1093
    %1409 = vmatpush1.bf16.msra.mxu0 %v1092
    %1410 = vmatprep.subr.bf16.mxu0 %v1101
    %1411 = vmatpush1.bf16.msra.mxu0 %v1100
    %1412 = vmatprep.subr.bf16.mxu0 %v1109
    %1413 = vmatpush1.bf16.msra.mxu0 %v1108
    %1414 = vmatprep.subr.bf16.mxu0 %v1117
    %1415 = vmatpush1.bf16.msra.mxu0 %v1116
    %1416 = vmatprep.subr.bf16.mxu0 %v1125
    %1417 = vmatpush1.bf16.msra.mxu0 %v1124
    %1418 = vmatprep.subr.bf16.mxu0 %v1133
    %1419 = vmatpush1.bf16.msra.mxu0 %v1132
    %1420 = vmatprep.subr.bf16.mxu0 %v1141
    %1421 = vmatpush1.bf16.msra.mxu0 %v1140
    %1422 = vmatprep.subr.bf16.mxu0 %v1149
    %1423 = vmatpush1.bf16.msra.mxu0 %v1148
    %1424 = vmatprep.subr.bf16.mxu0 %v1157
    %1425 = vmatpush1.bf16.msra.mxu0 %v1156
    %1426 = vmatprep.subr.bf16.mxu0 %v1165
    %1427 = vmatpush1.bf16.msra.mxu0 %v1164
    %1428 = vmatprep.subr.bf16.mxu0 %v1173
    %1429 = vmatpush1.bf16.msra.mxu0 %v1172
    %1430 = vmatprep.subr.bf16.mxu0 %v1181
    %1431 = vmatpush1.bf16.msra.mxu0 %v1180
    %1432 = vmatprep.subr.bf16.mxu0 %v1189
    %1433 = vmatpush1.bf16.msra.mxu0 %v1188
    %1434 = vmatprep.mubr.bf16.mxu0 %v679
    %1435 = vmatmul.mubr.bf16.gmra.mrb[0].mxu0 %v678
    %v1436 = vpop.f32.mrb[0].mxu0
    %v1437 = vadd.f32 0.0, %v1436
    %v1438 = vpop.f32.mrb[0].mxu0
    %v1439 = vadd.f32 0.0, %v1438
    %v1440 = vpop.f32.mrb[0].mxu0
    %v1441 = vpop.f32.mrb[0].mxu0
    %1442 = vdwg.mxu0
    %1443 = vmatprep.subr.bf16.mxu0 %v1071
    %1444 = vmatpush1.bf16.msra.mxu0 %v1070
    %1445 = vmatprep.subr.bf16.mxu0 %v1079
    %1446 = vmatpush1.bf16.msra.mxu0 %v1078
    %1447 = vmatprep.subr.bf16.mxu0 %v1087
    %1448 = vmatpush1.bf16.msra.mxu0 %v1086
    %1449 = vmatprep.subr.bf16.mxu0 %v1095
    %1450 = vmatpush1.bf16.msra.mxu0 %v1094
    %1451 = vmatprep.subr.bf16.mxu0 %v1103
    %1452 = vmatpush1.bf16.msra.mxu0 %v1102
    %1453 = vmatprep.subr.bf16.mxu0 %v1111
    %1454 = vmatpush1.bf16.msra.mxu0 %v1110
    %1455 = vmatprep.subr.bf16.mxu0 %v1119
    %1456 = vmatpush1.bf16.msra.mxu0 %v1118
    %1457 = vmatprep.subr.bf16.mxu0 %v1127
    %1458 = vmatpush1.bf16.msra.mxu0 %v1126
    %1459 = vmatprep.subr.bf16.mxu0 %v1135
    %1460 = vmatpush1.bf16.msra.mxu0 %v1134
    %1461 = vmatprep.subr.bf16.mxu0 %v1143
    %1462 = vmatpush1.bf16.msra.mxu0 %v1142
    %1463 = vmatprep.subr.bf16.mxu0 %v1151
    %1464 = vmatpush1.bf16.msra.mxu0 %v1150
    %1465 = vmatprep.subr.bf16.mxu0 %v1159
    %1466 = vmatpush1.bf16.msra.mxu0 %v1158
    %1467 = vmatprep.subr.bf16.mxu0 %v1167
    %1468 = vmatpush1.bf16.msra.mxu0 %v1166
    %1469 = vmatprep.subr.bf16.mxu0 %v1175
    %1470 = vmatpush1.bf16.msra.mxu0 %v1174
    %1471 = vmatprep.subr.bf16.mxu0 %v1183
    %1472 = vmatpush1.bf16.msra.mxu0 %v1182
    %1473 = vmatprep.subr.bf16.mxu0 %v1191
    %1474 = vmatpush1.bf16.msra.mxu0 %v1190
    %1475 = vmatprep.mubr.bf16.mxu0 %v679
    %1476 = vmatmul.mubr.bf16.gmra.mrb[0].mxu0 %v678
    %v1477 = vpop.f32.mrb[0].mxu0
    %v1478 = vadd.f32 0.0, %v1477
    %v1479 = vpop.f32.mrb[0].mxu0
    %v1480 = vadd.f32 0.0, %v1479
    %v1481 = vpop.f32.mrb[0].mxu0
    %v1482 = vpop.f32.mrb[0].mxu0
    %1483 = vdwg.mxu0
    %v1484 = vadd.f32 %v1355, %v646
    %v1485 = vadd.f32 %v1357, %v647
    %v1486 = vadd.f32 %v1396, %v648
    %v1487 = vadd.f32 %v1398, %v649
    %v1488 = vxor.u32 %v1484, 2147483648
    %v1489 = vxor.u32 %v1485, 2147483648
    %v1490 = vxor.u32 %v1486, 2147483648
    %v1491 = vmul.f32 %v1488, 1.442695
    %v1492 = vpow.pop %v1491
    %v1493 = vmul.f32 %v1489, 1.442695
    %v1494 = vpow.pop %v1493
    %v1495 = vmul.f32 %v1490, 1.442695
    %v1496 = vpow.pop %v1495
    %v1497 = vadd.f32 %v1492, 1.0
    %v1498 = vadd.f32 %v1494, 1.0
    %v1499 = vadd.f32 %v1496, 1.0
    %v1500 = vrcp.pop %v1497
    %v1501 = vmul.f32 1.0, %v1500
    %v1502 = vrcp.pop %v1498
    %v1503 = vmul.f32 1.0, %v1502
    %v1504 = vrcp.pop %v1499
    %v1505 = vmul.f32 1.0, %v1504
    %v1506 = vtanh.pop %v1487
    %v1507 = vmul.f32 %v1503, 0.0
    %v1508 = vmul.f32 %v1501, %v1506
    %v1509 = vadd.f32 %v1507, %v1508
    %v1510 = vtanh.pop %v1509
    %v1511 = vmul.f32 %v1505, %v1510
    %v1512 = vld [vmem:[#allocation2 + $0x20] sm:$0xff]
    %v1513 = vld [vmem:[#allocation2 + $0x28] sm:$0xff]
    %v1514 = vld [vmem:[#allocation2 + $0x30] sm:$0xff]
    %v1515 = vld [vmem:[#allocation2 + $0x38] sm:$0xff]
    %v1516 = vadd.f32 %v1512, %v1437
    %v1517 = vadd.f32 %v1513, %v1439
    %v1518 = vadd.f32 %v1514, %v1478
    %v1519 = vadd.f32 %v1515, %v1480
    %v1520 = vxor.u32 %v1516, 2147483648
    %v1521 = vxor.u32 %v1517, 2147483648
    %v1522 = vxor.u32 %v1518, 2147483648
    %v1523 = vmul.f32 %v1520, 1.442695
    %v1524 = vpow.pop %v1523
    %v1525 = vmul.f32 %v1521, 1.442695
    %v1526 = vpow.pop %v1525
    %v1527 = vmul.f32 %v1522, 1.442695
    %v1528 = vpow.pop %v1527
    %v1529 = vadd.f32 %v1524, 1.0
    %v1530 = vadd.f32 %v1526, 1.0
    %v1531 = vadd.f32 %v1528, 1.0
    %v1532 = vrcp.pop %v1529
    %v1533 = vmul.f32 1.0, %v1532
    %v1534 = vrcp.pop %v1530
    %v1535 = vmul.f32 1.0, %v1534
    %v1536 = vrcp.pop %v1531
    %v1537 = vmul.f32 1.0, %v1536
    %v1538 = vtanh.pop %v1519
    %v1539 = vmul.f32 %v1535, %v675
    %v1540 = vmul.f32 %v1533, %v1538
    %v1541 = vadd.f32 %v1539, %v1540
    %v1542 = vtanh.pop %v1541
    %v1543 = vmul.f32 %v1537, %v1542
    %v1544 = vpack.c.bf16 %v1543, %v1543
    %v1545 = vpack.c.bf16 %v1511, %v1511
    %1546 = vmatprep.subr.bf16.mxu0 %v1065
    %1547 = vmatpush1.bf16.msra.mxu0 %v1064
    %1548 = vmatprep.subr.bf16.mxu0 %v1073
    %1549 = vmatpush1.bf16.msra.mxu0 %v1072
    %1550 = vmatprep.subr.bf16.mxu0 %v1081
    %1551 = vmatpush1.bf16.msra.mxu0 %v1080
    %1552 = vmatprep.subr.bf16.mxu0 %v1089
    %1553 = vmatpush1.bf16.msra.mxu0 %v1088
    %1554 = vmatprep.subr.bf16.mxu0 %v1097
    %1555 = vmatpush1.bf16.msra.mxu0 %v1096
    %1556 = vmatprep.subr.bf16.mxu0 %v1105
    %1557 = vmatpush1.bf16.msra.mxu0 %v1104
    %1558 = vmatprep.subr.bf16.mxu0 %v1113
    %1559 = vmatpush1.bf16.msra.mxu0 %v1112
    %1560 = vmatprep.subr.bf16.mxu0 %v1121
    %1561 = vmatpush1.bf16.msra.mxu0 %v1120
    %1562 = vmatprep.subr.bf16.mxu0 %v1129
    %1563 = vmatpush1.bf16.msra.mxu0 %v1128
    %1564 = vmatprep.subr.bf16.mxu0 %v1137
    %1565 = vmatpush1.bf16.msra.mxu0 %v1136
    %1566 = vmatprep.subr.bf16.mxu0 %v1145
    %1567 = vmatpush1.bf16.msra.mxu0 %v1144
    %1568 = vmatprep.subr.bf16.mxu0 %v1153
    %1569 = vmatpush1.bf16.msra.mxu0 %v1152
    %1570 = vmatprep.subr.bf16.mxu0 %v1161
    %1571 = vmatpush1.bf16.msra.mxu0 %v1160
    %1572 = vmatprep.subr.bf16.mxu0 %v1169
    %1573 = vmatpush1.bf16.msra.mxu0 %v1168
    %1574 = vmatprep.subr.bf16.mxu0 %v1177
    %1575 = vmatpush1.bf16.msra.mxu0 %v1176
    %1576 = vmatprep.subr.bf16.mxu0 %v1185
    %1577 = vmatpush1.bf16.msra.mxu0 %v1184
    %1578 = vmatprep.mubr.bf16.mxu0 %v1545
    %1579 = vmatmul.mubr.bf16.gmra.mrb[0].mxu0 %v1544
    %v1580 = vpop.f32.mrb[0].mxu0
    %v1581 = vadd.f32 0.0, %v1580
    %v1582 = vpop.f32.mrb[0].mxu0
    %v1583 = vadd.f32 0.0, %v1582
    %v1584 = vpop.f32.mrb[0].mxu0
    %v1585 = vpop.f32.mrb[0].mxu0
    %1586 = vdwg.mxu0
    %1587 = vmatprep.subr.bf16.mxu0 %v1067
    %1588 = vmatpush1.bf16.msra.mxu0 %v1066
    %1589 = vmatprep.subr.bf16.mxu0 %v1075
    %1590 = vmatpush1.bf16.msra.mxu0 %v1074
    %1591 = vmatprep.subr.bf16.mxu0 %v1083
    %1592 = vmatpush1.bf16.msra.mxu0 %v1082
    %1593 = vmatprep.subr.bf16.mxu0 %v1091
    %1594 = vmatpush1.bf16.msra.mxu0 %v1090
    %1595 = vmatprep.subr.bf16.mxu0 %v1099
    %1596 = vmatpush1.bf16.msra.mxu0 %v1098
    %1597 = vmatprep.subr.bf16.mxu0 %v1107
    %1598 = vmatpush1.bf16.msra.mxu0 %v1106
    %1599 = vmatprep.subr.bf16.mxu0 %v1115
    %1600 = vmatpush1.bf16.msra.mxu0 %v1114
    %1601 = vmatprep.subr.bf16.mxu0 %v1123
    %1602 = vmatpush1.bf16.msra.mxu0 %v1122
    %1603 = vmatprep.subr.bf16.mxu0 %v1131
    %1604 = vmatpush1.bf16.msra.mxu0 %v1130
    %1605 = vmatprep.subr.bf16.mxu0 %v1139
    %1606 = vmatpush1.bf16.msra.mxu0 %v1138
    %1607 = vmatprep.subr.bf16.mxu0 %v1147
    %1608 = vmatpush1.bf16.msra.mxu0 %v1146
    %1609 = vmatprep.subr.bf16.mxu0 %v1155
    %1610 = vmatpush1.bf16.msra.mxu0 %v1154
    %1611 = vmatprep.subr.bf16.mxu0 %v1163
    %1612 = vmatpush1.bf16.msra.mxu0 %v1162
    %1613 = vmatprep.subr.bf16.mxu0 %v1171
    %1614 = vmatpush1.bf16.msra.mxu0 %v1170
    %1615 = vmatprep.subr.bf16.mxu0 %v1179
    %1616 = vmatpush1.bf16.msra.mxu0 %v1178
    %1617 = vmatprep.subr.bf16.mxu0 %v1187
    %1618 = vmatpush1.bf16.msra.mxu0 %v1186
    %1619 = vmatprep.mubr.bf16.mxu0 %v1545
    %1620 = vmatmul.mubr.bf16.gmra.mrb[0].mxu0 %v1544
    %v1621 = vpop.f32.mrb[0].mxu0
    %v1622 = vadd.f32 0.0, %v1621
    %v1623 = vpop.f32.mrb[0].mxu0
    %v1624 = vadd.f32 0.0, %v1623
    %v1625 = vpop.f32.mrb[0].mxu0
    %v1626 = vpop.f32.mrb[0].mxu0
    %1627 = vdwg.mxu0
    %1628 = vmatprep.subr.bf16.mxu0 %v1069
    %1629 = vmatpush1.bf16.msra.mxu0 %v1068
    %1630 = vmatprep.subr.bf16.mxu0 %v1077
    %1631 = vmatpush1.bf16.msra.mxu0 %v1076
    %1632 = vmatprep.subr.bf16.mxu0 %v1085
    %1633 = vmatpush1.bf16.msra.mxu0 %v1084
    %1634 = vmatprep.subr.bf16.mxu0 %v1093
    %1635 = vmatpush1.bf16.msra.mxu0 %v1092
    %1636 = vmatprep.subr.bf16.mxu0 %v1101
    %1637 = vmatpush1.bf16.msra.mxu0 %v1100
    %1638 = vmatprep.subr.bf16.mxu0 %v1109
    %1639 = vmatpush1.bf16.msra.mxu0 %v1108
    %1640 = vmatprep.subr.bf16.mxu0 %v1117
    %1641 = vmatpush1.bf16.msra.mxu0 %v1116
    %1642 = vmatprep.subr.bf16.mxu0 %v1125
    %1643 = vmatpush1.bf16.msra.mxu0 %v1124
    %1644 = vmatprep.subr.bf16.mxu0 %v1133
    %1645 = vmatpush1.bf16.msra.mxu0 %v1132
    %1646 = vmatprep.subr.bf16.mxu0 %v1141
    %1647 = vmatpush1.bf16.msra.mxu0 %v1140
    %1648 = vmatprep.subr.bf16.mxu0 %v1149
    %1649 = vmatpush1.bf16.msra.mxu0 %v1148
    %1650 = vmatprep.subr.bf16.mxu0 %v1157
    %1651 = vmatpush1.bf16.msra.mxu0 %v1156
    %1652 = vmatprep.subr.bf16.mxu0 %v1165
    %1653 = vmatpush1.bf16.msra.mxu0 %v1164
    %1654 = vmatprep.subr.bf16.mxu0 %v1173
    %1655 = vmatpush1.bf16.msra.mxu0 %v1172
    %1656 = vmatprep.subr.bf16.mxu0 %v1181
    %1657 = vmatpush1.bf16.msra.mxu0 %v1180
    %1658 = vmatprep.subr.bf16.mxu0 %v1189
    %1659 = vmatpush1.bf16.msra.mxu0 %v1188
    %1660 = vmatprep.mubr.bf16.mxu0 %v1545
    %1661 = vmatmul.mubr.bf16.gmra.mrb[0].mxu0 %v1544
    %v1662 = vpop.f32.mrb[0].mxu0
    %v1663 = vadd.f32 0.0, %v1662
    %v1664 = vpop.f32.mrb[0].mxu0
    %v1665 = vadd.f32 0.0, %v1664
    %v1666 = vpop.f32.mrb[0].mxu0
    %v1667 = vpop.f32.mrb[0].mxu0
    %1668 = vdwg.mxu0
    %1669 = vmatprep.subr.bf16.mxu0 %v1071
    %1670 = vmatpush1.bf16.msra.mxu0 %v1070
    %1671 = vmatprep.subr.bf16.mxu0 %v1079
    %1672 = vmatpush1.bf16.msra.mxu0 %v1078
    %1673 = vmatprep.subr.bf16.mxu0 %v1087
    %1674 = vmatpush1.bf16.msra.mxu0 %v1086
    %1675 = vmatprep.subr.bf16.mxu0 %v1095
    %1676 = vmatpush1.bf16.msra.mxu0 %v1094
    %1677 = vmatprep.subr.bf16.mxu0 %v1103
    %1678 = vmatpush1.bf16.msra.mxu0 %v1102
    %1679 = vmatprep.subr.bf16.mxu0 %v1111
    %1680 = vmatpush1.bf16.msra.mxu0 %v1110
    %1681 = vmatprep.subr.bf16.mxu0 %v1119
    %1682 = vmatpush1.bf16.msra.mxu0 %v1118
    %1683 = vmatprep.subr.bf16.mxu0 %v1127
    %1684 = vmatpush1.bf16.msra.mxu0 %v1126
    %1685 = vmatprep.subr.bf16.mxu0 %v1135
    %1686 = vmatpush1.bf16.msra.mxu0 %v1134
    %1687 = vmatprep.subr.bf16.mxu0 %v1143
    %1688 = vmatpush1.bf16.msra.mxu0 %v1142
    %1689 = vmatprep.subr.bf16.mxu0 %v1151
    %1690 = vmatpush1.bf16.msra.mxu0 %v1150
    %1691 = vmatprep.subr.bf16.mxu0 %v1159
    %1692 = vmatpush1.bf16.msra.mxu0 %v1158
    %1693 = vmatprep.subr.bf16.mxu0 %v1167
    %1694 = vmatpush1.bf16.msra.mxu0 %v1166
    %1695 = vmatprep.subr.bf16.mxu0 %v1175
    %1696 = vmatpush1.bf16.msra.mxu0 %v1174
    %1697 = vmatprep.subr.bf16.mxu0 %v1183
    %1698 = vmatpush1.bf16.msra.mxu0 %v1182
    %1699 = vmatprep.subr.bf16.mxu0 %v1191
    %1700 = vmatpush1.bf16.msra.mxu0 %v1190
    %1701 = vmatprep.mubr.bf16.mxu0 %v1545
    %1702 = vmatmul.mubr.bf16.gmra.mrb[0].mxu0 %v1544
    %v1703 = vpop.f32.mrb[0].mxu0
    %v1704 = vadd.f32 0.0, %v1703
    %v1705 = vpop.f32.mrb[0].mxu0
    %v1706 = vadd.f32 0.0, %v1705
    %v1707 = vpop.f32.mrb[0].mxu0
    %v1708 = vpop.f32.mrb[0].mxu0
    %1709 = vdwg.mxu0
    %v1710 = vadd.f32 %v1581, %v646
    %v1711 = vadd.f32 %v1583, %v647
    %v1712 = vadd.f32 %v1622, %v648
    %v1713 = vadd.f32 %v1624, %v649
    %v1714 = vxor.u32 %v1710, 2147483648
    %v1715 = vxor.u32 %v1711, 2147483648
    %v1716 = vxor.u32 %v1712, 2147483648
    %v1717 = vmul.f32 %v1714, 1.442695
    %v1718 = vpow.pop %v1717
    %v1719 = vmul.f32 %v1715, 1.442695
    %v1720 = vpow.pop %v1719
    %v1721 = vmul.f32 %v1716, 1.442695
    %v1722 = vpow.pop %v1721
    %v1723 = vadd.f32 %v1718, 1.0
    %v1724 = vadd.f32 %v1720, 1.0
    %v1725 = vadd.f32 %v1722, 1.0
    %v1726 = vrcp.pop %v1723
    %v1727 = vmul.f32 1.0, %v1726
    %v1728 = vrcp.pop %v1724
    %v1729 = vmul.f32 1.0, %v1728
    %v1730 = vrcp.pop %v1725
    %v1731 = vmul.f32 1.0, %v1730
    %v1732 = vtanh.pop %v1713
    %v1733 = vmul.f32 %v1729, %v1509
    %v1734 = vmul.f32 %v1727, %v1732
    %v1735 = vadd.f32 %v1733, %v1734
    %v1736 = vtanh.pop %v1735
    %v1737 = vmul.f32 %v1731, %v1736
    %v1738 = vld [vmem:[#allocation2 + $0x40] sm:$0xff]
    %v1739 = vld [vmem:[#allocation2 + $0x48] sm:$0xff]
    %v1740 = vld [vmem:[#allocation2 + $0x50] sm:$0xff]
    %v1741 = vld [vmem:[#allocation2 + $0x58] sm:$0xff]
    %v1742 = vadd.f32 %v1738, %v1663
    %v1743 = vadd.f32 %v1739, %v1665
    %v1744 = vadd.f32 %v1740, %v1704
    %v1745 = vadd.f32 %v1741, %v1706
    %v1746 = vxor.u32 %v1742, 2147483648
    %v1747 = vxor.u32 %v1743, 2147483648
    %v1748 = vxor.u32 %v1744, 2147483648
    %v1749 = vmul.f32 %v1746, 1.442695
    %v1750 = vpow.pop %v1749
    %v1751 = vmul.f32 %v1747, 1.442695
    %v1752 = vpow.pop %v1751
    %v1753 = vmul.f32 %v1748, 1.442695
    %v1754 = vpow.pop %v1753
    %v1755 = vadd.f32 %v1750, 1.0
    %v1756 = vadd.f32 %v1752, 1.0
    %v1757 = vadd.f32 %v1754, 1.0
    %v1758 = vrcp.pop %v1755
    %v1759 = vmul.f32 1.0, %v1758
    %v1760 = vrcp.pop %v1756
    %v1761 = vmul.f32 1.0, %v1760
    %v1762 = vrcp.pop %v1757
    %v1763 = vmul.f32 1.0, %v1762
    %v1764 = vtanh.pop %v1745
    %v1765 = vmul.f32 %v1761, %v1541
    %v1766 = vmul.f32 %v1759, %v1764
    %v1767 = vadd.f32 %v1765, %v1766
    %v1768 = vtanh.pop %v1767
    %v1769 = vmul.f32 %v1763, %v1768
    %v1770 = vpack.c.bf16 %v1769, %v1769
    %v1771 = vpack.c.bf16 %v1737, %v1737
    %1772 = vmatprep.subr.bf16.mxu0 %v1065
    %1773 = vmatpush1.bf16.msra.mxu0 %v1064
    %1774 = vmatprep.subr.bf16.mxu0 %v1073
    %1775 = vmatpush1.bf16.msra.mxu0 %v1072
    %1776 = vmatprep.subr.bf16.mxu0 %v1081
    %1777 = vmatpush1.bf16.msra.mxu0 %v1080
    %1778 = vmatprep.subr.bf16.mxu0 %v1089
    %1779 = vmatpush1.bf16.msra.mxu0 %v1088
    %1780 = vmatprep.subr.bf16.mxu0 %v1097
    %1781 = vmatpush1.bf16.msra.mxu0 %v1096
    %1782 = vmatprep.subr.bf16.mxu0 %v1105
    %1783 = vmatpush1.bf16.msra.mxu0 %v1104
    %1784 = vmatprep.subr.bf16.mxu0 %v1113
    %1785 = vmatpush1.bf16.msra.mxu0 %v1112
    %1786 = vmatprep.subr.bf16.mxu0 %v1121
    %1787 = vmatpush1.bf16.msra.mxu0 %v1120
    %1788 = vmatprep.subr.bf16.mxu0 %v1129
    %1789 = vmatpush1.bf16.msra.mxu0 %v1128
    %1790 = vmatprep.subr.bf16.mxu0 %v1137
    %1791 = vmatpush1.bf16.msra.mxu0 %v1136
    %1792 = vmatprep.subr.bf16.mxu0 %v1145
    %1793 = vmatpush1.bf16.msra.mxu0 %v1144
    %1794 = vmatprep.subr.bf16.mxu0 %v1153
    %1795 = vmatpush1.bf16.msra.mxu0 %v1152
    %1796 = vmatprep.subr.bf16.mxu0 %v1161
    %1797 = vmatpush1.bf16.msra.mxu0 %v1160
    %1798 = vmatprep.subr.bf16.mxu0 %v1169
    %1799 = vmatpush1.bf16.msra.mxu0 %v1168
    %1800 = vmatprep.subr.bf16.mxu0 %v1177
    %1801 = vmatpush1.bf16.msra.mxu0 %v1176
    %1802 = vmatprep.subr.bf16.mxu0 %v1185
    %1803 = vmatpush1.bf16.msra.mxu0 %v1184
    %1804 = vmatprep.mubr.bf16.mxu0 %v1771
    %1805 = vmatmul.mubr.bf16.gmra.mrb[0].mxu0 %v1770
    %v1806 = vpop.f32.mrb[0].mxu0
    %v1807 = vadd.f32 0.0, %v1806
    %v1808 = vpop.f32.mrb[0].mxu0
    %v1809 = vadd.f32 0.0, %v1808
    %v1810 = vpop.f32.mrb[0].mxu0
    %v1811 = vpop.f32.mrb[0].mxu0
    %1812 = vdwg.mxu0
    %1813 = vmatprep.subr.bf16.mxu0 %v1067
    %1814 = vmatpush1.bf16.msra.mxu0 %v1066
    %1815 = vmatprep.subr.bf16.mxu0 %v1075
    %1816 = vmatpush1.bf16.msra.mxu0 %v1074
    %1817 = vmatprep.subr.bf16.mxu0 %v1083
    %1818 = vmatpush1.bf16.msra.mxu0 %v1082
    %1819 = vmatprep.subr.bf16.mxu0 %v1091
    %1820 = vmatpush1.bf16.msra.mxu0 %v1090
    %1821 = vmatprep.subr.bf16.mxu0 %v1099
    %1822 = vmatpush1.bf16.msra.mxu0 %v1098
    %1823 = vmatprep.subr.bf16.mxu0 %v1107
    %1824 = vmatpush1.bf16.msra.mxu0 %v1106
    %1825 = vmatprep.subr.bf16.mxu0 %v1115
    %1826 = vmatpush1.bf16.msra.mxu0 %v1114
    %1827 = vmatprep.subr.bf16.mxu0 %v1123
    %1828 = vmatpush1.bf16.msra.mxu0 %v1122
    %1829 = vmatprep.subr.bf16.mxu0 %v1131
    %1830 = vmatpush1.bf16.msra.mxu0 %v1130
    %1831 = vmatprep.subr.bf16.mxu0 %v1139
    %1832 = vmatpush1.bf16.msra.mxu0 %v1138
    %1833 = vmatprep.subr.bf16.mxu0 %v1147
    %1834 = vmatpush1.bf16.msra.mxu0 %v1146
    %1835 = vmatprep.subr.bf16.mxu0 %v1155
    %1836 = vmatpush1.bf16.msra.mxu0 %v1154
    %1837 = vmatprep.subr.bf16.mxu0 %v1163
    %1838 = vmatpush1.bf16.msra.mxu0 %v1162
    %1839 = vmatprep.subr.bf16.mxu0 %v1171
    %1840 = vmatpush1.bf16.msra.mxu0 %v1170
    %1841 = vmatprep.subr.bf16.mxu0 %v1179
    %1842 = vmatpush1.bf16.msra.mxu0 %v1178
    %1843 = vmatprep.subr.bf16.mxu0 %v1187
    %1844 = vmatpush1.bf16.msra.mxu0 %v1186
    %1845 = vmatprep.mubr.bf16.mxu0 %v1771
    %1846 = vmatmul.mubr.bf16.gmra.mrb[0].mxu0 %v1770
    %v1847 = vpop.f32.mrb[0].mxu0
    %v1848 = vadd.f32 0.0, %v1847
    %v1849 = vpop.f32.mrb[0].mxu0
    %v1850 = vadd.f32 0.0, %v1849
    %v1851 = vpop.f32.mrb[0].mxu0
    %v1852 = vpop.f32.mrb[0].mxu0
    %1853 = vdwg.mxu0
    %1854 = vmatprep.subr.bf16.mxu0 %v1069
    %1855 = vmatpush1.bf16.msra.mxu0 %v1068
    %1856 = vmatprep.subr.bf16.mxu0 %v1077
    %1857 = vmatpush1.bf16.msra.mxu0 %v1076
    %1858 = vmatprep.subr.bf16.mxu0 %v1085
    %1859 = vmatpush1.bf16.msra.mxu0 %v1084
    %1860 = vmatprep.subr.bf16.mxu0 %v1093
    %1861 = vmatpush1.bf16.msra.mxu0 %v1092
    %1862 = vmatprep.subr.bf16.mxu0 %v1101
    %1863 = vmatpush1.bf16.msra.mxu0 %v1100
    %1864 = vmatprep.subr.bf16.mxu0 %v1109
    %1865 = vmatpush1.bf16.msra.mxu0 %v1108
    %1866 = vmatprep.subr.bf16.mxu0 %v1117
    %1867 = vmatpush1.bf16.msra.mxu0 %v1116
    %1868 = vmatprep.subr.bf16.mxu0 %v1125
    %1869 = vmatpush1.bf16.msra.mxu0 %v1124
    %1870 = vmatprep.subr.bf16.mxu0 %v1133
    %1871 = vmatpush1.bf16.msra.mxu0 %v1132
    %1872 = vmatprep.subr.bf16.mxu0 %v1141
    %1873 = vmatpush1.bf16.msra.mxu0 %v1140
    %1874 = vmatprep.subr.bf16.mxu0 %v1149
    %1875 = vmatpush1.bf16.msra.mxu0 %v1148
    %1876 = vmatprep.subr.bf16.mxu0 %v1157
    %1877 = vmatpush1.bf16.msra.mxu0 %v1156
    %1878 = vmatprep.subr.bf16.mxu0 %v1165
    %1879 = vmatpush1.bf16.msra.mxu0 %v1164
    %1880 = vmatprep.subr.bf16.mxu0 %v1173
    %1881 = vmatpush1.bf16.msra.mxu0 %v1172
    %1882 = vmatprep.subr.bf16.mxu0 %v1181
    %1883 = vmatpush1.bf16.msra.mxu0 %v1180
    %1884 = vmatprep.subr.bf16.mxu0 %v1189
    %1885 = vmatpush1.bf16.msra.mxu0 %v1188
    %1886 = vmatprep.mubr.bf16.mxu0 %v1771
    %1887 = vmatmul.mubr.bf16.gmra.mrb[0].mxu0 %v1770
    %v1888 = vpop.f32.mrb[0].mxu0
    %v1889 = vadd.f32 0.0, %v1888
    %v1890 = vpop.f32.mrb[0].mxu0
    %v1891 = vadd.f32 0.0, %v1890
    %v1892 = vpop.f32.mrb[0].mxu0
    %v1893 = vpop.f32.mrb[0].mxu0
    %1894 = vdwg.mxu0
    %1895 = vmatprep.subr.bf16.mxu0 %v1071
    %1896 = vmatpush1.bf16.msra.mxu0 %v1070
    %1897 = vmatprep.subr.bf16.mxu0 %v1079
    %1898 = vmatpush1.bf16.msra.mxu0 %v1078
    %1899 = vmatprep.subr.bf16.mxu0 %v1087
    %1900 = vmatpush1.bf16.msra.mxu0 %v1086
    %1901 = vmatprep.subr.bf16.mxu0 %v1095
    %1902 = vmatpush1.bf16.msra.mxu0 %v1094
    %1903 = vmatprep.subr.bf16.mxu0 %v1103
    %1904 = vmatpush1.bf16.msra.mxu0 %v1102
    %1905 = vmatprep.subr.bf16.mxu0 %v1111
    %1906 = vmatpush1.bf16.msra.mxu0 %v1110
    %1907 = vmatprep.subr.bf16.mxu0 %v1119
    %1908 = vmatpush1.bf16.msra.mxu0 %v1118
    %1909 = vmatprep.subr.bf16.mxu0 %v1127
    %1910 = vmatpush1.bf16.msra.mxu0 %v1126
    %1911 = vmatprep.subr.bf16.mxu0 %v1135
    %1912 = vmatpush1.bf16.msra.mxu0 %v1134
    %1913 = vmatprep.subr.bf16.mxu0 %v1143
    %1914 = vmatpush1.bf16.msra.mxu0 %v1142
    %1915 = vmatprep.subr.bf16.mxu0 %v1151
    %1916 = vmatpush1.bf16.msra.mxu0 %v1150
    %1917 = vmatprep.subr.bf16.mxu0 %v1159
    %1918 = vmatpush1.bf16.msra.mxu0 %v1158
    %1919 = vmatprep.subr.bf16.mxu0 %v1167
    %1920 = vmatpush1.bf16.msra.mxu0 %v1166
    %1921 = vmatprep.subr.bf16.mxu0 %v1175
    %1922 = vmatpush1.bf16.msra.mxu0 %v1174
    %1923 = vmatprep.subr.bf16.mxu0 %v1183
    %1924 = vmatpush1.bf16.msra.mxu0 %v1182
    %1925 = vmatprep.subr.bf16.mxu0 %v1191
    %1926 = vmatpush1.bf16.msra.mxu0 %v1190
    %1927 = vmatprep.mubr.bf16.mxu0 %v1771
    %1928 = vmatmul.mubr.bf16.gmra.mrb[0].mxu0 %v1770
    %v1929 = vpop.f32.mrb[0].mxu0
    %v1930 = vadd.f32 0.0, %v1929
    %v1931 = vpop.f32.mrb[0].mxu0
    %v1932 = vadd.f32 0.0, %v1931
    %v1933 = vpop.f32.mrb[0].mxu0
    %v1934 = vpop.f32.mrb[0].mxu0
    %1935 = vdwg.mxu0
    %v1936 = vadd.f32 %v1807, %v646
    %v1937 = vadd.f32 %v1809, %v647
    %v1938 = vadd.f32 %v1848, %v648
    %v1939 = vadd.f32 %v1850, %v649
    %v1940 = vxor.u32 %v1936, 2147483648
    %v1941 = vxor.u32 %v1937, 2147483648
    %v1942 = vxor.u32 %v1938, 2147483648
    %v1943 = vmul.f32 %v1940, 1.442695
    %v1944 = vpow.pop %v1943
    %v1945 = vmul.f32 %v1941, 1.442695
    %v1946 = vpow.pop %v1945
    %v1947 = vmul.f32 %v1942, 1.442695
    %v1948 = vpow.pop %v1947
    %v1949 = vadd.f32 %v1944, 1.0
    %v1950 = vadd.f32 %v1946, 1.0
    %v1951 = vadd.f32 %v1948, 1.0
    %v1952 = vrcp.pop %v1949
    %v1953 = vmul.f32 1.0, %v1952
    %v1954 = vrcp.pop %v1950
    %v1955 = vmul.f32 1.0, %v1954
    %v1956 = vrcp.pop %v1951
    %v1957 = vmul.f32 1.0, %v1956
    %v1958 = vtanh.pop %v1939
    %v1959 = vmul.f32 %v1955, %v1735
    %v1960 = vmul.f32 %v1953, %v1958
    %v1961 = vadd.f32 %v1959, %v1960
    %v1962 = vtanh.pop %v1961
    %v1963 = vmul.f32 %v1957, %v1962
    %v1964 = vld [vmem:[#allocation2 + $0x60] sm:$0xff]
    %v1965 = vld [vmem:[#allocation2 + $0x68] sm:$0xff]
    %v1966 = vld [vmem:[#allocation2 + $0x70] sm:$0xff]
    %v1967 = vld [vmem:[#allocation2 + $0x78] sm:$0xff]
    %v1968 = vadd.f32 %v1964, %v1889
    %v1969 = vadd.f32 %v1965, %v1891
    %v1970 = vadd.f32 %v1966, %v1930
    %v1971 = vadd.f32 %v1967, %v1932
    %v1972 = vxor.u32 %v1968, 2147483648
    %v1973 = vxor.u32 %v1969, 2147483648
    %v1974 = vxor.u32 %v1970, 2147483648
    %v1975 = vmul.f32 %v1972, 1.442695
    %v1976 = vpow.pop %v1975
    %v1977 = vmul.f32 %v1973, 1.442695
    %v1978 = vpow.pop %v1977
    %v1979 = vmul.f32 %v1974, 1.442695
    %v1980 = vpow.pop %v1979
    %v1981 = vadd.f32 %v1976, 1.0
    %v1982 = vadd.f32 %v1978, 1.0
    %v1983 = vadd.f32 %v1980, 1.0
    %v1984 = vrcp.pop %v1981
    %v1985 = vmul.f32 1.0, %v1984
    %v1986 = vrcp.pop %v1982
    %v1987 = vmul.f32 1.0, %v1986
    %v1988 = vrcp.pop %v1983
    %v1989 = vmul.f32 1.0, %v1988
    %v1990 = vtanh.pop %v1971
    %v1991 = vmul.f32 %v1987, %v1767
    %v1992 = vmul.f32 %v1985, %v1990
    %v1993 = vadd.f32 %v1991, %v1992
    %v1994 = vtanh.pop %v1993
    %v1995 = vmul.f32 %v1989, %v1994
    %v1996 = vpack.c.bf16 %v1995, %v1995
    %v1997 = vpack.c.bf16 %v1963, %v1963
    %1998 = vmatprep.subr.bf16.mxu0 %v1065
    %1999 = vmatpush1.bf16.msra.mxu0 %v1064
    %2000 = vmatprep.subr.bf16.mxu0 %v1073
    %2001 = vmatpush1.bf16.msra.mxu0 %v1072
    %2002 = vmatprep.subr.bf16.mxu0 %v1081
    %2003 = vmatpush1.bf16.msra.mxu0 %v1080
    %2004 = vmatprep.subr.bf16.mxu0 %v1089
    %2005 = vmatpush1.bf16.msra.mxu0 %v1088
    %2006 = vmatprep.subr.bf16.mxu0 %v1097
    %2007 = vmatpush1.bf16.msra.mxu0 %v1096
    %2008 = vmatprep.subr.bf16.mxu0 %v1105
    %2009 = vmatpush1.bf16.msra.mxu0 %v1104
    %2010 = vmatprep.subr.bf16.mxu0 %v1113
    %2011 = vmatpush1.bf16.msra.mxu0 %v1112
    %2012 = vmatprep.subr.bf16.mxu0 %v1121
    %2013 = vmatpush1.bf16.msra.mxu0 %v1120
    %2014 = vmatprep.subr.bf16.mxu0 %v1129
    %2015 = vmatpush1.bf16.msra.mxu0 %v1128
    %2016 = vmatprep.subr.bf16.mxu0 %v1137
    %2017 = vmatpush1.bf16.msra.mxu0 %v1136
    %2018 = vmatprep.subr.bf16.mxu0 %v1145
    %2019 = vmatpush1.bf16.msra.mxu0 %v1144
    %2020 = vmatprep.subr.bf16.mxu0 %v1153
    %2021 = vmatpush1.bf16.msra.mxu0 %v1152
    %2022 = vmatprep.subr.bf16.mxu0 %v1161
    %2023 = vmatpush1.bf16.msra.mxu0 %v1160
    %2024 = vmatprep.subr.bf16.mxu0 %v1169
    %2025 = vmatpush1.bf16.msra.mxu0 %v1168
    %2026 = vmatprep.subr.bf16.mxu0 %v1177
    %2027 = vmatpush1.bf16.msra.mxu0 %v1176
    %2028 = vmatprep.subr.bf16.mxu0 %v1185
    %2029 = vmatpush1.bf16.msra.mxu0 %v1184
    %2030 = vmatprep.mubr.bf16.mxu0 %v1997
    %2031 = vmatmul.mubr.bf16.gmra.mrb[0].mxu0 %v1996
    %v2032 = vpop.f32.mrb[0].mxu0
    %v2033 = vadd.f32 0.0, %v2032
    %v2034 = vpop.f32.mrb[0].mxu0
    %v2035 = vadd.f32 0.0, %v2034
    %v2036 = vpop.f32.mrb[0].mxu0
    %v2037 = vpop.f32.mrb[0].mxu0
    %2038 = vdwg.mxu0
    %2039 = vmatprep.subr.bf16.mxu0 %v1067
    %2040 = vmatpush1.bf16.msra.mxu0 %v1066
    %2041 = vmatprep.subr.bf16.mxu0 %v1075
    %2042 = vmatpush1.bf16.msra.mxu0 %v1074
    %2043 = vmatprep.subr.bf16.mxu0 %v1083
    %2044 = vmatpush1.bf16.msra.mxu0 %v1082
    %2045 = vmatprep.subr.bf16.mxu0 %v1091
    %2046 = vmatpush1.bf16.msra.mxu0 %v1090
    %2047 = vmatprep.subr.bf16.mxu0 %v1099
    %2048 = vmatpush1.bf16.msra.mxu0 %v1098
    %2049 = vmatprep.subr.bf16.mxu0 %v1107
    %2050 = vmatpush1.bf16.msra.mxu0 %v1106
    %2051 = vmatprep.subr.bf16.mxu0 %v1115
    %2052 = vmatpush1.bf16.msra.mxu0 %v1114
    %2053 = vmatprep.subr.bf16.mxu0 %v1123
    %2054 = vmatpush1.bf16.msra.mxu0 %v1122
    %2055 = vmatprep.subr.bf16.mxu0 %v1131
    %2056 = vmatpush1.bf16.msra.mxu0 %v1130
    %2057 = vmatprep.subr.bf16.mxu0 %v1139
    %2058 = vmatpush1.bf16.msra.mxu0 %v1138
    %2059 = vmatprep.subr.bf16.mxu0 %v1147
    %2060 = vmatpush1.bf16.msra.mxu0 %v1146
    %2061 = vmatprep.subr.bf16.mxu0 %v1155
    %2062 = vmatpush1.bf16.msra.mxu0 %v1154
    %2063 = vmatprep.subr.bf16.mxu0 %v1163
    %2064 = vmatpush1.bf16.msra.mxu0 %v1162
    %2065 = vmatprep.subr.bf16.mxu0 %v1171
    %2066 = vmatpush1.bf16.msra.mxu0 %v1170
    %2067 = vmatprep.subr.bf16.mxu0 %v1179
    %2068 = vmatpush1.bf16.msra.mxu0 %v1178
    %2069 = vmatprep.subr.bf16.mxu0 %v1187
    %2070 = vmatpush1.bf16.msra.mxu0 %v1186
    %2071 = vmatprep.mubr.bf16.mxu0 %v1997
    %2072 = vmatmul.mubr.bf16.gmra.mrb[0].mxu0 %v1996
    %v2073 = vpop.f32.mrb[0].mxu0
    %v2074 = vadd.f32 0.0, %v2073
    %v2075 = vpop.f32.mrb[0].mxu0
    %v2076 = vadd.f32 0.0, %v2075
    %v2077 = vpop.f32.mrb[0].mxu0
    %v2078 = vpop.f32.mrb[0].mxu0
    %2079 = vdwg.mxu0
    %2080 = vmatprep.subr.bf16.mxu0 %v1069
    %2081 = vmatpush1.bf16.msra.mxu0 %v1068
    %2082 = vmatprep.subr.bf16.mxu0 %v1077
    %2083 = vmatpush1.bf16.msra.mxu0 %v1076
    %2084 = vmatprep.subr.bf16.mxu0 %v1085
    %2085 = vmatpush1.bf16.msra.mxu0 %v1084
    %2086 = vmatprep.subr.bf16.mxu0 %v1093
    %2087 = vmatpush1.bf16.msra.mxu0 %v1092
    %2088 = vmatprep.subr.bf16.mxu0 %v1101
    %2089 = vmatpush1.bf16.msra.mxu0 %v1100
    %2090 = vmatprep.subr.bf16.mxu0 %v1109
    %2091 = vmatpush1.bf16.msra.mxu0 %v1108
    %2092 = vmatprep.subr.bf16.mxu0 %v1117
    %2093 = vmatpush1.bf16.msra.mxu0 %v1116
    %2094 = vmatprep.subr.bf16.mxu0 %v1125
    %2095 = vmatpush1.bf16.msra.mxu0 %v1124
    %2096 = vmatprep.subr.bf16.mxu0 %v1133
    %2097 = vmatpush1.bf16.msra.mxu0 %v1132
    %2098 = vmatprep.subr.bf16.mxu0 %v1141
    %2099 = vmatpush1.bf16.msra.mxu0 %v1140
    %2100 = vmatprep.subr.bf16.mxu0 %v1149
    %2101 = vmatpush1.bf16.msra.mxu0 %v1148
    %2102 = vmatprep.subr.bf16.mxu0 %v1157
    %2103 = vmatpush1.bf16.msra.mxu0 %v1156
    %2104 = vmatprep.subr.bf16.mxu0 %v1165
    %2105 = vmatpush1.bf16.msra.mxu0 %v1164
    %2106 = vmatprep.subr.bf16.mxu0 %v1173
    %2107 = vmatpush1.bf16.msra.mxu0 %v1172
    %2108 = vmatprep.subr.bf16.mxu0 %v1181
    %2109 = vmatpush1.bf16.msra.mxu0 %v1180
    %2110 = vmatprep.subr.bf16.mxu0 %v1189
    %2111 = vmatpush1.bf16.msra.mxu0 %v1188
    %2112 = vmatprep.mubr.bf16.mxu0 %v1997
    %2113 = vmatmul.mubr.bf16.gmra.mrb[0].mxu0 %v1996
    %v2114 = vpop.f32.mrb[0].mxu0
    %v2115 = vadd.f32 0.0, %v2114
    %v2116 = vpop.f32.mrb[0].mxu0
    %v2117 = vadd.f32 0.0, %v2116
    %v2118 = vpop.f32.mrb[0].mxu0
    %v2119 = vpop.f32.mrb[0].mxu0
    %2120 = vdwg.mxu0
    %2121 = vmatprep.subr.bf16.mxu0 %v1071
    %2122 = vmatpush1.bf16.msra.mxu0 %v1070
    %2123 = vmatprep.subr.bf16.mxu0 %v1079
    %2124 = vmatpush1.bf16.msra.mxu0 %v1078
    %2125 = vmatprep.subr.bf16.mxu0 %v1087
    %2126 = vmatpush1.bf16.msra.mxu0 %v1086
    %2127 = vmatprep.subr.bf16.mxu0 %v1095
    %2128 = vmatpush1.bf16.msra.mxu0 %v1094
    %2129 = vmatprep.subr.bf16.mxu0 %v1103
    %2130 = vmatpush1.bf16.msra.mxu0 %v1102
    %2131 = vmatprep.subr.bf16.mxu0 %v1111
    %2132 = vmatpush1.bf16.msra.mxu0 %v1110
    %2133 = vmatprep.subr.bf16.mxu0 %v1119
    %2134 = vmatpush1.bf16.msra.mxu0 %v1118
    %2135 = vmatprep.subr.bf16.mxu0 %v1127
    %2136 = vmatpush1.bf16.msra.mxu0 %v1126
    %2137 = vmatprep.subr.bf16.mxu0 %v1135
    %2138 = vmatpush1.bf16.msra.mxu0 %v1134
    %2139 = vmatprep.subr.bf16.mxu0 %v1143
    %2140 = vmatpush1.bf16.msra.mxu0 %v1142
    %2141 = vmatprep.subr.bf16.mxu0 %v1151
    %2142 = vmatpush1.bf16.msra.mxu0 %v1150
    %2143 = vmatprep.subr.bf16.mxu0 %v1159
    %2144 = vmatpush1.bf16.msra.mxu0 %v1158
    %2145 = vmatprep.subr.bf16.mxu0 %v1167
    %2146 = vmatpush1.bf16.msra.mxu0 %v1166
    %2147 = vmatprep.subr.bf16.mxu0 %v1175
    %2148 = vmatpush1.bf16.msra.mxu0 %v1174
    %2149 = vmatprep.subr.bf16.mxu0 %v1183
    %2150 = vmatpush1.bf16.msra.mxu0 %v1182
    %2151 = vmatprep.subr.bf16.mxu0 %v1191
    %2152 = vmatpush1.bf16.msra.mxu0 %v1190
    %2153 = vmatprep.mubr.bf16.mxu0 %v1997
    %2154 = vmatmul.mubr.bf16.gmra.mrb[0].mxu0 %v1996
    %v2155 = vpop.f32.mrb[0].mxu0
    %v2156 = vadd.f32 0.0, %v2155
    %v2157 = vpop.f32.mrb[0].mxu0
    %v2158 = vadd.f32 0.0, %v2157
    %v2159 = vpop.f32.mrb[0].mxu0
    %v2160 = vpop.f32.mrb[0].mxu0
    %2161 = vdwg.mxu0
    %v2162 = vadd.f32 %v2033, %v646
    %v2163 = vadd.f32 %v2035, %v647
    %v2164 = vadd.f32 %v2074, %v648
    %v2165 = vadd.f32 %v2076, %v649
    %v2166 = vxor.u32 %v2162, 2147483648
    %v2167 = vxor.u32 %v2163, 2147483648
    %v2168 = vxor.u32 %v2164, 2147483648
    %v2169 = vmul.f32 %v2166, 1.442695
    %v2170 = vpow.pop %v2169
    %v2171 = vmul.f32 %v2167, 1.442695
    %v2172 = vpow.pop %v2171
    %v2173 = vmul.f32 %v2168, 1.442695
    %v2174 = vpow.pop %v2173
    %v2175 = vadd.f32 %v2170, 1.0
    %v2176 = vadd.f32 %v2172, 1.0
    %v2177 = vadd.f32 %v2174, 1.0
    %v2178 = vrcp.pop %v2175
    %v2179 = vmul.f32 1.0, %v2178
    %v2180 = vrcp.pop %v2176
    %v2181 = vmul.f32 1.0, %v2180
    %v2182 = vrcp.pop %v2177
    %v2183 = vmul.f32 1.0, %v2182
    %v2184 = vtanh.pop %v2165
    %v2185 = vmul.f32 %v2181, %v1961
    %v2186 = vmul.f32 %v2179, %v2184
    %v2187 = vadd.f32 %v2185, %v2186
    %v2188 = vtanh.pop %v2187
    %v2189 = vmul.f32 %v2183, %v2188
    %v2190 = vld [vmem:[#allocation2 + $0x80] sm:$0xff]
    %v2191 = vld [vmem:[#allocation2 + $0x88] sm:$0xff]
    %v2192 = vld [vmem:[#allocation2 + $0x90] sm:$0xff]
    %v2193 = vld [vmem:[#allocation2 + $0x98] sm:$0xff]
    %v2194 = vadd.f32 %v2190, %v2115
    %v2195 = vadd.f32 %v2191, %v2117
    %v2196 = vadd.f32 %v2192, %v2156
    %v2197 = vadd.f32 %v2193, %v2158
    %v2198 = vxor.u32 %v2194, 2147483648
    %v2199 = vxor.u32 %v2195, 2147483648
    %v2200 = vxor.u32 %v2196, 2147483648
    %v2201 = vmul.f32 %v2198, 1.442695
    %v2202 = vpow.pop %v2201
    %v2203 = vmul.f32 %v2199, 1.442695
    %v2204 = vpow.pop %v2203
    %v2205 = vmul.f32 %v2200, 1.442695
    %v2206 = vpow.pop %v2205
    %v2207 = vadd.f32 %v2202, 1.0
    %v2208 = vadd.f32 %v2204, 1.0
    %v2209 = vadd.f32 %v2206, 1.0
    %v2210 = vrcp.pop %v2207
    %v2211 = vmul.f32 1.0, %v2210
    %v2212 = vrcp.pop %v2208
    %v2213 = vmul.f32 1.0, %v2212
    %v2214 = vrcp.pop %v2209
    %v2215 = vmul.f32 1.0, %v2214
    %v2216 = vtanh.pop %v2197
    %v2217 = vmul.f32 %v2213, %v1993
    %v2218 = vmul.f32 %v2211, %v2216
    %v2219 = vadd.f32 %v2217, %v2218
    %v2220 = vtanh.pop %v2219
    %v2221 = vmul.f32 %v2215, %v2220
    %v2222 = vpack.c.bf16 %v2221, %v2221
    %v2223 = vpack.c.bf16 %v2189, %v2189
    %2224 = vmatprep.subr.bf16.mxu0 %v1065
    %2225 = vmatpush1.bf16.msra.mxu0 %v1064
    %2226 = vmatprep.subr.bf16.mxu0 %v1073
    %2227 = vmatpush1.bf16.msra.mxu0 %v1072
    %2228 = vmatprep.subr.bf16.mxu0 %v1081
    %2229 = vmatpush1.bf16.msra.mxu0 %v1080
    %2230 = vmatprep.subr.bf16.mxu0 %v1089
    %2231 = vmatpush1.bf16.msra.mxu0 %v1088
    %2232 = vmatprep.subr.bf16.mxu0 %v1097
    %2233 = vmatpush1.bf16.msra.mxu0 %v1096
    %2234 = vmatprep.subr.bf16.mxu0 %v1105
    %2235 = vmatpush1.bf16.msra.mxu0 %v1104
    %2236 = vmatprep.subr.bf16.mxu0 %v1113
    %2237 = vmatpush1.bf16.msra.mxu0 %v1112
    %2238 = vmatprep.subr.bf16.mxu0 %v1121
    %2239 = vmatpush1.bf16.msra.mxu0 %v1120
    %2240 = vmatprep.subr.bf16.mxu0 %v1129
    %2241 = vmatpush1.bf16.msra.mxu0 %v1128
    %2242 = vmatprep.subr.bf16.mxu0 %v1137
    %2243 = vmatpush1.bf16.msra.mxu0 %v1136
    %2244 = vmatprep.subr.bf16.mxu0 %v1145
    %2245 = vmatpush1.bf16.msra.mxu0 %v1144
    %2246 = vmatprep.subr.bf16.mxu0 %v1153
    %2247 = vmatpush1.bf16.msra.mxu0 %v1152
    %2248 = vmatprep.subr.bf16.mxu0 %v1161
    %2249 = vmatpush1.bf16.msra.mxu0 %v1160
    %2250 = vmatprep.subr.bf16.mxu0 %v1169
    %2251 = vmatpush1.bf16.msra.mxu0 %v1168
    %2252 = vmatprep.subr.bf16.mxu0 %v1177
    %2253 = vmatpush1.bf16.msra.mxu0 %v1176
    %2254 = vmatprep.subr.bf16.mxu0 %v1185
    %2255 = vmatpush1.bf16.msra.mxu0 %v1184
    %2256 = vmatprep.mubr.bf16.mxu0 %v2223
    %2257 = vmatmul.mubr.bf16.gmra.mrb[0].mxu0 %v2222
    %v2258 = vpop.f32.mrb[0].mxu0
    %v2259 = vadd.f32 0.0, %v2258
    %v2260 = vpop.f32.mrb[0].mxu0
    %v2261 = vadd.f32 0.0, %v2260
    %v2262 = vpop.f32.mrb[0].mxu0
    %v2263 = vpop.f32.mrb[0].mxu0
    %2264 = vdwg.mxu0
    %2265 = vmatprep.subr.bf16.mxu0 %v1067
    %2266 = vmatpush1.bf16.msra.mxu0 %v1066
    %2267 = vmatprep.subr.bf16.mxu0 %v1075
    %2268 = vmatpush1.bf16.msra.mxu0 %v1074
    %2269 = vmatprep.subr.bf16.mxu0 %v1083
    %2270 = vmatpush1.bf16.msra.mxu0 %v1082
    %2271 = vmatprep.subr.bf16.mxu0 %v1091
    %2272 = vmatpush1.bf16.msra.mxu0 %v1090
    %2273 = vmatprep.subr.bf16.mxu0 %v1099
    %2274 = vmatpush1.bf16.msra.mxu0 %v1098
    %2275 = vmatprep.subr.bf16.mxu0 %v1107
    %2276 = vmatpush1.bf16.msra.mxu0 %v1106
    %2277 = vmatprep.subr.bf16.mxu0 %v1115
    %2278 = vmatpush1.bf16.msra.mxu0 %v1114
    %2279 = vmatprep.subr.bf16.mxu0 %v1123
    %2280 = vmatpush1.bf16.msra.mxu0 %v1122
    %2281 = vmatprep.subr.bf16.mxu0 %v1131
    %2282 = vmatpush1.bf16.msra.mxu0 %v1130
    %2283 = vmatprep.subr.bf16.mxu0 %v1139
    %2284 = vmatpush1.bf16.msra.mxu0 %v1138
    %2285 = vmatprep.subr.bf16.mxu0 %v1147
    %2286 = vmatpush1.bf16.msra.mxu0 %v1146
    %2287 = vmatprep.subr.bf16.mxu0 %v1155
    %2288 = vmatpush1.bf16.msra.mxu0 %v1154
    %2289 = vmatprep.subr.bf16.mxu0 %v1163
    %2290 = vmatpush1.bf16.msra.mxu0 %v1162
    %2291 = vmatprep.subr.bf16.mxu0 %v1171
    %2292 = vmatpush1.bf16.msra.mxu0 %v1170
    %2293 = vmatprep.subr.bf16.mxu0 %v1179
    %2294 = vmatpush1.bf16.msra.mxu0 %v1178
    %2295 = vmatprep.subr.bf16.mxu0 %v1187
    %2296 = vmatpush1.bf16.msra.mxu0 %v1186
    %2297 = vmatprep.mubr.bf16.mxu0 %v2223
    %2298 = vmatmul.mubr.bf16.gmra.mrb[0].mxu0 %v2222
    %v2299 = vpop.f32.mrb[0].mxu0
    %v2300 = vadd.f32 0.0, %v2299
    %v2301 = vpop.f32.mrb[0].mxu0
    %v2302 = vadd.f32 0.0, %v2301
    %v2303 = vpop.f32.mrb[0].mxu0
    %v2304 = vpop.f32.mrb[0].mxu0
    %2305 = vdwg.mxu0
    %2306 = vmatprep.subr.bf16.mxu0 %v1069
    %2307 = vmatpush1.bf16.msra.mxu0 %v1068
    %2308 = vmatprep.subr.bf16.mxu0 %v1077
    %2309 = vmatpush1.bf16.msra.mxu0 %v1076
    %2310 = vmatprep.subr.bf16.mxu0 %v1085
    %2311 = vmatpush1.bf16.msra.mxu0 %v1084
    %2312 = vmatprep.subr.bf16.mxu0 %v1093
    %2313 = vmatpush1.bf16.msra.mxu0 %v1092
    %2314 = vmatprep.subr.bf16.mxu0 %v1101
    %2315 = vmatpush1.bf16.msra.mxu0 %v1100
    %2316 = vmatprep.subr.bf16.mxu0 %v1109
    %2317 = vmatpush1.bf16.msra.mxu0 %v1108
    %2318 = vmatprep.subr.bf16.mxu0 %v1117
    %2319 = vmatpush1.bf16.msra.mxu0 %v1116
    %2320 = vmatprep.subr.bf16.mxu0 %v1125
    %2321 = vmatpush1.bf16.msra.mxu0 %v1124
    %2322 = vmatprep.subr.bf16.mxu0 %v1133
    %2323 = vmatpush1.bf16.msra.mxu0 %v1132
    %2324 = vmatprep.subr.bf16.mxu0 %v1141
    %2325 = vmatpush1.bf16.msra.mxu0 %v1140
    %2326 = vmatprep.subr.bf16.mxu0 %v1149
    %2327 = vmatpush1.bf16.msra.mxu0 %v1148
    %2328 = vmatprep.subr.bf16.mxu0 %v1157
    %2329 = vmatpush1.bf16.msra.mxu0 %v1156
    %2330 = vmatprep.subr.bf16.mxu0 %v1165
    %2331 = vmatpush1.bf16.msra.mxu0 %v1164
    %2332 = vmatprep.subr.bf16.mxu0 %v1173
    %2333 = vmatpush1.bf16.msra.mxu0 %v1172
    %2334 = vmatprep.subr.bf16.mxu0 %v1181
    %2335 = vmatpush1.bf16.msra.mxu0 %v1180
    %2336 = vmatprep.subr.bf16.mxu0 %v1189
    %2337 = vmatpush1.bf16.msra.mxu0 %v1188
    %2338 = vmatprep.mubr.bf16.mxu0 %v2223
    %2339 = vmatmul.mubr.bf16.gmra.mrb[0].mxu0 %v2222
    %v2340 = vpop.f32.mrb[0].mxu0
    %v2341 = vadd.f32 0.0, %v2340
    %v2342 = vpop.f32.mrb[0].mxu0
    %v2343 = vadd.f32 0.0, %v2342
    %v2344 = vpop.f32.mrb[0].mxu0
    %v2345 = vpop.f32.mrb[0].mxu0
    %2346 = vdwg.mxu0
    %2347 = vmatprep.subr.bf16.mxu0 %v1071
    %2348 = vmatpush1.bf16.msra.mxu0 %v1070
    %2349 = vmatprep.subr.bf16.mxu0 %v1079
    %2350 = vmatpush1.bf16.msra.mxu0 %v1078
    %2351 = vmatprep.subr.bf16.mxu0 %v1087
    %2352 = vmatpush1.bf16.msra.mxu0 %v1086
    %2353 = vmatprep.subr.bf16.mxu0 %v1095
    %2354 = vmatpush1.bf16.msra.mxu0 %v1094
    %2355 = vmatprep.subr.bf16.mxu0 %v1103
    %2356 = vmatpush1.bf16.msra.mxu0 %v1102
    %2357 = vmatprep.subr.bf16.mxu0 %v1111
    %2358 = vmatpush1.bf16.msra.mxu0 %v1110
    %2359 = vmatprep.subr.bf16.mxu0 %v1119
    %2360 = vmatpush1.bf16.msra.mxu0 %v1118
    %2361 = vmatprep.subr.bf16.mxu0 %v1127
    %2362 = vmatpush1.bf16.msra.mxu0 %v1126
    %2363 = vmatprep.subr.bf16.mxu0 %v1135
    %2364 = vmatpush1.bf16.msra.mxu0 %v1134
    %2365 = vmatprep.subr.bf16.mxu0 %v1143
    %2366 = vmatpush1.bf16.msra.mxu0 %v1142
    %2367 = vmatprep.subr.bf16.mxu0 %v1151
    %2368 = vmatpush1.bf16.msra.mxu0 %v1150
    %2369 = vmatprep.subr.bf16.mxu0 %v1159
    %2370 = vmatpush1.bf16.msra.mxu0 %v1158
    %2371 = vmatprep.subr.bf16.mxu0 %v1167
    %2372 = vmatpush1.bf16.msra.mxu0 %v1166
    %2373 = vmatprep.subr.bf16.mxu0 %v1175
    %2374 = vmatpush1.bf16.msra.mxu0 %v1174
    %2375 = vmatprep.subr.bf16.mxu0 %v1183
    %2376 = vmatpush1.bf16.msra.mxu0 %v1182
    %2377 = vmatprep.subr.bf16.mxu0 %v1191
    %2378 = vmatpush1.bf16.msra.mxu0 %v1190
    %2379 = vmatprep.mubr.bf16.mxu0 %v2223
    %2380 = vmatmul.mubr.bf16.gmra.mrb[0].mxu0 %v2222
    %v2381 = vpop.f32.mrb[0].mxu0
    %v2382 = vadd.f32 0.0, %v2381
    %v2383 = vpop.f32.mrb[0].mxu0
    %v2384 = vadd.f32 0.0, %v2383
    %v2385 = vpop.f32.mrb[0].mxu0
    %v2386 = vpop.f32.mrb[0].mxu0
    %2387 = vdwg.mxu0
    %v2388 = vadd.f32 %v2259, %v646
    %v2389 = vadd.f32 %v2261, %v647
    %v2390 = vadd.f32 %v2300, %v648
    %v2391 = vadd.f32 %v2302, %v649
    %v2392 = vxor.u32 %v2388, 2147483648
    %v2393 = vxor.u32 %v2389, 2147483648
    %v2394 = vxor.u32 %v2390, 2147483648
    %v2395 = vmul.f32 %v2392, 1.442695
    %v2396 = vpow.pop %v2395
    %v2397 = vmul.f32 %v2393, 1.442695
    %v2398 = vpow.pop %v2397
    %v2399 = vmul.f32 %v2394, 1.442695
    %v2400 = vpow.pop %v2399
    %v2401 = vadd.f32 %v2396, 1.0
    %v2402 = vadd.f32 %v2398, 1.0
    %v2403 = vadd.f32 %v2400, 1.0
    %v2404 = vrcp.pop %v2401
    %v2405 = vmul.f32 1.0, %v2404
    %v2406 = vrcp.pop %v2402
    %v2407 = vmul.f32 1.0, %v2406
    %v2408 = vrcp.pop %v2403
    %v2409 = vmul.f32 1.0, %v2408
    %v2410 = vtanh.pop %v2391
    %v2411 = vmul.f32 %v2407, %v2187
    %v2412 = vmul.f32 %v2405, %v2410
    %v2413 = vadd.f32 %v2411, %v2412
    %v2414 = vtanh.pop %v2413
    %v2415 = vmul.f32 %v2409, %v2414
    %v2416 = vld [vmem:[#allocation2 + $0xa0] sm:$0xff]
    %v2417 = vld [vmem:[#allocation2 + $0xa8] sm:$0xff]
    %v2418 = vld [vmem:[#allocation2 + $0xb0] sm:$0xff]
    %v2419 = vld [vmem:[#allocation2 + $0xb8] sm:$0xff]
    %v2420 = vadd.f32 %v2416, %v2341
    %v2421 = vadd.f32 %v2417, %v2343
    %v2422 = vadd.f32 %v2418, %v2382
    %v2423 = vadd.f32 %v2419, %v2384
    %v2424 = vxor.u32 %v2420, 2147483648
    %v2425 = vxor.u32 %v2421, 2147483648
    %v2426 = vxor.u32 %v2422, 2147483648
    %v2427 = vmul.f32 %v2424, 1.442695
    %v2428 = vpow.pop %v2427
    %v2429 = vmul.f32 %v2425, 1.442695
    %v2430 = vpow.pop %v2429
    %v2431 = vmul.f32 %v2426, 1.442695
    %v2432 = vpow.pop %v2431
    %v2433 = vadd.f32 %v2428, 1.0
    %v2434 = vadd.f32 %v2430, 1.0
    %v2435 = vadd.f32 %v2432, 1.0
    %v2436 = vrcp.pop %v2433
    %v2437 = vmul.f32 1.0, %v2436
    %v2438 = vrcp.pop %v2434
    %v2439 = vmul.f32 1.0, %v2438
    %v2440 = vrcp.pop %v2435
    %v2441 = vmul.f32 1.0, %v2440
    %v2442 = vtanh.pop %v2423
    %v2443 = vmul.f32 %v2439, %v2219
    %v2444 = vmul.f32 %v2437, %v2442
    %v2445 = vadd.f32 %v2443, %v2444
    %v2446 = vtanh.pop %v2445
    %v2447 = vmul.f32 %v2441, %v2446
    %v2448 = vpack.c.bf16 %v2447, %v2447
    %v2449 = vpack.c.bf16 %v2415, %v2415
    %2450 = vmatprep.subr.bf16.mxu0 %v1065
    %2451 = vmatpush1.bf16.msra.mxu0 %v1064
    %2452 = vmatprep.subr.bf16.mxu0 %v1073
    %2453 = vmatpush1.bf16.msra.mxu0 %v1072
    %2454 = vmatprep.subr.bf16.mxu0 %v1081
    %2455 = vmatpush1.bf16.msra.mxu0 %v1080
    %2456 = vmatprep.subr.bf16.mxu0 %v1089
    %2457 = vmatpush1.bf16.msra.mxu0 %v1088
    %2458 = vmatprep.subr.bf16.mxu0 %v1097
    %2459 = vmatpush1.bf16.msra.mxu0 %v1096
    %2460 = vmatprep.subr.bf16.mxu0 %v1105
    %2461 = vmatpush1.bf16.msra.mxu0 %v1104
    %2462 = vmatprep.subr.bf16.mxu0 %v1113
    %2463 = vmatpush1.bf16.msra.mxu0 %v1112
    %2464 = vmatprep.subr.bf16.mxu0 %v1121
    %2465 = vmatpush1.bf16.msra.mxu0 %v1120
    %2466 = vmatprep.subr.bf16.mxu0 %v1129
    %2467 = vmatpush1.bf16.msra.mxu0 %v1128
    %2468 = vmatprep.subr.bf16.mxu0 %v1137
    %2469 = vmatpush1.bf16.msra.mxu0 %v1136
    %2470 = vmatprep.subr.bf16.mxu0 %v1145
    %2471 = vmatpush1.bf16.msra.mxu0 %v1144
    %2472 = vmatprep.subr.bf16.mxu0 %v1153
    %2473 = vmatpush1.bf16.msra.mxu0 %v1152
    %2474 = vmatprep.subr.bf16.mxu0 %v1161
    %2475 = vmatpush1.bf16.msra.mxu0 %v1160
    %2476 = vmatprep.subr.bf16.mxu0 %v1169
    %2477 = vmatpush1.bf16.msra.mxu0 %v1168
    %2478 = vmatprep.subr.bf16.mxu0 %v1177
    %2479 = vmatpush1.bf16.msra.mxu0 %v1176
    %2480 = vmatprep.subr.bf16.mxu0 %v1185
    %2481 = vmatpush1.bf16.msra.mxu0 %v1184
    %2482 = vmatprep.mubr.bf16.mxu0 %v2449
    %2483 = vmatmul.mubr.bf16.gmra.mrb[0].mxu0 %v2448
    %v2484 = vpop.f32.mrb[0].mxu0
    %v2485 = vadd.f32 0.0, %v2484
    %v2486 = vpop.f32.mrb[0].mxu0
    %v2487 = vadd.f32 0.0, %v2486
    %v2488 = vpop.f32.mrb[0].mxu0
    %v2489 = vpop.f32.mrb[0].mxu0
    %2490 = vdwg.mxu0
    %2491 = vmatprep.subr.bf16.mxu0 %v1067
    %2492 = vmatpush1.bf16.msra.mxu0 %v1066
    %2493 = vmatprep.subr.bf16.mxu0 %v1075
    %2494 = vmatpush1.bf16.msra.mxu0 %v1074
    %2495 = vmatprep.subr.bf16.mxu0 %v1083
    %2496 = vmatpush1.bf16.msra.mxu0 %v1082
    %2497 = vmatprep.subr.bf16.mxu0 %v1091
    %2498 = vmatpush1.bf16.msra.mxu0 %v1090
    %2499 = vmatprep.subr.bf16.mxu0 %v1099
    %2500 = vmatpush1.bf16.msra.mxu0 %v1098
    %2501 = vmatprep.subr.bf16.mxu0 %v1107
    %2502 = vmatpush1.bf16.msra.mxu0 %v1106
    %2503 = vmatprep.subr.bf16.mxu0 %v1115
    %2504 = vmatpush1.bf16.msra.mxu0 %v1114
    %2505 = vmatprep.subr.bf16.mxu0 %v1123
    %2506 = vmatpush1.bf16.msra.mxu0 %v1122
    %2507 = vmatprep.subr.bf16.mxu0 %v1131
    %2508 = vmatpush1.bf16.msra.mxu0 %v1130
    %2509 = vmatprep.subr.bf16.mxu0 %v1139
    %2510 = vmatpush1.bf16.msra.mxu0 %v1138
    %2511 = vmatprep.subr.bf16.mxu0 %v1147
    %2512 = vmatpush1.bf16.msra.mxu0 %v1146
    %2513 = vmatprep.subr.bf16.mxu0 %v1155
    %2514 = vmatpush1.bf16.msra.mxu0 %v1154
    %2515 = vmatprep.subr.bf16.mxu0 %v1163
    %2516 = vmatpush1.bf16.msra.mxu0 %v1162
    %2517 = vmatprep.subr.bf16.mxu0 %v1171
    %2518 = vmatpush1.bf16.msra.mxu0 %v1170
    %2519 = vmatprep.subr.bf16.mxu0 %v1179
    %2520 = vmatpush1.bf16.msra.mxu0 %v1178
    %2521 = vmatprep.subr.bf16.mxu0 %v1187
    %2522 = vmatpush1.bf16.msra.mxu0 %v1186
    %2523 = vmatprep.mubr.bf16.mxu0 %v2449
    %2524 = vmatmul.mubr.bf16.gmra.mrb[0].mxu0 %v2448
    %v2525 = vpop.f32.mrb[0].mxu0
    %v2526 = vadd.f32 0.0, %v2525
    %v2527 = vpop.f32.mrb[0].mxu0
    %v2528 = vadd.f32 0.0, %v2527
    %v2529 = vpop.f32.mrb[0].mxu0
    %v2530 = vpop.f32.mrb[0].mxu0
    %2531 = vdwg.mxu0
    %2532 = vmatprep.subr.bf16.mxu0 %v1069
    %2533 = vmatpush1.bf16.msra.mxu0 %v1068
    %2534 = vmatprep.subr.bf16.mxu0 %v1077
    %2535 = vmatpush1.bf16.msra.mxu0 %v1076
    %2536 = vmatprep.subr.bf16.mxu0 %v1085
    %2537 = vmatpush1.bf16.msra.mxu0 %v1084
    %2538 = vmatprep.subr.bf16.mxu0 %v1093
    %2539 = vmatpush1.bf16.msra.mxu0 %v1092
    %2540 = vmatprep.subr.bf16.mxu0 %v1101
    %2541 = vmatpush1.bf16.msra.mxu0 %v1100
    %2542 = vmatprep.subr.bf16.mxu0 %v1109
    %2543 = vmatpush1.bf16.msra.mxu0 %v1108
    %2544 = vmatprep.subr.bf16.mxu0 %v1117
    %2545 = vmatpush1.bf16.msra.mxu0 %v1116
    %2546 = vmatprep.subr.bf16.mxu0 %v1125
    %2547 = vmatpush1.bf16.msra.mxu0 %v1124
    %2548 = vmatprep.subr.bf16.mxu0 %v1133
    %2549 = vmatpush1.bf16.msra.mxu0 %v1132
    %2550 = vmatprep.subr.bf16.mxu0 %v1141
    %2551 = vmatpush1.bf16.msra.mxu0 %v1140
    %2552 = vmatprep.subr.bf16.mxu0 %v1149
    %2553 = vmatpush1.bf16.msra.mxu0 %v1148
    %2554 = vmatprep.subr.bf16.mxu0 %v1157
    %2555 = vmatpush1.bf16.msra.mxu0 %v1156
    %2556 = vmatprep.subr.bf16.mxu0 %v1165
    %2557 = vmatpush1.bf16.msra.mxu0 %v1164
    %2558 = vmatprep.subr.bf16.mxu0 %v1173
    %2559 = vmatpush1.bf16.msra.mxu0 %v1172
    %2560 = vmatprep.subr.bf16.mxu0 %v1181
    %2561 = vmatpush1.bf16.msra.mxu0 %v1180
    %2562 = vmatprep.subr.bf16.mxu0 %v1189
    %2563 = vmatpush1.bf16.msra.mxu0 %v1188
    %2564 = vmatprep.mubr.bf16.mxu0 %v2449
    %2565 = vmatmul.mubr.bf16.gmra.mrb[0].mxu0 %v2448
    %v2566 = vpop.f32.mrb[0].mxu0
    %v2567 = vadd.f32 0.0, %v2566
    %v2568 = vpop.f32.mrb[0].mxu0
    %v2569 = vadd.f32 0.0, %v2568
    %v2570 = vpop.f32.mrb[0].mxu0
    %v2571 = vpop.f32.mrb[0].mxu0
    %2572 = vdwg.mxu0
    %2573 = vmatprep.subr.bf16.mxu0 %v1071
    %2574 = vmatpush1.bf16.msra.mxu0 %v1070
    %2575 = vmatprep.subr.bf16.mxu0 %v1079
    %2576 = vmatpush1.bf16.msra.mxu0 %v1078
    %2577 = vmatprep.subr.bf16.mxu0 %v1087
    %2578 = vmatpush1.bf16.msra.mxu0 %v1086
    %2579 = vmatprep.subr.bf16.mxu0 %v1095
    %2580 = vmatpush1.bf16.msra.mxu0 %v1094
    %2581 = vmatprep.subr.bf16.mxu0 %v1103
    %2582 = vmatpush1.bf16.msra.mxu0 %v1102
    %2583 = vmatprep.subr.bf16.mxu0 %v1111
    %2584 = vmatpush1.bf16.msra.mxu0 %v1110
    %2585 = vmatprep.subr.bf16.mxu0 %v1119
    %2586 = vmatpush1.bf16.msra.mxu0 %v1118
    %2587 = vmatprep.subr.bf16.mxu0 %v1127
    %2588 = vmatpush1.bf16.msra.mxu0 %v1126
    %2589 = vmatprep.subr.bf16.mxu0 %v1135
    %2590 = vmatpush1.bf16.msra.mxu0 %v1134
    %2591 = vmatprep.subr.bf16.mxu0 %v1143
    %2592 = vmatpush1.bf16.msra.mxu0 %v1142
    %2593 = vmatprep.subr.bf16.mxu0 %v1151
    %2594 = vmatpush1.bf16.msra.mxu0 %v1150
    %2595 = vmatprep.subr.bf16.mxu0 %v1159
    %2596 = vmatpush1.bf16.msra.mxu0 %v1158
    %2597 = vmatprep.subr.bf16.mxu0 %v1167
    %2598 = vmatpush1.bf16.msra.mxu0 %v1166
    %2599 = vmatprep.subr.bf16.mxu0 %v1175
    %2600 = vmatpush1.bf16.msra.mxu0 %v1174
    %2601 = vmatprep.subr.bf16.mxu0 %v1183
    %2602 = vmatpush1.bf16.msra.mxu0 %v1182
    %2603 = vmatprep.subr.bf16.mxu0 %v1191
    %2604 = vmatpush1.bf16.msra.mxu0 %v1190
    %2605 = vmatprep.mubr.bf16.mxu0 %v2449
    %2606 = vmatmul.mubr.bf16.gmra.mrb[0].mxu0 %v2448
    %v2607 = vpop.f32.mrb[0].mxu0
    %v2608 = vadd.f32 0.0, %v2607
    %v2609 = vpop.f32.mrb[0].mxu0
    %v2610 = vadd.f32 0.0, %v2609
    %v2611 = vpop.f32.mrb[0].mxu0
    %v2612 = vpop.f32.mrb[0].mxu0
    %2613 = vdwg.mxu0
    %v2614 = vadd.f32 %v2485, %v646
    %v2615 = vadd.f32 %v2487, %v647
    %v2616 = vadd.f32 %v2526, %v648
    %v2617 = vadd.f32 %v2528, %v649
    %v2618 = vxor.u32 %v2614, 2147483648
    %v2619 = vxor.u32 %v2615, 2147483648
    %v2620 = vxor.u32 %v2616, 2147483648
    %v2621 = vmul.f32 %v2618, 1.442695
    %v2622 = vpow.pop %v2621
    %v2623 = vmul.f32 %v2619, 1.442695
    %v2624 = vpow.pop %v2623
    %v2625 = vmul.f32 %v2620, 1.442695
    %v2626 = vpow.pop %v2625
    %v2627 = vadd.f32 %v2622, 1.0
    %v2628 = vadd.f32 %v2624, 1.0
    %v2629 = vadd.f32 %v2626, 1.0
    %v2630 = vrcp.pop %v2627
    %v2631 = vmul.f32 1.0, %v2630
    %v2632 = vrcp.pop %v2628
    %v2633 = vmul.f32 1.0, %v2632
    %v2634 = vrcp.pop %v2629
    %v2635 = vmul.f32 1.0, %v2634
    %v2636 = vtanh.pop %v2617
    %v2637 = vmul.f32 %v2633, %v2413
    %v2638 = vmul.f32 %v2631, %v2636
    %v2639 = vadd.f32 %v2637, %v2638
    %v2640 = vtanh.pop %v2639
    %v2641 = vmul.f32 %v2635, %v2640
    %v2642 = vld [vmem:[#allocation2 + $0xc0] sm:$0xff]
    %v2643 = vld [vmem:[#allocation2 + $0xc8] sm:$0xff]
    %v2644 = vld [vmem:[#allocation2 + $0xd0] sm:$0xff]
    %v2645 = vld [vmem:[#allocation2 + $0xd8] sm:$0xff]
    %v2646 = vadd.f32 %v2642, %v2567
    %v2647 = vadd.f32 %v2643, %v2569
    %v2648 = vadd.f32 %v2644, %v2608
    %v2649 = vadd.f32 %v2645, %v2610
    %v2650 = vxor.u32 %v2646, 2147483648
    %v2651 = vxor.u32 %v2647, 2147483648
    %v2652 = vxor.u32 %v2648, 2147483648
    %v2653 = vmul.f32 %v2650, 1.442695
    %v2654 = vpow.pop %v2653
    %v2655 = vmul.f32 %v2651, 1.442695
    %v2656 = vpow.pop %v2655
    %v2657 = vmul.f32 %v2652, 1.442695
    %v2658 = vpow.pop %v2657
    %v2659 = vadd.f32 %v2654, 1.0
    %v2660 = vadd.f32 %v2656, 1.0
    %v2661 = vadd.f32 %v2658, 1.0
    %v2662 = vrcp.pop %v2659
    %v2663 = vmul.f32 1.0, %v2662
    %v2664 = vrcp.pop %v2660
    %v2665 = vmul.f32 1.0, %v2664
    %v2666 = vrcp.pop %v2661
    %v2667 = vmul.f32 1.0, %v2666
    %v2668 = vtanh.pop %v2649
    %v2669 = vmul.f32 %v2665, %v2445
    %v2670 = vmul.f32 %v2663, %v2668
    %v2671 = vadd.f32 %v2669, %v2670
    %v2672 = vtanh.pop %v2671
    %v2673 = vmul.f32 %v2667, %v2672
    %v2674 = vpack.c.bf16 %v2673, %v2673
    %v2675 = vpack.c.bf16 %v2641, %v2641
    %2676 = vmatprep.subr.bf16.mxu0 %v1065
    %2677 = vmatpush1.bf16.msra.mxu0 %v1064
    %2678 = vmatprep.subr.bf16.mxu0 %v1073
    %2679 = vmatpush1.bf16.msra.mxu0 %v1072
    %2680 = vmatprep.subr.bf16.mxu0 %v1081
    %2681 = vmatpush1.bf16.msra.mxu0 %v1080
    %2682 = vmatprep.subr.bf16.mxu0 %v1089
    %2683 = vmatpush1.bf16.msra.mxu0 %v1088
    %2684 = vmatprep.subr.bf16.mxu0 %v1097
    %2685 = vmatpush1.bf16.msra.mxu0 %v1096
    %2686 = vmatprep.subr.bf16.mxu0 %v1105
    %2687 = vmatpush1.bf16.msra.mxu0 %v1104
    %2688 = vmatprep.subr.bf16.mxu0 %v1113
    %2689 = vmatpush1.bf16.msra.mxu0 %v1112
    %2690 = vmatprep.subr.bf16.mxu0 %v1121
    %2691 = vmatpush1.bf16.msra.mxu0 %v1120
    %2692 = vmatprep.subr.bf16.mxu0 %v1129
    %2693 = vmatpush1.bf16.msra.mxu0 %v1128
    %2694 = vmatprep.subr.bf16.mxu0 %v1137
    %2695 = vmatpush1.bf16.msra.mxu0 %v1136
    %2696 = vmatprep.subr.bf16.mxu0 %v1145
    %2697 = vmatpush1.bf16.msra.mxu0 %v1144
    %2698 = vmatprep.subr.bf16.mxu0 %v1153
    %2699 = vmatpush1.bf16.msra.mxu0 %v1152
    %2700 = vmatprep.subr.bf16.mxu0 %v1161
    %2701 = vmatpush1.bf16.msra.mxu0 %v1160
    %2702 = vmatprep.subr.bf16.mxu0 %v1169
    %2703 = vmatpush1.bf16.msra.mxu0 %v1168
    %2704 = vmatprep.subr.bf16.mxu0 %v1177
    %2705 = vmatpush1.bf16.msra.mxu0 %v1176
    %2706 = vmatprep.subr.bf16.mxu0 %v1185
    %2707 = vmatpush1.bf16.msra.mxu0 %v1184
    %2708 = vmatprep.mubr.bf16.mxu0 %v2675
    %2709 = vmatmul.mubr.bf16.gmra.mrb[0].mxu0 %v2674
    %v2710 = vpop.f32.mrb[0].mxu0
    %v2711 = vadd.f32 0.0, %v2710
    %v2712 = vpop.f32.mrb[0].mxu0
    %v2713 = vadd.f32 0.0, %v2712
    %v2714 = vpop.f32.mrb[0].mxu0
    %v2715 = vpop.f32.mrb[0].mxu0
    %2716 = vdwg.mxu0
    %2717 = vmatprep.subr.bf16.mxu0 %v1067
    %2718 = vmatpush1.bf16.msra.mxu0 %v1066
    %2719 = vmatprep.subr.bf16.mxu0 %v1075
    %2720 = vmatpush1.bf16.msra.mxu0 %v1074
    %2721 = vmatprep.subr.bf16.mxu0 %v1083
    %2722 = vmatpush1.bf16.msra.mxu0 %v1082
    %2723 = vmatprep.subr.bf16.mxu0 %v1091
    %2724 = vmatpush1.bf16.msra.mxu0 %v1090
    %2725 = vmatprep.subr.bf16.mxu0 %v1099
    %2726 = vmatpush1.bf16.msra.mxu0 %v1098
    %2727 = vmatprep.subr.bf16.mxu0 %v1107
    %2728 = vmatpush1.bf16.msra.mxu0 %v1106
    %2729 = vmatprep.subr.bf16.mxu0 %v1115
    %2730 = vmatpush1.bf16.msra.mxu0 %v1114
    %2731 = vmatprep.subr.bf16.mxu0 %v1123
    %2732 = vmatpush1.bf16.msra.mxu0 %v1122
    %2733 = vmatprep.subr.bf16.mxu0 %v1131
    %2734 = vmatpush1.bf16.msra.mxu0 %v1130
    %2735 = vmatprep.subr.bf16.mxu0 %v1139
    %2736 = vmatpush1.bf16.msra.mxu0 %v1138
    %2737 = vmatprep.subr.bf16.mxu0 %v1147
    %2738 = vmatpush1.bf16.msra.mxu0 %v1146
    %2739 = vmatprep.subr.bf16.mxu0 %v1155
    %2740 = vmatpush1.bf16.msra.mxu0 %v1154
    %2741 = vmatprep.subr.bf16.mxu0 %v1163
    %2742 = vmatpush1.bf16.msra.mxu0 %v1162
    %2743 = vmatprep.subr.bf16.mxu0 %v1171
    %2744 = vmatpush1.bf16.msra.mxu0 %v1170
    %2745 = vmatprep.subr.bf16.mxu0 %v1179
    %2746 = vmatpush1.bf16.msra.mxu0 %v1178
    %2747 = vmatprep.subr.bf16.mxu0 %v1187
    %2748 = vmatpush1.bf16.msra.mxu0 %v1186
    %2749 = vmatprep.mubr.bf16.mxu0 %v2675
    %2750 = vmatmul.mubr.bf16.gmra.mrb[0].mxu0 %v2674
    %v2751 = vpop.f32.mrb[0].mxu0
    %v2752 = vadd.f32 0.0, %v2751
    %v2753 = vpop.f32.mrb[0].mxu0
    %v2754 = vadd.f32 0.0, %v2753
    %v2755 = vpop.f32.mrb[0].mxu0
    %v2756 = vpop.f32.mrb[0].mxu0
    %2757 = vdwg.mxu0
    %2758 = vmatprep.subr.bf16.mxu0 %v1069
    %2759 = vmatpush1.bf16.msra.mxu0 %v1068
    %2760 = vmatprep.subr.bf16.mxu0 %v1077
    %2761 = vmatpush1.bf16.msra.mxu0 %v1076
    %2762 = vmatprep.subr.bf16.mxu0 %v1085
    %2763 = vmatpush1.bf16.msra.mxu0 %v1084
    %2764 = vmatprep.subr.bf16.mxu0 %v1093
    %2765 = vmatpush1.bf16.msra.mxu0 %v1092
    %2766 = vmatprep.subr.bf16.mxu0 %v1101
    %2767 = vmatpush1.bf16.msra.mxu0 %v1100
    %2768 = vmatprep.subr.bf16.mxu0 %v1109
    %2769 = vmatpush1.bf16.msra.mxu0 %v1108
    %2770 = vmatprep.subr.bf16.mxu0 %v1117
    %2771 = vmatpush1.bf16.msra.mxu0 %v1116
    %2772 = vmatprep.subr.bf16.mxu0 %v1125
    %2773 = vmatpush1.bf16.msra.mxu0 %v1124
    %2774 = vmatprep.subr.bf16.mxu0 %v1133
    %2775 = vmatpush1.bf16.msra.mxu0 %v1132
    %2776 = vmatprep.subr.bf16.mxu0 %v1141
    %2777 = vmatpush1.bf16.msra.mxu0 %v1140
    %2778 = vmatprep.subr.bf16.mxu0 %v1149
    %2779 = vmatpush1.bf16.msra.mxu0 %v1148
    %2780 = vmatprep.subr.bf16.mxu0 %v1157
    %2781 = vmatpush1.bf16.msra.mxu0 %v1156
    %2782 = vmatprep.subr.bf16.mxu0 %v1165
    %2783 = vmatpush1.bf16.msra.mxu0 %v1164
    %2784 = vmatprep.subr.bf16.mxu0 %v1173
    %2785 = vmatpush1.bf16.msra.mxu0 %v1172
    %2786 = vmatprep.subr.bf16.mxu0 %v1181
    %2787 = vmatpush1.bf16.msra.mxu0 %v1180
    %2788 = vmatprep.subr.bf16.mxu0 %v1189
    %2789 = vmatpush1.bf16.msra.mxu0 %v1188
    %2790 = vmatprep.mubr.bf16.mxu0 %v2675
    %2791 = vmatmul.mubr.bf16.gmra.mrb[0].mxu0 %v2674
    %v2792 = vpop.f32.mrb[0].mxu0
    %v2793 = vadd.f32 0.0, %v2792
    %v2794 = vpop.f32.mrb[0].mxu0
    %v2795 = vadd.f32 0.0, %v2794
    %v2796 = vpop.f32.mrb[0].mxu0
    %v2797 = vpop.f32.mrb[0].mxu0
    %2798 = vdwg.mxu0
    %2799 = vmatprep.subr.bf16.mxu0 %v1071
    %2800 = vmatpush1.bf16.msra.mxu0 %v1070
    %2801 = vmatprep.subr.bf16.mxu0 %v1079
    %2802 = vmatpush1.bf16.msra.mxu0 %v1078
    %2803 = vmatprep.subr.bf16.mxu0 %v1087
    %2804 = vmatpush1.bf16.msra.mxu0 %v1086
    %2805 = vmatprep.subr.bf16.mxu0 %v1095
    %2806 = vmatpush1.bf16.msra.mxu0 %v1094
    %2807 = vmatprep.subr.bf16.mxu0 %v1103
    %2808 = vmatpush1.bf16.msra.mxu0 %v1102
    %2809 = vmatprep.subr.bf16.mxu0 %v1111
    %2810 = vmatpush1.bf16.msra.mxu0 %v1110
    %2811 = vmatprep.subr.bf16.mxu0 %v1119
    %2812 = vmatpush1.bf16.msra.mxu0 %v1118
    %2813 = vmatprep.subr.bf16.mxu0 %v1127
    %2814 = vmatpush1.bf16.msra.mxu0 %v1126
    %2815 = vmatprep.subr.bf16.mxu0 %v1135
    %2816 = vmatpush1.bf16.msra.mxu0 %v1134
    %2817 = vmatprep.subr.bf16.mxu0 %v1143
    %2818 = vmatpush1.bf16.msra.mxu0 %v1142
    %2819 = vmatprep.subr.bf16.mxu0 %v1151
    %2820 = vmatpush1.bf16.msra.mxu0 %v1150
    %2821 = vmatprep.subr.bf16.mxu0 %v1159
    %2822 = vmatpush1.bf16.msra.mxu0 %v1158
    %2823 = vmatprep.subr.bf16.mxu0 %v1167
    %2824 = vmatpush1.bf16.msra.mxu0 %v1166
    %2825 = vmatprep.subr.bf16.mxu0 %v1175
    %2826 = vmatpush1.bf16.msra.mxu0 %v1174
    %2827 = vmatprep.subr.bf16.mxu0 %v1183
    %2828 = vmatpush1.bf16.msra.mxu0 %v1182
    %2829 = vmatprep.subr.bf16.mxu0 %v1191
    %2830 = vmatpush1.bf16.msra.mxu0 %v1190
    %2831 = vmatprep.mubr.bf16.mxu0 %v2675
    %2832 = vmatmul.mubr.bf16.gmra.mrb[0].mxu0 %v2674
    %v2833 = vpop.f32.mrb[0].mxu0
    %v2834 = vadd.f32 0.0, %v2833
    %v2835 = vpop.f32.mrb[0].mxu0
    %v2836 = vadd.f32 0.0, %v2835
    %v2837 = vpop.f32.mrb[0].mxu0
    %v2838 = vpop.f32.mrb[0].mxu0
    %2839 = vdwg.mxu0
    %v2840 = vadd.f32 %v2711, %v646
    %v2841 = vadd.f32 %v2713, %v647
    %v2842 = vadd.f32 %v2752, %v648
    %v2843 = vadd.f32 %v2754, %v649
    %v2844 = vxor.u32 %v2840, 2147483648
    %v2845 = vxor.u32 %v2841, 2147483648
    %v2846 = vxor.u32 %v2842, 2147483648
    %v2847 = vmul.f32 %v2844, 1.442695
    %v2848 = vpow.pop %v2847
    %v2849 = vmul.f32 %v2845, 1.442695
    %v2850 = vpow.pop %v2849
    %v2851 = vmul.f32 %v2846, 1.442695
    %v2852 = vpow.pop %v2851
    %v2853 = vadd.f32 %v2848, 1.0
    %v2854 = vadd.f32 %v2850, 1.0
    %v2855 = vadd.f32 %v2852, 1.0
    %v2856 = vrcp.pop %v2853
    %v2857 = vmul.f32 1.0, %v2856
    %v2858 = vrcp.pop %v2854
    %v2859 = vmul.f32 1.0, %v2858
    %v2860 = vrcp.pop %v2855
    %v2861 = vmul.f32 1.0, %v2860
    %v2862 = vtanh.pop %v2843
    %v2863 = vmul.f32 %v2859, %v2639
    %v2864 = vmul.f32 %v2857, %v2862
    %v2865 = vadd.f32 %v2863, %v2864
    %v2866 = vtanh.pop %v2865
    %v2867 = vmul.f32 %v2861, %v2866
    %v2868 = vld [vmem:[#allocation2 + $0xe0] sm:$0xff]
    %v2869 = vld [vmem:[#allocation2 + $0xe8] sm:$0xff]
    %v2870 = vld [vmem:[#allocation2 + $0xf0] sm:$0xff]
    %v2871 = vld [vmem:[#allocation2 + $0xf8] sm:$0xff]
    %v2872 = vadd.f32 %v2868, %v2793
    %v2873 = vadd.f32 %v2869, %v2795
    %v2874 = vadd.f32 %v2870, %v2834
    %v2875 = vadd.f32 %v2871, %v2836
    %v2876 = vxor.u32 %v2872, 2147483648
    %v2877 = vxor.u32 %v2873, 2147483648
    %v2878 = vxor.u32 %v2874, 2147483648
    %v2879 = vmul.f32 %v2876, 1.442695
    %v2880 = vpow.pop %v2879
    %v2881 = vmul.f32 %v2877, 1.442695
    %v2882 = vpow.pop %v2881
    %v2883 = vmul.f32 %v2878, 1.442695
    %v2884 = vpow.pop %v2883
    %v2885 = vadd.f32 %v2880, 1.0
    %v2886 = vadd.f32 %v2882, 1.0
    %v2887 = vadd.f32 %v2884, 1.0
    %v2888 = vrcp.pop %v2885
    %v2889 = vmul.f32 1.0, %v2888
    %v2890 = vrcp.pop %v2886
    %v2891 = vmul.f32 1.0, %v2890
    %v2892 = vrcp.pop %v2887
    %v2893 = vmul.f32 1.0, %v2892
    %v2894 = vtanh.pop %v2875
    %v2895 = vmul.f32 %v2891, %v2671
    %v2896 = vmul.f32 %v2889, %v2894
    %v2897 = vadd.f32 %v2895, %v2896
    %v2898 = vtanh.pop %v2897
    %v2899 = vmul.f32 %v2893, %v2898
    %v2900 = vpack.c.bf16 %v2899, %v2899
    %v2901 = vpack.c.bf16 %v2867, %v2867
    %2902 = vmatprep.subr.bf16.mxu0 %v1065
    %2903 = vmatpush1.bf16.msra.mxu0 %v1064
    %2904 = vmatprep.subr.bf16.mxu0 %v1073
    %2905 = vmatpush1.bf16.msra.mxu0 %v1072
    %2906 = vmatprep.subr.bf16.mxu0 %v1081
    %2907 = vmatpush1.bf16.msra.mxu0 %v1080
    %2908 = vmatprep.subr.bf16.mxu0 %v1089
    %2909 = vmatpush1.bf16.msra.mxu0 %v1088
    %2910 = vmatprep.subr.bf16.mxu0 %v1097
    %2911 = vmatpush1.bf16.msra.mxu0 %v1096
    %2912 = vmatprep.subr.bf16.mxu0 %v1105
    %2913 = vmatpush1.bf16.msra.mxu0 %v1104
    %2914 = vmatprep.subr.bf16.mxu0 %v1113
    %2915 = vmatpush1.bf16.msra.mxu0 %v1112
    %2916 = vmatprep.subr.bf16.mxu0 %v1121
    %2917 = vmatpush1.bf16.msra.mxu0 %v1120
    %2918 = vmatprep.subr.bf16.mxu0 %v1129
    %2919 = vmatpush1.bf16.msra.mxu0 %v1128
    %2920 = vmatprep.subr.bf16.mxu0 %v1137
    %2921 = vmatpush1.bf16.msra.mxu0 %v1136
    %2922 = vmatprep.subr.bf16.mxu0 %v1145
    %2923 = vmatpush1.bf16.msra.mxu0 %v1144
    %2924 = vmatprep.subr.bf16.mxu0 %v1153
    %2925 = vmatpush1.bf16.msra.mxu0 %v1152
    %2926 = vmatprep.subr.bf16.mxu0 %v1161
    %2927 = vmatpush1.bf16.msra.mxu0 %v1160
    %2928 = vmatprep.subr.bf16.mxu0 %v1169
    %2929 = vmatpush1.bf16.msra.mxu0 %v1168
    %2930 = vmatprep.subr.bf16.mxu0 %v1177
    %2931 = vmatpush1.bf16.msra.mxu0 %v1176
    %2932 = vmatprep.subr.bf16.mxu0 %v1185
    %2933 = vmatpush1.bf16.msra.mxu0 %v1184
    %2934 = vmatprep.mubr.bf16.mxu0 %v2901
    %2935 = vmatmul.mubr.bf16.gmra.mrb[0].mxu0 %v2900
    %v2936 = vpop.f32.mrb[0].mxu0
    %v2937 = vadd.f32 0.0, %v2936
    %v2938 = vpop.f32.mrb[0].mxu0
    %v2939 = vadd.f32 0.0, %v2938
    %v2940 = vpop.f32.mrb[0].mxu0
    %v2941 = vpop.f32.mrb[0].mxu0
    %2942 = vdwg.mxu0
    %2943 = vmatprep.subr.bf16.mxu0 %v1067
    %2944 = vmatpush1.bf16.msra.mxu0 %v1066
    %2945 = vmatprep.subr.bf16.mxu0 %v1075
    %2946 = vmatpush1.bf16.msra.mxu0 %v1074
    %2947 = vmatprep.subr.bf16.mxu0 %v1083
    %2948 = vmatpush1.bf16.msra.mxu0 %v1082
    %2949 = vmatprep.subr.bf16.mxu0 %v1091
    %2950 = vmatpush1.bf16.msra.mxu0 %v1090
    %2951 = vmatprep.subr.bf16.mxu0 %v1099
    %2952 = vmatpush1.bf16.msra.mxu0 %v1098
    %2953 = vmatprep.subr.bf16.mxu0 %v1107
    %2954 = vmatpush1.bf16.msra.mxu0 %v1106
    %2955 = vmatprep.subr.bf16.mxu0 %v1115
    %2956 = vmatpush1.bf16.msra.mxu0 %v1114
    %2957 = vmatprep.subr.bf16.mxu0 %v1123
    %2958 = vmatpush1.bf16.msra.mxu0 %v1122
    %2959 = vmatprep.subr.bf16.mxu0 %v1131
    %2960 = vmatpush1.bf16.msra.mxu0 %v1130
    %2961 = vmatprep.subr.bf16.mxu0 %v1139
    %2962 = vmatpush1.bf16.msra.mxu0 %v1138
    %2963 = vmatprep.subr.bf16.mxu0 %v1147
    %2964 = vmatpush1.bf16.msra.mxu0 %v1146
    %2965 = vmatprep.subr.bf16.mxu0 %v1155
    %2966 = vmatpush1.bf16.msra.mxu0 %v1154
    %2967 = vmatprep.subr.bf16.mxu0 %v1163
    %2968 = vmatpush1.bf16.msra.mxu0 %v1162
    %2969 = vmatprep.subr.bf16.mxu0 %v1171
    %2970 = vmatpush1.bf16.msra.mxu0 %v1170
    %2971 = vmatprep.subr.bf16.mxu0 %v1179
    %2972 = vmatpush1.bf16.msra.mxu0 %v1178
    %2973 = vmatprep.subr.bf16.mxu0 %v1187
    %2974 = vmatpush1.bf16.msra.mxu0 %v1186
    %2975 = vmatprep.mubr.bf16.mxu0 %v2901
    %2976 = vmatmul.mubr.bf16.gmra.mrb[0].mxu0 %v2900
    %v2977 = vpop.f32.mrb[0].mxu0
    %v2978 = vadd.f32 0.0, %v2977
    %v2979 = vpop.f32.mrb[0].mxu0
    %v2980 = vadd.f32 0.0, %v2979
    %v2981 = vpop.f32.mrb[0].mxu0
    %v2982 = vpop.f32.mrb[0].mxu0
    %2983 = vdwg.mxu0
    %v2984 = vadd.f32 %v2937, %v646
    %v2985 = vadd.f32 %v2939, %v647
    %v2986 = vadd.f32 %v2978, %v648
    %v2987 = vadd.f32 %v2980, %v649
    %v2988 = vxor.u32 %v2984, 2147483648
    %v2989 = vxor.u32 %v2985, 2147483648
    %v2990 = vxor.u32 %v2986, 2147483648
    %v2991 = vmul.f32 %v2988, 1.442695
    %v2992 = vpow.pop %v2991
    %v2993 = vmul.f32 %v2989, 1.442695
    %v2994 = vpow.pop %v2993
    %v2995 = vmul.f32 %v2990, 1.442695
    %v2996 = vpow.pop %v2995
    %v2997 = vadd.f32 %v2992, 1.0
    %v2998 = vadd.f32 %v2994, 1.0
    %v2999 = vadd.f32 %v2996, 1.0
    %v3000 = vrcp.pop %v2997
    %v3001 = vmul.f32 1.0, %v3000
    %v3002 = vrcp.pop %v2998
    %v3003 = vmul.f32 1.0, %v3002
    %v3004 = vrcp.pop %v2999
    %v3005 = vmul.f32 1.0, %v3004
    %v3006 = vtanh.pop %v2987
    %v3007 = vmul.f32 %v3003, %v2865
    %v3008 = vmul.f32 %v3001, %v3006
    %v3009 = vadd.f32 %v3007, %v3008
    %v3010 = vtanh.pop %v3009
    %v3011 = vmul.f32 %v3005, %v3010
    %v3012 = vpack.c.bf16 %v3011, %v3011
    %v3013 = vld [vmem:[#allocation11] sm:$0xf]
    %v3014 = vld [vmem:[#allocation11 + $0x4] sm:$0xf]
    %v3015 = vld [vmem:[#allocation11 + $0x8] sm:$0xf]
    %v3016 = vld [vmem:[#allocation11 + $0xc] sm:$0xf]
    %v3017 = vld [vmem:[#allocation11 + $0x10] sm:$0xf]
    %v3018 = vld [vmem:[#allocation11 + $0x14] sm:$0xf]
    %v3019 = vld [vmem:[#allocation11 + $0x18] sm:$0xf]
    %v3020 = vld [vmem:[#allocation11 + $0x1c] sm:$0xf]
    %v3021 = vld [vmem:[#allocation11 + $0x20] sm:$0xf]
    %v3022 = vld [vmem:[#allocation11 + $0x24] sm:$0xf]
    %v3023 = vld [vmem:[#allocation11 + $0x28] sm:$0xf]
    %v3024 = vld [vmem:[#allocation11 + $0x2c] sm:$0xf]
    %v3025 = vld [vmem:[#allocation11 + $0x30] sm:$0xf]
    %v3026 = vld [vmem:[#allocation11 + $0x34] sm:$0xf]
    %v3027 = vld [vmem:[#allocation11 + $0x38] sm:$0xf]
    %v3028 = vld [vmem:[#allocation11 + $0x3c] sm:$0xf]
    %v3029 = vld [vmem:[%s6] sm:$0x1]
    %v3031 = vlaneseq
    %v3032 = vshrl.u32 %v3031, 7
    %v3033 = vsub.s32 0, %v3032
    %v3034 = vrot.slane %v3029, %v3033
    %v3052 = vunpack.c.l.b16 %v3013
    %v3053 = vunpack.c.l.b16 %v3014
    %v3054 = vunpack.c.l.b16 %v3015
    %v3055 = vunpack.c.l.b16 %v3016
    %v3056 = vunpack.c.l.b16 %v3017
    %v3057 = vunpack.c.l.b16 %v3018
    %v3058 = vunpack.c.l.b16 %v3019
    %v3059 = vunpack.c.l.b16 %v3020
    %v3060 = vunpack.c.l.b16 %v3021
    %v3061 = vunpack.c.l.b16 %v3022
    %v3062 = vunpack.c.l.b16 %v3023
    %v3063 = vunpack.c.l.b16 %v3024
    %v3064 = vunpack.c.l.b16 %v3025
    %v3065 = vunpack.c.l.b16 %v3026
    %v3066 = vunpack.c.l.b16 %v3027
    %v3067 = vunpack.c.l.b16 %v3028
    %v3068 = vpack.c.b16 %v3053, %v3052
    %v3069 = vpack.c.b16 %v3055, %v3054
    %v3070 = vpack.c.b16 %v3057, %v3056
    %v3071 = vpack.c.b16 %v3059, %v3058
    %v3072 = vpack.c.b16 %v3061, %v3060
    %v3073 = vpack.c.b16 %v3063, %v3062
    %v3074 = vpack.c.b16 %v3065, %v3064
    %v3075 = vpack.c.b16 %v3067, %v3066
    %3084 = vmatprep.subr.bf16.mxu0 0
    %3085 = vmatpush1.bf16.msra.mxu0 %v3068
    %3086 = vmatprep.subr.bf16.mxu0 0
    %3087 = vmatpush1.bf16.msra.mxu0 %v3069
    %3088 = vmatprep.subr.bf16.mxu0 0
    %3089 = vmatpush1.bf16.msra.mxu0 %v3070
    %3090 = vmatprep.subr.bf16.mxu0 0
    %3091 = vmatpush1.bf16.msra.mxu0 %v3071
    %3092 = vmatprep.subr.bf16.mxu0 0
    %3093 = vmatpush1.bf16.msra.mxu0 %v3072
    %3094 = vmatprep.subr.bf16.mxu0 0
    %3095 = vmatpush1.bf16.msra.mxu0 %v3073
    %3096 = vmatprep.subr.bf16.mxu0 0
    %3097 = vmatpush1.bf16.msra.mxu0 %v3074
    %3098 = vmatprep.subr.bf16.mxu0 0
    %3099 = vmatpush1.bf16.msra.mxu0 %v3075
    %3100 = vmatprep.subr.bf16.mxu0 0
    %3101 = vmatpush1.bf16.msra.mxu0 0
    %3102 = vmatprep.subr.bf16.mxu0 0
    %3103 = vmatpush1.bf16.msra.mxu0 0
    %3104 = vmatprep.subr.bf16.mxu0 0
    %3105 = vmatpush1.bf16.msra.mxu0 0
    %3106 = vmatprep.subr.bf16.mxu0 0
    %3107 = vmatpush1.bf16.msra.mxu0 0
    %3108 = vmatprep.subr.bf16.mxu0 0
    %3109 = vmatpush1.bf16.msra.mxu0 0
    %3110 = vmatprep.subr.bf16.mxu0 0
    %3111 = vmatpush1.bf16.msra.mxu0 0
    %3112 = vmatprep.subr.bf16.mxu0 0
    %3113 = vmatpush1.bf16.msra.mxu0 0
    %3114 = vmatprep.subr.bf16.mxu0 0
    %3115 = vmatpush1.bf16.msra.mxu0 0
    %3116 = vmatprep.mubr.bf16.mxu0 0
    %3117 = vmatmul.mubr.bf16.gmra.mrb[0].mxu0 %v3012
    %v3118 = vpop.f32.mrb[0].mxu0
    %v3119 = vadd.f32 %v3034, %v3118
    %v3120 = vpop.f32.mrb[0].mxu0
    %v3121 = vpop.f32.mrb[0].mxu0
    %v3122 = vpop.f32.mrb[0].mxu0
    %3123 = vdwg.mxu0
    %3124 = vst [vmem:[#allocation12] sm:$0xff] %v3119
    // Predicated region
    $region50: #{tpu_custom_call.1} parent=1 // pred_check
      _
    $region51: #{tpu_custom_call.1} parent=1 // pred_check_branch
      %3126 = sbr.rel (0) target = $region53
    $region52: #{tpu_custom_call.1} parent=1 // pred_region
      %s3128 = ssub.s32 128, 128
      %3129 = vsyncadd [#allocation5], %s3128
      %s3131 = sshll.u32 [#allocation12], 4
      %s3132 = int_to_ptr.vmem [resolvable:$true] %s3131
      %3134 = dma.vmem_to_hbm [thread:$0]  %s3132, 128, %s7, [#allocation5]
    $region53: #{tpu_custom_call.1} parent=1 // pred_fallthru
      _
    // Predicated region
    $region54: #{tpu_custom_call.1} parent=1 // pred_check
      _
    $region55: #{tpu_custom_call.1} parent=1 // pred_check_branch
      %3136 = sbr.rel (0) target = $region57
    $region56: #{tpu_custom_call.1} parent=1 // pred_region
      %3137 = dma.done [#allocation5], 128
    $region57: #{tpu_custom_call.1} parent=1 // pred_fallthru
      _
    %3138 = vsyncpa [#allocation4], 1
    %3139 = vsyncpa [#allocation7], 1
    %3140 = vsyncpa [#allocation10], 1
    %3141 = vsyncpa [#allocation5], 1

</llo_original>
